<compile_context>
chip_gen: v7x
topology: tpu7x:2x2x1
jax: 0.10.0
libtpu: 0.0.40
codegen_flags: <defaults>
</compile_context>

<pallas_src>
import functools

import jax
import jax.numpy as jnp
from jax.experimental import pallas as pl
from jax.experimental.pallas import tpu as pltpu


# ------------------------------ Pallas kernel -------------------------------

def _spatial_attn_kernel(xp_ref, w_ref, b_ref, o_ref, *, ksize, H, W):
    """Fused 0.1 * sigmoid(conv1) * lrelu(conv2) + residual for one image.

    xp_ref: (1, H+2p, W+2p, C)   zero-padded NHWC input for this batch element
    w_ref : (ksize*ksize, C, 2C) per-tap [conv1 | conv2] matrices, (cin, cout)
    b_ref : (1, 2C)              [b1 | b2]
    o_ref : (1, H*W, C)
    """
    C = xp_ref.shape[3]
    M = H * W
    pad = (ksize - 1) // 2

    # Both convs computed together: accumulate 9 shifted-window matmuls into a
    # single (M, 2C) accumulator (conv1 in the first C lanes, conv2 in the rest).
    acc = jnp.zeros((M, 2 * C), jnp.float32)
    tap = 0
    for kh in range(ksize):
        for kw in range(ksize):
            # (H, W, C) window from the VMEM-resident padded input; the reshape
            # only relabels whole (8,128) tiles because W % 8 == 0.
            win = xp_ref[0, kh:kh + H, kw:kw + W, :].reshape(M, C)
            acc = acc + jnp.dot(win, w_ref[tap],
                                preferred_element_type=jnp.float32)
            tap += 1
    acc = acc + b_ref[...]

    s = 1.0 / (1.0 + jnp.exp(-acc[:, :C]))          # conv1 branch ('sigmoid')
    a = acc[:, C:]
    a = jnp.where(a >= 0, a, 0.2 * a)               # conv2 branch (LeakyReLU 0.2)

    res = xp_ref[0, pad:pad + H, pad:pad + W, :].reshape(M, C)   # residual = x
    o_ref[0, :, :] = (0.1 * s * a + res).astype(o_ref.dtype)


# ------------------------------- wrapper ------------------------------------

def spatial_attn_block(params, x_nchw, *, ksize, pad):
    """NCHW in / NCHW out (PyTorch convention); NHWC inside the kernel."""
    B, C, H, W = x_nchw.shape
    assert 2 * pad == ksize - 1, "residual add requires 'same' spatial size"
    assert W % 8 == 0, "W must be a multiple of the sublane tile (8)"
    # TODO(synk): general stride/dilation change the output spatial size and
    #             break the residual add in the original module as well.

    # One fused XLA copy: transpose to NHWC + zero pad.
    x_nhwc = jnp.transpose(x_nchw, (0, 2, 3, 1))
    xp = jnp.pad(x_nhwc, ((0, 0), (pad, pad), (pad, pad), (0, 0)))
    Hp, Wp = H + 2 * pad, W + 2 * pad
    KK = ksize * ksize

    kern = functools.partial(_spatial_attn_kernel, ksize=ksize, H=H, W=W)
    rows = pl.pallas_call(
        kern,
        grid=(B,),
        in_specs=[
            pl.BlockSpec((1, Hp, Wp, C), lambda b: (b, 0, 0, 0)),   # padded x
            pl.BlockSpec((KK, C, 2 * C), lambda b: (0, 0, 0)),      # weights
            pl.BlockSpec((1, 2 * C), lambda b: (0, 0)),             # biases
        ],
        out_specs=pl.BlockSpec((1, H * W, C), lambda b: (b, 0, 0)),
        out_shape=jax.ShapeDtypeStruct((B, H * W, C), x_nchw.dtype),
        compiler_params=pltpu.CompilerParams(
            dimension_semantics=("parallel",)),
    )(xp, params["w_taps"], params["b_cat"])

    out_nhwc = rows.reshape(B, H, W, C)
    return jnp.transpose(out_nhwc, (0, 3, 1, 2))


# ------------------------------- params -------------------------------------

def init_params(key, C, ksize):
    ks = jax.random.split(key, 4)
    w1 = 0.05 * jax.random.normal(ks[0], (C, C, ksize, ksize), jnp.float32)  # OIHW
    b1 = 0.05 * jax.random.normal(ks[1], (C,), jnp.float32)
    w2 = 0.05 * jax.random.normal(ks[2], (C, C, ksize, ksize), jnp.float32)
    b2 = 0.05 * jax.random.normal(ks[3], (C,), jnp.float32)

    def taps(w):  # OIHW -> (KK, Cin, Cout): tap (kh,kw) matrix [ci,co] = w[co,ci,kh,kw]
        return jnp.transpose(w, (2, 3, 1, 0)).reshape(ksize * ksize, C, C)

    w_taps = jnp.concatenate([taps(w1), taps(w2)], axis=-1)      # (KK, C, 2C)
    b_cat = jnp.concatenate([b1, b2]).reshape(1, 2 * C)          # (1, 2C)
    return dict(w1_oihw=w1, b1=b1, w2_oihw=w2, b2=b2,
                w_taps=w_taps, b_cat=b_cat)


# --------------------------- pure-JAX reference ------------------------------

def _ref_conv(x_nchw, w_oihw, b, pad):
    y = jax.lax.conv_general_dilated(
        x_nchw, w_oihw, window_strides=(1, 1),
        padding=[(pad, pad), (pad, pad)],
        dimension_numbers=("NCHW", "OIHW", "NCHW"))
    return y + b[None, :, None, None]


def reference(params, x_nchw, ksize, pad):
    s = jax.nn.sigmoid(_ref_conv(x_nchw, params["w1_oihw"], params["b1"], pad))
    a = _ref_conv(x_nchw, params["w2_oihw"], params["b2"], pad)
    a = jnp.where(a >= 0, a, 0.2 * a)
    return 0.1 * s * a + x_nchw


# --------------------------------- main --------------------------------------

if __name__ == "__main__":
    B, C, H, W = 2, 16, 16, 16
    ksize, pad = 3, 1

    key = jax.random.PRNGKey(0)
    kx, kp = jax.random.split(key)
    x = jax.random.normal(kx, (B, C, H, W), jnp.float32)
    params = init_params(kp, C, ksize)

    fwd = jax.jit(functools.partial(spatial_attn_block, ksize=ksize, pad=pad))
    out = fwd(params, x)
    jax.block_until_ready(out)

    ref = reference(params, x, ksize, pad)
    err = float(jnp.max(jnp.abs(out - ref)))
    assert out.shape == x.shape, (out.shape, x.shape)
    assert err < 2e-3, f"max abs err vs reference: {err}"
    print("KERNEL_OK")
</pallas_src>

<mosaic_0001>
module attributes {stable_mosaic.version = 11 : i64} {
  func.func @_spatial_attn_kernel(%arg0: i32, %arg1: memref<1x18x18x16xf32, #tpu.memory_space<vmem>>, %arg2: memref<9x16x32xf32, #tpu.memory_space<vmem>>, %arg3: memref<1x32xf32, #tpu.memory_space<vmem>>, %arg4: memref<1x256x16xf32, #tpu.memory_space<vmem>>) attributes {dimension_semantics = [#tpu.dimension_semantics<parallel>], iteration_bounds = array<i64: 2>, scalar_prefetch = 0 : i64, scratch_operands = 0 : i64, tpu.core_type = #tpu.core_type<tc>, window_params = [{transform_indices = @transform_0, window_bounds = array<i64: 1, 18, 18, 16>}, {pipeline_mode = #tpu.pipeline_mode<synchronous>, transform_indices = @transform_1, window_bounds = array<i64: 9, 16, 32>}, {pipeline_mode = #tpu.pipeline_mode<synchronous>, transform_indices = @transform_2, window_bounds = array<i64: 1, 32>}, {transform_indices = @transform_3, window_bounds = array<i64: 1, 256, 16>}]} {
    %cst = arith.constant 0.000000e+00 : f32
    %0 = vector.broadcast %cst : f32 to vector<256x32xf32>
    %c0 = arith.constant 0 : index
    %c0_0 = arith.constant 0 : index
    %c0_1 = arith.constant 0 : index
    %c0_2 = arith.constant 0 : index
    %1 = vector.load %arg1[%c0, %c0_0, %c0_1, %c0_2] : memref<1x18x18x16xf32, #tpu.memory_space<vmem>>, vector<1x16x16x16xf32>
    %2 = vector.shape_cast %1 : vector<1x16x16x16xf32> to vector<16x16x16xf32>
    %3 = vector.shape_cast %2 : vector<16x16x16xf32> to vector<256x16xf32>
    %c0_3 = arith.constant 0 : index
    %c0_4 = arith.constant 0 : index
    %c0_5 = arith.constant 0 : index
    %4 = vector.load %arg2[%c0_3, %c0_4, %c0_5] : memref<9x16x32xf32, #tpu.memory_space<vmem>>, vector<1x16x32xf32>
    %5 = vector.shape_cast %4 : vector<1x16x32xf32> to vector<16x32xf32>
    %cst_6 = arith.constant dense<0.000000e+00> : vector<256x32xf32>
    %6 = tpu.matmul %3, %5, %cst_6 {dimension_numbers = #tpu.dot_dimension_numbers<[1], [0], [0], [1], [0, 0, 1, 1], [], []>} : vector<256x16xf32>, vector<16x32xf32>, vector<256x32xf32> -> vector<256x32xf32>
    %7 = arith.addf %0, %6 : vector<256x32xf32>
    %c0_7 = arith.constant 0 : index
    %c0_8 = arith.constant 0 : index
    %c1 = arith.constant 1 : index
    %c0_9 = arith.constant 0 : index
    %8 = vector.load %arg1[%c0_7, %c0_8, %c1, %c0_9] : memref<1x18x18x16xf32, #tpu.memory_space<vmem>>, vector<1x16x16x16xf32>
    %9 = vector.shape_cast %8 : vector<1x16x16x16xf32> to vector<16x16x16xf32>
    %10 = vector.shape_cast %9 : vector<16x16x16xf32> to vector<256x16xf32>
    %c1_10 = arith.constant 1 : index
    %c0_11 = arith.constant 0 : index
    %c0_12 = arith.constant 0 : index
    %11 = vector.load %arg2[%c1_10, %c0_11, %c0_12] : memref<9x16x32xf32, #tpu.memory_space<vmem>>, vector<1x16x32xf32>
    %12 = vector.shape_cast %11 : vector<1x16x32xf32> to vector<16x32xf32>
    %cst_13 = arith.constant dense<0.000000e+00> : vector<256x32xf32>
    %13 = tpu.matmul %10, %12, %cst_13 {dimension_numbers = #tpu.dot_dimension_numbers<[1], [0], [0], [1], [0, 0, 1, 1], [], []>} : vector<256x16xf32>, vector<16x32xf32>, vector<256x32xf32> -> vector<256x32xf32>
    %14 = arith.addf %7, %13 : vector<256x32xf32>
    %c0_14 = arith.constant 0 : index
    %c0_15 = arith.constant 0 : index
    %c2 = arith.constant 2 : index
    %c0_16 = arith.constant 0 : index
    %15 = vector.load %arg1[%c0_14, %c0_15, %c2, %c0_16] : memref<1x18x18x16xf32, #tpu.memory_space<vmem>>, vector<1x16x16x16xf32>
    %16 = vector.shape_cast %15 : vector<1x16x16x16xf32> to vector<16x16x16xf32>
    %17 = vector.shape_cast %16 : vector<16x16x16xf32> to vector<256x16xf32>
    %c2_17 = arith.constant 2 : index
    %c0_18 = arith.constant 0 : index
    %c0_19 = arith.constant 0 : index
    %18 = vector.load %arg2[%c2_17, %c0_18, %c0_19] : memref<9x16x32xf32, #tpu.memory_space<vmem>>, vector<1x16x32xf32>
    %19 = vector.shape_cast %18 : vector<1x16x32xf32> to vector<16x32xf32>
    %cst_20 = arith.constant dense<0.000000e+00> : vector<256x32xf32>
    %20 = tpu.matmul %17, %19, %cst_20 {dimension_numbers = #tpu.dot_dimension_numbers<[1], [0], [0], [1], [0, 0, 1, 1], [], []>} : vector<256x16xf32>, vector<16x32xf32>, vector<256x32xf32> -> vector<256x32xf32>
    %21 = arith.addf %14, %20 : vector<256x32xf32>
    %c0_21 = arith.constant 0 : index
    %c1_22 = arith.constant 1 : index
    %c0_23 = arith.constant 0 : index
    %c0_24 = arith.constant 0 : index
    %22 = vector.load %arg1[%c0_21, %c1_22, %c0_23, %c0_24] : memref<1x18x18x16xf32, #tpu.memory_space<vmem>>, vector<1x16x16x16xf32>
    %23 = vector.shape_cast %22 : vector<1x16x16x16xf32> to vector<16x16x16xf32>
    %24 = vector.shape_cast %23 : vector<16x16x16xf32> to vector<256x16xf32>
    %c3 = arith.constant 3 : index
    %c0_25 = arith.constant 0 : index
    %c0_26 = arith.constant 0 : index
    %25 = vector.load %arg2[%c3, %c0_25, %c0_26] : memref<9x16x32xf32, #tpu.memory_space<vmem>>, vector<1x16x32xf32>
    %26 = vector.shape_cast %25 : vector<1x16x32xf32> to vector<16x32xf32>
    %cst_27 = arith.constant dense<0.000000e+00> : vector<256x32xf32>
    %27 = tpu.matmul %24, %26, %cst_27 {dimension_numbers = #tpu.dot_dimension_numbers<[1], [0], [0], [1], [0, 0, 1, 1], [], []>} : vector<256x16xf32>, vector<16x32xf32>, vector<256x32xf32> -> vector<256x32xf32>
    %28 = arith.addf %21, %27 : vector<256x32xf32>
    %c0_28 = arith.constant 0 : index
    %c1_29 = arith.constant 1 : index
    %c1_30 = arith.constant 1 : index
    %c0_31 = arith.constant 0 : index
    %29 = vector.load %arg1[%c0_28, %c1_29, %c1_30, %c0_31] : memref<1x18x18x16xf32, #tpu.memory_space<vmem>>, vector<1x16x16x16xf32>
    %30 = vector.shape_cast %29 : vector<1x16x16x16xf32> to vector<16x16x16xf32>
    %31 = vector.shape_cast %30 : vector<16x16x16xf32> to vector<256x16xf32>
    %c4 = arith.constant 4 : index
    %c0_32 = arith.constant 0 : index
    %c0_33 = arith.constant 0 : index
    %32 = vector.load %arg2[%c4, %c0_32, %c0_33] : memref<9x16x32xf32, #tpu.memory_space<vmem>>, vector<1x16x32xf32>
    %33 = vector.shape_cast %32 : vector<1x16x32xf32> to vector<16x32xf32>
    %cst_34 = arith.constant dense<0.000000e+00> : vector<256x32xf32>
    %34 = tpu.matmul %31, %33, %cst_34 {dimension_numbers = #tpu.dot_dimension_numbers<[1], [0], [0], [1], [0, 0, 1, 1], [], []>} : vector<256x16xf32>, vector<16x32xf32>, vector<256x32xf32> -> vector<256x32xf32>
    %35 = arith.addf %28, %34 : vector<256x32xf32>
    %c0_35 = arith.constant 0 : index
    %c1_36 = arith.constant 1 : index
    %c2_37 = arith.constant 2 : index
    %c0_38 = arith.constant 0 : index
    %36 = vector.load %arg1[%c0_35, %c1_36, %c2_37, %c0_38] : memref<1x18x18x16xf32, #tpu.memory_space<vmem>>, vector<1x16x16x16xf32>
    %37 = vector.shape_cast %36 : vector<1x16x16x16xf32> to vector<16x16x16xf32>
    %38 = vector.shape_cast %37 : vector<16x16x16xf32> to vector<256x16xf32>
    %c5 = arith.constant 5 : index
    %c0_39 = arith.constant 0 : index
    %c0_40 = arith.constant 0 : index
    %39 = vector.load %arg2[%c5, %c0_39, %c0_40] : memref<9x16x32xf32, #tpu.memory_space<vmem>>, vector<1x16x32xf32>
    %40 = vector.shape_cast %39 : vector<1x16x32xf32> to vector<16x32xf32>
    %cst_41 = arith.constant dense<0.000000e+00> : vector<256x32xf32>
    %41 = tpu.matmul %38, %40, %cst_41 {dimension_numbers = #tpu.dot_dimension_numbers<[1], [0], [0], [1], [0, 0, 1, 1], [], []>} : vector<256x16xf32>, vector<16x32xf32>, vector<256x32xf32> -> vector<256x32xf32>
    %42 = arith.addf %35, %41 : vector<256x32xf32>
    %c0_42 = arith.constant 0 : index
    %c2_43 = arith.constant 2 : index
    %c0_44 = arith.constant 0 : index
    %c0_45 = arith.constant 0 : index
    %43 = vector.load %arg1[%c0_42, %c2_43, %c0_44, %c0_45] : memref<1x18x18x16xf32, #tpu.memory_space<vmem>>, vector<1x16x16x16xf32>
    %44 = vector.shape_cast %43 : vector<1x16x16x16xf32> to vector<16x16x16xf32>
    %45 = vector.shape_cast %44 : vector<16x16x16xf32> to vector<256x16xf32>
    %c6 = arith.constant 6 : index
    %c0_46 = arith.constant 0 : index
    %c0_47 = arith.constant 0 : index
    %46 = vector.load %arg2[%c6, %c0_46, %c0_47] : memref<9x16x32xf32, #tpu.memory_space<vmem>>, vector<1x16x32xf32>
    %47 = vector.shape_cast %46 : vector<1x16x32xf32> to vector<16x32xf32>
    %cst_48 = arith.constant dense<0.000000e+00> : vector<256x32xf32>
    %48 = tpu.matmul %45, %47, %cst_48 {dimension_numbers = #tpu.dot_dimension_numbers<[1], [0], [0], [1], [0, 0, 1, 1], [], []>} : vector<256x16xf32>, vector<16x32xf32>, vector<256x32xf32> -> vector<256x32xf32>
    %49 = arith.addf %42, %48 : vector<256x32xf32>
    %c0_49 = arith.constant 0 : index
    %c2_50 = arith.constant 2 : index
    %c1_51 = arith.constant 1 : index
    %c0_52 = arith.constant 0 : index
    %50 = vector.load %arg1[%c0_49, %c2_50, %c1_51, %c0_52] : memref<1x18x18x16xf32, #tpu.memory_space<vmem>>, vector<1x16x16x16xf32>
    %51 = vector.shape_cast %50 : vector<1x16x16x16xf32> to vector<16x16x16xf32>
    %52 = vector.shape_cast %51 : vector<16x16x16xf32> to vector<256x16xf32>
    %c7 = arith.constant 7 : index
    %c0_53 = arith.constant 0 : index
    %c0_54 = arith.constant 0 : index
    %53 = vector.load %arg2[%c7, %c0_53, %c0_54] : memref<9x16x32xf32, #tpu.memory_space<vmem>>, vector<1x16x32xf32>
    %54 = vector.shape_cast %53 : vector<1x16x32xf32> to vector<16x32xf32>
    %cst_55 = arith.constant dense<0.000000e+00> : vector<256x32xf32>
    %55 = tpu.matmul %52, %54, %cst_55 {dimension_numbers = #tpu.dot_dimension_numbers<[1], [0], [0], [1], [0, 0, 1, 1], [], []>} : vector<256x16xf32>, vector<16x32xf32>, vector<256x32xf32> -> vector<256x32xf32>
    %56 = arith.addf %49, %55 : vector<256x32xf32>
    %c0_56 = arith.constant 0 : index
    %c2_57 = arith.constant 2 : index
    %c2_58 = arith.constant 2 : index
    %c0_59 = arith.constant 0 : index
    %57 = vector.load %arg1[%c0_56, %c2_57, %c2_58, %c0_59] : memref<1x18x18x16xf32, #tpu.memory_space<vmem>>, vector<1x16x16x16xf32>
    %58 = vector.shape_cast %57 : vector<1x16x16x16xf32> to vector<16x16x16xf32>
    %59 = vector.shape_cast %58 : vector<16x16x16xf32> to vector<256x16xf32>
    %c8 = arith.constant 8 : index
    %c0_60 = arith.constant 0 : index
    %c0_61 = arith.constant 0 : index
    %60 = vector.load %arg2[%c8, %c0_60, %c0_61] : memref<9x16x32xf32, #tpu.memory_space<vmem>>, vector<1x16x32xf32>
    %61 = vector.shape_cast %60 : vector<1x16x32xf32> to vector<16x32xf32>
    %cst_62 = arith.constant dense<0.000000e+00> : vector<256x32xf32>
    %62 = tpu.matmul %59, %61, %cst_62 {dimension_numbers = #tpu.dot_dimension_numbers<[1], [0], [0], [1], [0, 0, 1, 1], [], []>} : vector<256x16xf32>, vector<16x32xf32>, vector<256x32xf32> -> vector<256x32xf32>
    %63 = arith.addf %56, %62 : vector<256x32xf32>
    %c0_63 = arith.constant 0 : index
    %c0_64 = arith.constant 0 : index
    %64 = vector.load %arg3[%c0_63, %c0_64] : memref<1x32xf32, #tpu.memory_space<vmem>>, vector<1x32xf32>
    %65 = vector.broadcast %64 : vector<1x32xf32> to vector<256x32xf32>
    %66 = arith.addf %63, %65 : vector<256x32xf32>
    %67 = vector.extract_strided_slice %66 {offsets = [0, 0], sizes = [256, 16], strides = [1, 1]} : vector<256x32xf32> to vector<256x16xf32>
    %cst_65 = arith.constant 0.000000e+00 : f32
    %68 = vector.broadcast %cst_65 : f32 to vector<256x16xf32>
    %69 = arith.subf %68, %67 : vector<256x16xf32>
    %70 = math.exp %69 : vector<256x16xf32>
    %cst_66 = arith.constant 1.000000e+00 : f32
    %71 = vector.broadcast %cst_66 : f32 to vector<256x16xf32>
    %72 = arith.addf %71, %70 : vector<256x16xf32>
    %cst_67 = arith.constant 1.000000e+00 : f32
    %73 = vector.broadcast %cst_67 : f32 to vector<256x16xf32>
    %74 = arith.divf %73, %72 : vector<256x16xf32>
    %75 = vector.extract_strided_slice %66 {offsets = [0, 16], sizes = [256, 16], strides = [1, 1]} : vector<256x32xf32> to vector<256x16xf32>
    %cst_68 = arith.constant 0.000000e+00 : f32
    %76 = vector.broadcast %cst_68 : f32 to vector<256x16xf32>
    %77 = arith.cmpf oge, %75, %76 : vector<256x16xf32>
    %cst_69 = arith.constant 2.000000e-01 : f32
    %78 = vector.broadcast %cst_69 : f32 to vector<256x16xf32>
    %79 = arith.mulf %78, %75 : vector<256x16xf32>
    %80 = arith.select %77, %75, %79 : vector<256x16xi1>, vector<256x16xf32>
    %c0_70 = arith.constant 0 : index
    %c1_71 = arith.constant 1 : index
    %c1_72 = arith.constant 1 : index
    %c0_73 = arith.constant 0 : index
    %81 = vector.load %arg1[%c0_70, %c1_71, %c1_72, %c0_73] : memref<1x18x18x16xf32, #tpu.memory_space<vmem>>, vector<1x16x16x16xf32>
    %82 = vector.shape_cast %81 : vector<1x16x16x16xf32> to vector<16x16x16xf32>
    %83 = vector.shape_cast %82 : vector<16x16x16xf32> to vector<256x16xf32>
    %cst_74 = arith.constant 1.000000e-01 : f32
    %84 = vector.broadcast %cst_74 : f32 to vector<256x16xf32>
    %85 = arith.mulf %84, %74 : vector<256x16xf32>
    %86 = arith.mulf %85, %80 : vector<256x16xf32>
    %87 = arith.addf %86, %83 : vector<256x16xf32>
    %c0_75 = arith.constant 0 : index
    %c0_76 = arith.constant 0 : index
    %c0_77 = arith.constant 0 : index
    %88 = vector.load %arg4[%c0_75, %c0_76, %c0_77] : memref<1x256x16xf32, #tpu.memory_space<vmem>>, vector<1x256x16xf32>
    %89 = vector.shape_cast %88 : vector<1x256x16xf32> to vector<256x16xf32>
    %90 = vector.shape_cast %87 : vector<256x16xf32> to vector<1x256x16xf32>
    tpu.vector_store %arg4[%c0_75, %c0_76, %c0_77], %90 {strides = array<i32>} : memref<1x256x16xf32, #tpu.memory_space<vmem>>, vector<1x256x16xf32>,
    return
  }
  func.func @transform_0(%arg0: i32) -> (i32, i32, i32, i32) {
    %c0_i32 = arith.constant 0 : i32
    %c0_i32_0 = arith.constant 0 : i32
    %c0_i32_1 = arith.constant 0 : i32
    %c0_i32_2 = arith.constant 0 : i32
    return %arg0, %c0_i32, %c0_i32_0, %c0_i32_1 : i32, i32, i32, i32
  }
  func.func @transform_1(%arg0: i32) -> (i32, i32, i32) {
    %c0_i32 = arith.constant 0 : i32
    %c0_i32_0 = arith.constant 0 : i32
    %c0_i32_1 = arith.constant 0 : i32
    %c0_i32_2 = arith.constant 0 : i32
    return %c0_i32, %c0_i32_0, %c0_i32_1 : i32, i32, i32
  }
  func.func @transform_2(%arg0: i32) -> (i32, i32) {
    %c0_i32 = arith.constant 0 : i32
    %c0_i32_0 = arith.constant 0 : i32
    %c0_i32_1 = arith.constant 0 : i32
    return %c0_i32, %c0_i32_0 : i32, i32
  }
  func.func @transform_3(%arg0: i32) -> (i32, i32, i32) {
    %c0_i32 = arith.constant 0 : i32
    %c0_i32_0 = arith.constant 0 : i32
    %c0_i32_1 = arith.constant 0 : i32
    return %arg0, %c0_i32, %c0_i32_0 : i32, i32, i32
  }
}

</mosaic_0001>

<llo_original>
// kernel: spatial_attn_block.1
$region0: #{spatial_attn_block.1}
  #allocation0 [shape = 'u32[]', space=smem, size = 0x4, offset = 0x4, fixed_abs, tag = 'smem constant byte address 0x4 - core index']
  #allocation1 [shape = 'u32[144,128]{1,0:T(1,128)}', space=vmem, size = 0x12000, scoped, tag = 'internal scratch']
  %s0 = inlined_call_operand.vmem [shape: f32[2,18,18,16], index: 0, kind: input, shape index: {}]
  %s1 = inlined_call_operand.vmem [shape: f32[9,16,32], index: 1, kind: input, shape index: {}]
  %s2 = inlined_call_operand.vmem [shape: f32[1,32], index: 2, kind: input, shape index: {}]
  %s3 = inlined_call_operand.vmem [shape: f32[2,256,16], index: 3, kind: output, shape index: {}]
  %s4 = sld [smem:[#allocation0]]
  $region45: #{spatial_attn_block.1} parent=0
    _
  %s6 = ssub.s32 1, %s4
  %s7 = scalar_select 0, %s6, %s4
  loop: start=0, step=1, limit=4
  $region2: #{spatial_attn_block.1} parent=0 // loop_pre_header
    _
  $region3: #{spatial_attn_block.1} parent=0 // loop_header
    %s9 = sphi 0, %s13
    %p10 = scmp.ge.s32.totalorder %s9, 4
    %s19 = sphi 0, %s21
    %s22 = sphi 0, %s19
    %s23 = sphi 0, %s22
    %s39 = sphi 0, %s23
    %s43 = sphi 0, %s43
    %s45 = sphi 0, %s43
    %s46 = sphi 0, %s45
    %s60 = sphi 0, %s46
    %s64 = sphi 0, %s64
    %s66 = sphi 0, %s64
    %s67 = sphi 0, %s66
    %s81 = sphi 0, %s67
    %s87 = sphi 0, %s89
    %s90 = sphi 0, %s87
    %s91 = sphi 0, %s90
    %s107 = sphi 0, %s91
  $region4: #{spatial_attn_block.1} parent=0 // loop_header_branch
    %12 = sbr.rel (%p10) target = $region8
  $region5: #{spatial_attn_block.1} parent=0 // loop_body
    %s14 = ssub.s32 %s9, 1
    %s15 = ssub.s32 %s9, 2
    %s16 = sadd.s32 %s9, 1
    %s17 = ssub.s32 %s9, %s16
    %p18 = scmp.eq.s32.totalorder %s17, 0
    %s20 = sadd.s32 %s19, 1
    %s21 = scalar_select %p18, %s19, %s20
    %p24 = pneg %p18
    %p25 = scmp.eq.s32.totalorder %s9, 1
    %p26 = por %p24, %p25
    %p27 = scmp.ne.s32.totalorder %s19, %s22
    %p28 = scmp.eq.s32.totalorder %s9, 0
    %p29 = por %p27, %p28
    %p30 = scmp.ne.s32.totalorder %s19, %s22
    %p31 = scmp.eq.s32.totalorder %s14, 1
    %p32 = por %p30, %p31
    %p33 = scmp.ne.s32.totalorder %s22, %s23
    %p34 = scmp.eq.s32.totalorder %s14, 0
    %p35 = por %p33, %p34
    %p36 = scmp.ne.s32.totalorder %s22, %s23
    %p37 = scmp.eq.s32.totalorder %s15, 1
    %p38 = por %p36, %p37
    %p40 = scmp.ne.s32.totalorder %s23, %s39
    %p41 = scmp.eq.s32.totalorder %s15, 0
    %p42 = por %p40, %p41
    %s44 = sadd.s32 %s43, 1
    %p47 = scmp.eq.s32.totalorder %s9, 1
    %p48 = scmp.ne.s32.totalorder %s43, %s45
    %p49 = scmp.eq.s32.totalorder %s9, 0
    %p50 = por %p48, %p49
    %p51 = scmp.ne.s32.totalorder %s43, %s45
    %p52 = scmp.eq.s32.totalorder %s14, 1
    %p53 = por %p51, %p52
    %p54 = scmp.ne.s32.totalorder %s45, %s46
    %p55 = scmp.eq.s32.totalorder %s14, 0
    %p56 = por %p54, %p55
    %p57 = scmp.ne.s32.totalorder %s45, %s46
    %p58 = scmp.eq.s32.totalorder %s15, 1
    %p59 = por %p57, %p58
    %p61 = scmp.ne.s32.totalorder %s46, %s60
    %p62 = scmp.eq.s32.totalorder %s15, 0
    %p63 = por %p61, %p62
    %s65 = sadd.s32 %s64, 1
    %p68 = scmp.eq.s32.totalorder %s9, 1
    %p69 = scmp.ne.s32.totalorder %s64, %s66
    %p70 = scmp.eq.s32.totalorder %s9, 0
    %p71 = por %p69, %p70
    %p72 = scmp.ne.s32.totalorder %s64, %s66
    %p73 = scmp.eq.s32.totalorder %s14, 1
    %p74 = por %p72, %p73
    %p75 = scmp.ne.s32.totalorder %s66, %s67
    %p76 = scmp.eq.s32.totalorder %s14, 0
    %p77 = por %p75, %p76
    %p78 = scmp.ne.s32.totalorder %s66, %s67
    %p79 = scmp.eq.s32.totalorder %s15, 1
    %p80 = por %p78, %p79
    %p82 = scmp.ne.s32.totalorder %s67, %s81
    %p83 = scmp.eq.s32.totalorder %s15, 0
    %p84 = por %p82, %p83
    %s85 = ssub.s32 %s9, %s16
    %p86 = scmp.eq.s32.totalorder %s85, 0
    %s88 = sadd.s32 %s87, 1
    %s89 = scalar_select %p86, %s87, %s88
    %p92 = pneg %p86
    %p93 = scmp.eq.s32.totalorder %s9, 1
    %p94 = por %p92, %p93
    %p95 = scmp.ne.s32.totalorder %s87, %s90
    %p96 = scmp.eq.s32.totalorder %s9, 0
    %p97 = por %p95, %p96
    %p98 = scmp.ne.s32.totalorder %s87, %s90
    %p99 = scmp.eq.s32.totalorder %s14, 1
    %p100 = por %p98, %p99
    %p101 = scmp.ne.s32.totalorder %s90, %s91
    %p102 = scmp.eq.s32.totalorder %s14, 0
    %p103 = por %p101, %p102
    %p104 = scmp.ne.s32.totalorder %s90, %s91
    %p105 = scmp.eq.s32.totalorder %s15, 1
    %p106 = por %p104, %p105
    %p108 = scmp.ne.s32.totalorder %s91, %s107
    %p109 = scmp.eq.s32.totalorder %s15, 0
    %p110 = por %p108, %p109
    %p111 = scmp.le.s32.totalorder 1, %s9
    %p112 = scmp.lt.s32.totalorder %s9, 3
    %p113 = pnand %p111, %p112
    %p114 = pneg %p113
    // Predicated region
    $region9: #{spatial_attn_block.1} parent=5 // pred_check
      _
    $region10: #{spatial_attn_block.1} parent=5 // pred_check_branch
      %116 = sbr.rel (%p113) target = $region12
    $region11: #{spatial_attn_block.1} parent=5 // pred_region
      %s117 = ssub.s32 %s9, 1
      // Predicated region
      $region13: #{spatial_attn_block.1} parent=11 // pred_check
        %p118 = pneg %p56
      $region14: #{spatial_attn_block.1} parent=11 // pred_check_branch
        %120 = sbr.rel (%p118) target = $region16
      $region15: #{spatial_attn_block.1} parent=11 // pred_region
        _
      $region16: #{spatial_attn_block.1} parent=11 // pred_fallthru
        _
      // Predicated region
      $region17: #{spatial_attn_block.1} parent=11 // pred_check
        %p121 = pneg %p77
      $region18: #{spatial_attn_block.1} parent=11 // pred_check_branch
        %123 = sbr.rel (%p121) target = $region20
      $region19: #{spatial_attn_block.1} parent=11 // pred_region
        _
      $region20: #{spatial_attn_block.1} parent=11 // pred_fallthru
        _
    $region12: #{spatial_attn_block.1} parent=5 // pred_fallthru
      _
    %p124 = scmp.lt.s32.totalorder %s9, 2
    // Predicated region
    $region21: #{spatial_attn_block.1} parent=5 // pred_check
      %p125 = pneg %p124
    $region22: #{spatial_attn_block.1} parent=5 // pred_check_branch
      %127 = sbr.rel (%p125) target = $region24
    $region23: #{spatial_attn_block.1} parent=5 // pred_region
      // Predicated region
      $region25: #{spatial_attn_block.1} parent=23 // pred_check
        %p128 = pneg %p29
      $region26: #{spatial_attn_block.1} parent=23 // pred_check_branch
        %130 = sbr.rel (%p128) target = $region28
      $region27: #{spatial_attn_block.1} parent=23 // pred_region
        %p131 = scmp.lt.s32.totalorder %s9, 1
        %s132 = scalar_select %p131, %s9, 1
        %s133 = smul.addr %s132, 54
        %s134 = smul.addr %s133, 8
        %s135 = scalar_lea.vmem %s0, %s134
      $region28: #{spatial_attn_block.1} parent=23 // pred_fallthru
        _
    $region24: #{spatial_attn_block.1} parent=5 // pred_fallthru
      _
    %p136 = scmp.le.s32.totalorder 1, %s9
    %p137 = scmp.lt.s32.totalorder %s9, 3
    %p138 = pnand %p136, %p137
    %p139 = pneg %p138
    // Predicated region
    $region29: #{spatial_attn_block.1} parent=5 // pred_check
      _
    $region30: #{spatial_attn_block.1} parent=5 // pred_check_branch
      %141 = sbr.rel (%p138) target = $region32
    $region31: #{spatial_attn_block.1} parent=5 // pred_region
      %s142 = ssub.s32 %s9, 1
      %p143 = scmp.lt.s32.totalorder %s14, 1
      %s144 = scalar_select %p143, %s14, 1
      %s145 = smul.addr %s144, 54
      %s146 = smul.addr %s145, 8
      %s147 = scalar_lea.vmem %s0, %s146
      %p148 = pneg %p35
      %p149 = pneg %p32
      %p150 = pneg %p56
      %p151 = pneg %p53
      %p152 = pneg %p77
      %p153 = pneg %p74
      %p154 = pneg %p103
      %p155 = pneg %p100
      %p156 = scmp.lt.s32.totalorder %s14, 1
      %s157 = scalar_select %p156, %s14, 1
      %s158 = smul.addr %s157, 32
      %s159 = smul.addr %s158, 8
      %s160 = scalar_lea.vmem %s3, %s159
      %p161 = scmp.lt.s32.totalorder %s14, 1
      %s162 = scalar_select %p161, %s14, 1
      %s163 = smul.addr %s162, 54
      %s164 = smul.addr %s163, 8
      %s165 = scalar_lea.vmem %s0, %s164
      %p166 = scmp.lt.s32.totalorder %s14, 1
      %s167 = scalar_select %p166, %s14, 1
      %s168 = smul.addr %s167, 32
      %s169 = smul.addr %s168, 8
      %s170 = scalar_lea.vmem %s3, %s169
      %v171 = vld [vmem:[%s165] sm:$0xff]
      %v172 = vld [vmem:[%s165 + $0x8] sm:$0xff]
      %v173 = vld [vmem:[%s165 + $0x18] sm:$0xff]
      %v174 = vld [vmem:[%s165 + $0x20] sm:$0xff]
      %v175 = vld [vmem:[%s165 + $0x30] sm:$0xff]
      %v176 = vld [vmem:[%s165 + $0x38] sm:$0xff]
      %v177 = vld [vmem:[%s165 + $0x48] sm:$0xff]
      %v178 = vld [vmem:[%s165 + $0x50] sm:$0xff]
      %v179 = vld [vmem:[%s165 + $0x60] sm:$0xff]
      %v180 = vld [vmem:[%s165 + $0x68] sm:$0xff]
      %v181 = vld [vmem:[%s165 + $0x78] sm:$0xff]
      %v182 = vld [vmem:[%s165 + $0x80] sm:$0xff]
      %v183 = vld [vmem:[%s165 + $0x90] sm:$0xff]
      %v184 = vld [vmem:[%s165 + $0x98] sm:$0xff]
      %v185 = vld [vmem:[%s165 + $0xa8] sm:$0xff]
      %v186 = vld [vmem:[%s165 + $0xb0] sm:$0xff]
      %v187 = vld [vmem:[%s165 + $0xc0] sm:$0xff]
      %v188 = vld [vmem:[%s165 + $0xc8] sm:$0xff]
      %v189 = vld [vmem:[%s165 + $0xd8] sm:$0xff]
      %v190 = vld [vmem:[%s165 + $0xe0] sm:$0xff]
      %v191 = vld [vmem:[%s165 + $0xf0] sm:$0xff]
      %v192 = vld [vmem:[%s165 + $0xf8] sm:$0xff]
      %v193 = vld [vmem:[%s165 + $0x108] sm:$0xff]
      %v194 = vld [vmem:[%s165 + $0x110] sm:$0xff]
      %v195 = vld [vmem:[%s165 + $0x120] sm:$0xff]
      %v196 = vld [vmem:[%s165 + $0x128] sm:$0xff]
      %v197 = vld [vmem:[%s165 + $0x138] sm:$0xff]
      %v198 = vld [vmem:[%s165 + $0x140] sm:$0xff]
      %v199 = vld [vmem:[%s165 + $0x150] sm:$0xff]
      %v200 = vld [vmem:[%s165 + $0x158] sm:$0xff]
      %v201 = vld [vmem:[%s165 + $0x168] sm:$0xff]
      %v202 = vld [vmem:[%s165 + $0x170] sm:$0xff]
      %v203 = vld [vmem:[%s1] sm:$0xff]
      %v204 = vld [vmem:[%s1 + $0x8] sm:$0xff]
      %v205 = vld [vmem:[%s165 + $0x1] sm:$0xff]
      %v206 = vld [vmem:[%s165 + $0x9] sm:$0xff]
      %v207 = vld [vmem:[%s165 + $0x19] sm:$0xff]
      %v208 = vld [vmem:[%s165 + $0x21] sm:$0xff]
      %v209 = vld [vmem:[%s165 + $0x31] sm:$0xff]
      %v210 = vld [vmem:[%s165 + $0x39] sm:$0xff]
      %v211 = vld [vmem:[%s165 + $0x49] sm:$0xff]
      %v212 = vld [vmem:[%s165 + $0x51] sm:$0xff]
      %v213 = vld [vmem:[%s165 + $0x61] sm:$0xff]
      %v214 = vld [vmem:[%s165 + $0x69] sm:$0xff]
      %v215 = vld [vmem:[%s165 + $0x79] sm:$0xff]
      %v216 = vld [vmem:[%s165 + $0x81] sm:$0xff]
      %v217 = vld [vmem:[%s165 + $0x91] sm:$0xff]
      %v218 = vld [vmem:[%s165 + $0x99] sm:$0xff]
      %v219 = vld [vmem:[%s165 + $0xa9] sm:$0xff]
      %v220 = vld [vmem:[%s165 + $0xb1] sm:$0xff]
      %v221 = vld [vmem:[%s165 + $0xc1] sm:$0xff]
      %v222 = vld [vmem:[%s165 + $0xc9] sm:$0xff]
      %v223 = vld [vmem:[%s165 + $0xd9] sm:$0xff]
      %v224 = vld [vmem:[%s165 + $0xe1] sm:$0xff]
      %v225 = vld [vmem:[%s165 + $0xf1] sm:$0xff]
      %v226 = vld [vmem:[%s165 + $0xf9] sm:$0xff]
      %v227 = vld [vmem:[%s165 + $0x109] sm:$0xff]
      %v228 = vld [vmem:[%s165 + $0x111] sm:$0xff]
      %v229 = vld [vmem:[%s165 + $0x121] sm:$0xff]
      %v230 = vld [vmem:[%s165 + $0x129] sm:$0xff]
      %v231 = vld [vmem:[%s165 + $0x139] sm:$0xff]
      %v232 = vld [vmem:[%s165 + $0x141] sm:$0xff]
      %v233 = vld [vmem:[%s165 + $0x151] sm:$0xff]
      %v234 = vld [vmem:[%s165 + $0x159] sm:$0xff]
      %v235 = vld [vmem:[%s165 + $0x169] sm:$0xff]
      %v236 = vld [vmem:[%s165 + $0x171] sm:$0xff]
      %s237 = scalar_lea.vmem %s1, 16
      %v238 = vld [vmem:[%s237] sm:$0xff]
      %v239 = vld [vmem:[%s237 + $0x8] sm:$0xff]
      %vm240 = vcmask 130048
      %v242 = vsel %vm240, %v205, 0
      %v245 = vsel %vm240, %v206, 0
      %v248 = vsel %vm240, %v207, 0
      %v251 = vsel %vm240, %v208, 0
      %v254 = vsel %vm240, %v209, 0
      %v257 = vsel %vm240, %v210, 0
      %v260 = vsel %vm240, %v211, 0
      %v263 = vsel %vm240, %v212, 0
      %v266 = vsel %vm240, %v213, 0
      %v269 = vsel %vm240, %v214, 0
      %v272 = vsel %vm240, %v215, 0
      %v275 = vsel %vm240, %v216, 0
      %v278 = vsel %vm240, %v217, 0
      %v281 = vsel %vm240, %v218, 0
      %v284 = vsel %vm240, %v219, 0
      %v287 = vsel %vm240, %v220, 0
      %v290 = vsel %vm240, %v221, 0
      %v293 = vsel %vm240, %v222, 0
      %v296 = vsel %vm240, %v223, 0
      %v299 = vsel %vm240, %v224, 0
      %v302 = vsel %vm240, %v225, 0
      %v305 = vsel %vm240, %v226, 0
      %v308 = vsel %vm240, %v227, 0
      %v311 = vsel %vm240, %v228, 0
      %v314 = vsel %vm240, %v229, 0
      %v317 = vsel %vm240, %v230, 0
      %v320 = vsel %vm240, %v231, 0
      %v323 = vsel %vm240, %v232, 0
      %v326 = vsel %vm240, %v233, 0
      %v329 = vsel %vm240, %v234, 0
      %v332 = vsel %vm240, %v235, 0
      %v335 = vsel %vm240, %v236, 0
      %337 = vmatprep.subr.mxu0 0.0
      %338 = vmatpush1.msra.mxu0 %v238
      %339 = vmatprep.subr.mxu0 0.0
      %340 = vmatpush1.msra.mxu0 %v239
      %341 = vmatprep.subr.mxu0 0.0
      %342 = vmatpush1.msra.mxu0 0.0
      %343 = vmatprep.subr.mxu0 0.0
      %344 = vmatpush1.msra.mxu0 0.0
      %345 = vmatprep.subr.mxu0 0.0
      %346 = vmatpush1.msra.mxu0 0.0
      %347 = vmatprep.subr.mxu0 0.0
      %348 = vmatpush1.msra.mxu0 0.0
      %349 = vmatprep.subr.mxu0 0.0
      %350 = vmatpush1.msra.mxu0 0.0
      %351 = vmatprep.subr.mxu0 0.0
      %352 = vmatpush1.msra.mxu0 0.0
      %353 = vmatprep.subr.mxu0 0.0
      %354 = vmatpush1.msra.mxu0 0.0
      %355 = vmatprep.subr.mxu0 0.0
      %356 = vmatpush1.msra.mxu0 0.0
      %357 = vmatprep.subr.mxu0 0.0
      %358 = vmatpush1.msra.mxu0 0.0
      %359 = vmatprep.subr.mxu0 0.0
      %360 = vmatpush1.msra.mxu0 0.0
      %361 = vmatprep.subr.mxu0 0.0
      %362 = vmatpush1.msra.mxu0 0.0
      %363 = vmatprep.subr.mxu0 0.0
      %364 = vmatpush1.msra.mxu0 0.0
      %365 = vmatprep.subr.mxu0 0.0
      %366 = vmatpush1.msra.mxu0 0.0
      %367 = vmatprep.subr.mxu0 0.0
      %368 = vmatpush1.msra.mxu0 0.0
      %369 = vmatprep.subr.mxu0 0.0
      %370 = vmatpush1.msra.mxu0 0.0
      %371 = vmatprep.subr.mxu0 0.0
      %372 = vmatpush1.msra.mxu0 0.0
      %373 = vmatprep.subr.mxu0 0.0
      %374 = vmatpush1.msra.mxu0 0.0
      %375 = vmatprep.subr.mxu0 0.0
      %376 = vmatpush1.msra.mxu0 0.0
      %377 = vmatprep.subr.mxu0 0.0
      %378 = vmatpush1.msra.mxu0 0.0
      %379 = vmatprep.subr.mxu0 0.0
      %380 = vmatpush1.msra.mxu0 0.0
      %381 = vmatprep.subr.mxu0 0.0
      %382 = vmatpush1.msra.mxu0 0.0
      %383 = vmatprep.subr.mxu0 0.0
      %384 = vmatpush1.msra.mxu0 0.0
      %385 = vmatprep.subr.mxu0 0.0
      %386 = vmatpush1.msra.mxu0 0.0
      %387 = vmatprep.subr.mxu0 0.0
      %388 = vmatpush1.msra.mxu0 0.0
      %389 = vmatprep.subr.mxu0 0.0
      %390 = vmatpush1.msra.mxu0 0.0
      %391 = vmatprep.subr.mxu0 0.0
      %392 = vmatpush1.msra.mxu0 0.0
      %393 = vmatprep.subr.mxu0 0.0
      %394 = vmatpush1.msra.mxu0 0.0
      %395 = vmatprep.subr.mxu0 0.0
      %396 = vmatpush1.msra.mxu0 0.0
      %397 = vmatprep.subr.mxu0 0.0
      %398 = vmatpush1.msra.mxu0 0.0
      %399 = vmatprep.subr.mxu0 0.0
      %400 = vmatpush1.msra.mxu0 0.0
      %401 = vmatprep.mubr.f32.mxu0 0.0
      %402 = vmatmul.mubr.f32.gmra.mrb[0].mxu0 %v242
      %v403 = vpop.f32.mrb[0].mxu0
      %v404 = vadd.f32 0.0, %v403
      %v405 = vpop.f32.mrb[0].mxu0
      %406 = vmatprep.mubr.f32.mxu0 0.0
      %407 = vmatmul.mubr.f32.gmra.mrb[0].mxu0 %v245
      %v408 = vpop.f32.mrb[0].mxu0
      %v409 = vadd.f32 0.0, %v408
      %v410 = vpop.f32.mrb[0].mxu0
      %411 = vmatprep.mubr.f32.mxu0 0.0
      %412 = vmatmul.mubr.f32.gmra.mrb[0].mxu0 %v248
      %v413 = vpop.f32.mrb[0].mxu0
      %v414 = vadd.f32 0.0, %v413
      %v415 = vpop.f32.mrb[0].mxu0
      %416 = vmatprep.mubr.f32.mxu0 0.0
      %417 = vmatmul.mubr.f32.gmra.mrb[0].mxu0 %v251
      %v418 = vpop.f32.mrb[0].mxu0
      %v419 = vadd.f32 0.0, %v418
      %v420 = vpop.f32.mrb[0].mxu0
      %421 = vmatprep.mubr.f32.mxu0 0.0
      %422 = vmatmul.mubr.f32.gmra.mrb[0].mxu0 %v254
      %v423 = vpop.f32.mrb[0].mxu0
      %v424 = vadd.f32 0.0, %v423
      %v425 = vpop.f32.mrb[0].mxu0
      %426 = vmatprep.mubr.f32.mxu0 0.0
      %427 = vmatmul.mubr.f32.gmra.mrb[0].mxu0 %v257
      %v428 = vpop.f32.mrb[0].mxu0
      %v429 = vadd.f32 0.0, %v428
      %v430 = vpop.f32.mrb[0].mxu0
      %431 = vmatprep.mubr.f32.mxu0 0.0
      %432 = vmatmul.mubr.f32.gmra.mrb[0].mxu0 %v260
      %v433 = vpop.f32.mrb[0].mxu0
      %v434 = vadd.f32 0.0, %v433
      %v435 = vpop.f32.mrb[0].mxu0
      %436 = vmatprep.mubr.f32.mxu0 0.0
      %437 = vmatmul.mubr.f32.gmra.mrb[0].mxu0 %v263
      %v438 = vpop.f32.mrb[0].mxu0
      %v439 = vadd.f32 0.0, %v438
      %v440 = vpop.f32.mrb[0].mxu0
      %441 = vmatprep.mubr.f32.mxu0 0.0
      %442 = vmatmul.mubr.f32.gmra.mrb[0].mxu0 %v266
      %v443 = vpop.f32.mrb[0].mxu0
      %v444 = vadd.f32 0.0, %v443
      %v445 = vpop.f32.mrb[0].mxu0
      %446 = vmatprep.mubr.f32.mxu0 0.0
      %447 = vmatmul.mubr.f32.gmra.mrb[0].mxu0 %v269
      %v448 = vpop.f32.mrb[0].mxu0
      %v449 = vadd.f32 0.0, %v448
      %v450 = vpop.f32.mrb[0].mxu0
      %451 = vmatprep.mubr.f32.mxu0 0.0
      %452 = vmatmul.mubr.f32.gmra.mrb[0].mxu0 %v272
      %v453 = vpop.f32.mrb[0].mxu0
      %v454 = vadd.f32 0.0, %v453
      %v455 = vpop.f32.mrb[0].mxu0
      %456 = vmatprep.mubr.f32.mxu0 0.0
      %457 = vmatmul.mubr.f32.gmra.mrb[0].mxu0 %v275
      %v458 = vpop.f32.mrb[0].mxu0
      %v459 = vadd.f32 0.0, %v458
      %v460 = vpop.f32.mrb[0].mxu0
      %461 = vmatprep.mubr.f32.mxu0 0.0
      %462 = vmatmul.mubr.f32.gmra.mrb[0].mxu0 %v278
      %v463 = vpop.f32.mrb[0].mxu0
      %v464 = vadd.f32 0.0, %v463
      %v465 = vpop.f32.mrb[0].mxu0
      %466 = vmatprep.mubr.f32.mxu0 0.0
      %467 = vmatmul.mubr.f32.gmra.mrb[0].mxu0 %v281
      %v468 = vpop.f32.mrb[0].mxu0
      %v469 = vadd.f32 0.0, %v468
      %v470 = vpop.f32.mrb[0].mxu0
      %471 = vmatprep.mubr.f32.mxu0 0.0
      %472 = vmatmul.mubr.f32.gmra.mrb[0].mxu0 %v284
      %v473 = vpop.f32.mrb[0].mxu0
      %v474 = vadd.f32 0.0, %v473
      %v475 = vpop.f32.mrb[0].mxu0
      %476 = vmatprep.mubr.f32.mxu0 0.0
      %477 = vmatmul.mubr.f32.gmra.mrb[0].mxu0 %v287
      %v478 = vpop.f32.mrb[0].mxu0
      %v479 = vadd.f32 0.0, %v478
      %v480 = vpop.f32.mrb[0].mxu0
      %481 = vmatprep.mubr.f32.mxu0 0.0
      %482 = vmatmul.mubr.f32.gmra.mrb[0].mxu0 %v290
      %v483 = vpop.f32.mrb[0].mxu0
      %v484 = vadd.f32 0.0, %v483
      %v485 = vpop.f32.mrb[0].mxu0
      %486 = vmatprep.mubr.f32.mxu0 0.0
      %487 = vmatmul.mubr.f32.gmra.mrb[0].mxu0 %v293
      %v488 = vpop.f32.mrb[0].mxu0
      %v489 = vadd.f32 0.0, %v488
      %v490 = vpop.f32.mrb[0].mxu0
      %491 = vmatprep.mubr.f32.mxu0 0.0
      %492 = vmatmul.mubr.f32.gmra.mrb[0].mxu0 %v296
      %v493 = vpop.f32.mrb[0].mxu0
      %v494 = vadd.f32 0.0, %v493
      %v495 = vpop.f32.mrb[0].mxu0
      %496 = vmatprep.mubr.f32.mxu0 0.0
      %497 = vmatmul.mubr.f32.gmra.mrb[0].mxu0 %v299
      %v498 = vpop.f32.mrb[0].mxu0
      %v499 = vadd.f32 0.0, %v498
      %v500 = vpop.f32.mrb[0].mxu0
      %501 = vmatprep.mubr.f32.mxu0 0.0
      %502 = vmatmul.mubr.f32.gmra.mrb[0].mxu0 %v302
      %v503 = vpop.f32.mrb[0].mxu0
      %v504 = vadd.f32 0.0, %v503
      %v505 = vpop.f32.mrb[0].mxu0
      %506 = vmatprep.mubr.f32.mxu0 0.0
      %507 = vmatmul.mubr.f32.gmra.mrb[0].mxu0 %v305
      %v508 = vpop.f32.mrb[0].mxu0
      %v509 = vadd.f32 0.0, %v508
      %v510 = vpop.f32.mrb[0].mxu0
      %511 = vmatprep.mubr.f32.mxu0 0.0
      %512 = vmatmul.mubr.f32.gmra.mrb[0].mxu0 %v308
      %v513 = vpop.f32.mrb[0].mxu0
      %v514 = vadd.f32 0.0, %v513
      %v515 = vpop.f32.mrb[0].mxu0
      %516 = vmatprep.mubr.f32.mxu0 0.0
      %517 = vmatmul.mubr.f32.gmra.mrb[0].mxu0 %v311
      %v518 = vpop.f32.mrb[0].mxu0
      %v519 = vadd.f32 0.0, %v518
      %v520 = vpop.f32.mrb[0].mxu0
      %521 = vmatprep.mubr.f32.mxu0 0.0
      %522 = vmatmul.mubr.f32.gmra.mrb[0].mxu0 %v314
      %v523 = vpop.f32.mrb[0].mxu0
      %v524 = vadd.f32 0.0, %v523
      %v525 = vpop.f32.mrb[0].mxu0
      %526 = vmatprep.mubr.f32.mxu0 0.0
      %527 = vmatmul.mubr.f32.gmra.mrb[0].mxu0 %v317
      %v528 = vpop.f32.mrb[0].mxu0
      %v529 = vadd.f32 0.0, %v528
      %v530 = vpop.f32.mrb[0].mxu0
      %531 = vmatprep.mubr.f32.mxu0 0.0
      %532 = vmatmul.mubr.f32.gmra.mrb[0].mxu0 %v320
      %v533 = vpop.f32.mrb[0].mxu0
      %v534 = vadd.f32 0.0, %v533
      %v535 = vpop.f32.mrb[0].mxu0
      %536 = vmatprep.mubr.f32.mxu0 0.0
      %537 = vmatmul.mubr.f32.gmra.mrb[0].mxu0 %v323
      %v538 = vpop.f32.mrb[0].mxu0
      %v539 = vadd.f32 0.0, %v538
      %v540 = vpop.f32.mrb[0].mxu0
      %541 = vmatprep.mubr.f32.mxu0 0.0
      %542 = vmatmul.mubr.f32.gmra.mrb[0].mxu0 %v326
      %v543 = vpop.f32.mrb[0].mxu0
      %v544 = vadd.f32 0.0, %v543
      %v545 = vpop.f32.mrb[0].mxu0
      %546 = vmatprep.mubr.f32.mxu0 0.0
      %547 = vmatmul.mubr.f32.gmra.mrb[0].mxu0 %v329
      %v548 = vpop.f32.mrb[0].mxu0
      %v549 = vadd.f32 0.0, %v548
      %v550 = vpop.f32.mrb[0].mxu0
      %551 = vmatprep.mubr.f32.mxu0 0.0
      %552 = vmatmul.mubr.f32.gmra.mrb[0].mxu0 %v332
      %v553 = vpop.f32.mrb[0].mxu0
      %v554 = vadd.f32 0.0, %v553
      %v555 = vpop.f32.mrb[0].mxu0
      %556 = vmatprep.mubr.f32.mxu0 0.0
      %557 = vmatmul.mubr.f32.gmra.mrb[0].mxu0 %v335
      %v558 = vpop.f32.mrb[0].mxu0
      %v559 = vadd.f32 0.0, %v558
      %v560 = vpop.f32.mrb[0].mxu0
      %561 = vdwg.mxu0
      %v563 = vsel %vm240, %v171, 0
      %v566 = vsel %vm240, %v172, 0
      %v569 = vsel %vm240, %v173, 0
      %v572 = vsel %vm240, %v174, 0
      %v575 = vsel %vm240, %v175, 0
      %v578 = vsel %vm240, %v176, 0
      %v581 = vsel %vm240, %v177, 0
      %v584 = vsel %vm240, %v178, 0
      %v587 = vsel %vm240, %v179, 0
      %v590 = vsel %vm240, %v180, 0
      %v593 = vsel %vm240, %v181, 0
      %v596 = vsel %vm240, %v182, 0
      %v599 = vsel %vm240, %v183, 0
      %v602 = vsel %vm240, %v184, 0
      %v605 = vsel %vm240, %v185, 0
      %v608 = vsel %vm240, %v186, 0
      %v611 = vsel %vm240, %v187, 0
      %v614 = vsel %vm240, %v188, 0
      %v617 = vsel %vm240, %v189, 0
      %v620 = vsel %vm240, %v190, 0
      %v623 = vsel %vm240, %v191, 0
      %v626 = vsel %vm240, %v192, 0
      %v629 = vsel %vm240, %v193, 0
      %v632 = vsel %vm240, %v194, 0
      %v635 = vsel %vm240, %v195, 0
      %v638 = vsel %vm240, %v196, 0
      %v641 = vsel %vm240, %v197, 0
      %v644 = vsel %vm240, %v198, 0
      %v647 = vsel %vm240, %v199, 0
      %v650 = vsel %vm240, %v200, 0
      %v653 = vsel %vm240, %v201, 0
      %v656 = vsel %vm240, %v202, 0
      %658 = vmatprep.subr.mxu0 0.0
      %659 = vmatpush1.msra.mxu0 %v203
      %660 = vmatprep.subr.mxu0 0.0
      %661 = vmatpush1.msra.mxu0 %v204
      %662 = vmatprep.subr.mxu0 0.0
      %663 = vmatpush1.msra.mxu0 0.0
      %664 = vmatprep.subr.mxu0 0.0
      %665 = vmatpush1.msra.mxu0 0.0
      %666 = vmatprep.subr.mxu0 0.0
      %667 = vmatpush1.msra.mxu0 0.0
      %668 = vmatprep.subr.mxu0 0.0
      %669 = vmatpush1.msra.mxu0 0.0
      %670 = vmatprep.subr.mxu0 0.0
      %671 = vmatpush1.msra.mxu0 0.0
      %672 = vmatprep.subr.mxu0 0.0
      %673 = vmatpush1.msra.mxu0 0.0
      %674 = vmatprep.subr.mxu0 0.0
      %675 = vmatpush1.msra.mxu0 0.0
      %676 = vmatprep.subr.mxu0 0.0
      %677 = vmatpush1.msra.mxu0 0.0
      %678 = vmatprep.subr.mxu0 0.0
      %679 = vmatpush1.msra.mxu0 0.0
      %680 = vmatprep.subr.mxu0 0.0
      %681 = vmatpush1.msra.mxu0 0.0
      %682 = vmatprep.subr.mxu0 0.0
      %683 = vmatpush1.msra.mxu0 0.0
      %684 = vmatprep.subr.mxu0 0.0
      %685 = vmatpush1.msra.mxu0 0.0
      %686 = vmatprep.subr.mxu0 0.0
      %687 = vmatpush1.msra.mxu0 0.0
      %688 = vmatprep.subr.mxu0 0.0
      %689 = vmatpush1.msra.mxu0 0.0
      %690 = vmatprep.subr.mxu0 0.0
      %691 = vmatpush1.msra.mxu0 0.0
      %692 = vmatprep.subr.mxu0 0.0
      %693 = vmatpush1.msra.mxu0 0.0
      %694 = vmatprep.subr.mxu0 0.0
      %695 = vmatpush1.msra.mxu0 0.0
      %696 = vmatprep.subr.mxu0 0.0
      %697 = vmatpush1.msra.mxu0 0.0
      %698 = vmatprep.subr.mxu0 0.0
      %699 = vmatpush1.msra.mxu0 0.0
      %700 = vmatprep.subr.mxu0 0.0
      %701 = vmatpush1.msra.mxu0 0.0
      %702 = vmatprep.subr.mxu0 0.0
      %703 = vmatpush1.msra.mxu0 0.0
      %704 = vmatprep.subr.mxu0 0.0
      %705 = vmatpush1.msra.mxu0 0.0
      %706 = vmatprep.subr.mxu0 0.0
      %707 = vmatpush1.msra.mxu0 0.0
      %708 = vmatprep.subr.mxu0 0.0
      %709 = vmatpush1.msra.mxu0 0.0
      %710 = vmatprep.subr.mxu0 0.0
      %711 = vmatpush1.msra.mxu0 0.0
      %712 = vmatprep.subr.mxu0 0.0
      %713 = vmatpush1.msra.mxu0 0.0
      %714 = vmatprep.subr.mxu0 0.0
      %715 = vmatpush1.msra.mxu0 0.0
      %716 = vmatprep.subr.mxu0 0.0
      %717 = vmatpush1.msra.mxu0 0.0
      %718 = vmatprep.subr.mxu0 0.0
      %719 = vmatpush1.msra.mxu0 0.0
      %720 = vmatprep.subr.mxu0 0.0
      %721 = vmatpush1.msra.mxu0 0.0
      %722 = vmatprep.mubr.f32.mxu0 0.0
      %723 = vmatmul.mubr.f32.gmra.mrb[0].mxu0 %v563
      %v724 = vpop.f32.mrb[0].mxu0
      %v725 = vadd.f32 %v404, %v724
      %v726 = vpop.f32.mrb[0].mxu0
      %727 = vmatprep.mubr.f32.mxu0 0.0
      %728 = vmatmul.mubr.f32.gmra.mrb[0].mxu0 %v566
      %v729 = vpop.f32.mrb[0].mxu0
      %v730 = vadd.f32 %v409, %v729
      %v731 = vpop.f32.mrb[0].mxu0
      %732 = vmatprep.mubr.f32.mxu0 0.0
      %733 = vmatmul.mubr.f32.gmra.mrb[0].mxu0 %v569
      %v734 = vpop.f32.mrb[0].mxu0
      %v735 = vadd.f32 %v414, %v734
      %v736 = vpop.f32.mrb[0].mxu0
      %737 = vmatprep.mubr.f32.mxu0 0.0
      %738 = vmatmul.mubr.f32.gmra.mrb[0].mxu0 %v572
      %v739 = vpop.f32.mrb[0].mxu0
      %v740 = vadd.f32 %v419, %v739
      %v741 = vpop.f32.mrb[0].mxu0
      %742 = vmatprep.mubr.f32.mxu0 0.0
      %743 = vmatmul.mubr.f32.gmra.mrb[0].mxu0 %v575
      %v744 = vpop.f32.mrb[0].mxu0
      %v745 = vadd.f32 %v424, %v744
      %v746 = vpop.f32.mrb[0].mxu0
      %747 = vmatprep.mubr.f32.mxu0 0.0
      %748 = vmatmul.mubr.f32.gmra.mrb[0].mxu0 %v578
      %v749 = vpop.f32.mrb[0].mxu0
      %v750 = vadd.f32 %v429, %v749
      %v751 = vpop.f32.mrb[0].mxu0
      %752 = vmatprep.mubr.f32.mxu0 0.0
      %753 = vmatmul.mubr.f32.gmra.mrb[0].mxu0 %v581
      %v754 = vpop.f32.mrb[0].mxu0
      %v755 = vadd.f32 %v434, %v754
      %v756 = vpop.f32.mrb[0].mxu0
      %757 = vmatprep.mubr.f32.mxu0 0.0
      %758 = vmatmul.mubr.f32.gmra.mrb[0].mxu0 %v584
      %v759 = vpop.f32.mrb[0].mxu0
      %v760 = vadd.f32 %v439, %v759
      %v761 = vpop.f32.mrb[0].mxu0
      %762 = vmatprep.mubr.f32.mxu0 0.0
      %763 = vmatmul.mubr.f32.gmra.mrb[0].mxu0 %v587
      %v764 = vpop.f32.mrb[0].mxu0
      %v765 = vadd.f32 %v444, %v764
      %v766 = vpop.f32.mrb[0].mxu0
      %767 = vmatprep.mubr.f32.mxu0 0.0
      %768 = vmatmul.mubr.f32.gmra.mrb[0].mxu0 %v590
      %v769 = vpop.f32.mrb[0].mxu0
      %v770 = vadd.f32 %v449, %v769
      %v771 = vpop.f32.mrb[0].mxu0
      %772 = vmatprep.mubr.f32.mxu0 0.0
      %773 = vmatmul.mubr.f32.gmra.mrb[0].mxu0 %v593
      %v774 = vpop.f32.mrb[0].mxu0
      %v775 = vadd.f32 %v454, %v774
      %v776 = vpop.f32.mrb[0].mxu0
      %777 = vmatprep.mubr.f32.mxu0 0.0
      %778 = vmatmul.mubr.f32.gmra.mrb[0].mxu0 %v596
      %v779 = vpop.f32.mrb[0].mxu0
      %v780 = vadd.f32 %v459, %v779
      %v781 = vpop.f32.mrb[0].mxu0
      %782 = vmatprep.mubr.f32.mxu0 0.0
      %783 = vmatmul.mubr.f32.gmra.mrb[0].mxu0 %v599
      %v784 = vpop.f32.mrb[0].mxu0
      %v785 = vadd.f32 %v464, %v784
      %v786 = vpop.f32.mrb[0].mxu0
      %787 = vmatprep.mubr.f32.mxu0 0.0
      %788 = vmatmul.mubr.f32.gmra.mrb[0].mxu0 %v602
      %v789 = vpop.f32.mrb[0].mxu0
      %v790 = vadd.f32 %v469, %v789
      %v791 = vpop.f32.mrb[0].mxu0
      %792 = vmatprep.mubr.f32.mxu0 0.0
      %793 = vmatmul.mubr.f32.gmra.mrb[0].mxu0 %v605
      %v794 = vpop.f32.mrb[0].mxu0
      %v795 = vadd.f32 %v474, %v794
      %v796 = vpop.f32.mrb[0].mxu0
      %797 = vmatprep.mubr.f32.mxu0 0.0
      %798 = vmatmul.mubr.f32.gmra.mrb[0].mxu0 %v608
      %v799 = vpop.f32.mrb[0].mxu0
      %v800 = vadd.f32 %v479, %v799
      %v801 = vpop.f32.mrb[0].mxu0
      %802 = vmatprep.mubr.f32.mxu0 0.0
      %803 = vmatmul.mubr.f32.gmra.mrb[0].mxu0 %v611
      %v804 = vpop.f32.mrb[0].mxu0
      %v805 = vadd.f32 %v484, %v804
      %v806 = vpop.f32.mrb[0].mxu0
      %807 = vmatprep.mubr.f32.mxu0 0.0
      %808 = vmatmul.mubr.f32.gmra.mrb[0].mxu0 %v614
      %v809 = vpop.f32.mrb[0].mxu0
      %v810 = vadd.f32 %v489, %v809
      %v811 = vpop.f32.mrb[0].mxu0
      %812 = vmatprep.mubr.f32.mxu0 0.0
      %813 = vmatmul.mubr.f32.gmra.mrb[0].mxu0 %v617
      %v814 = vpop.f32.mrb[0].mxu0
      %v815 = vadd.f32 %v494, %v814
      %v816 = vpop.f32.mrb[0].mxu0
      %817 = vmatprep.mubr.f32.mxu0 0.0
      %818 = vmatmul.mubr.f32.gmra.mrb[0].mxu0 %v620
      %v819 = vpop.f32.mrb[0].mxu0
      %v820 = vadd.f32 %v499, %v819
      %v821 = vpop.f32.mrb[0].mxu0
      %822 = vmatprep.mubr.f32.mxu0 0.0
      %823 = vmatmul.mubr.f32.gmra.mrb[0].mxu0 %v623
      %v824 = vpop.f32.mrb[0].mxu0
      %v825 = vadd.f32 %v504, %v824
      %v826 = vpop.f32.mrb[0].mxu0
      %827 = vmatprep.mubr.f32.mxu0 0.0
      %828 = vmatmul.mubr.f32.gmra.mrb[0].mxu0 %v626
      %v829 = vpop.f32.mrb[0].mxu0
      %v830 = vadd.f32 %v509, %v829
      %v831 = vpop.f32.mrb[0].mxu0
      %832 = vmatprep.mubr.f32.mxu0 0.0
      %833 = vmatmul.mubr.f32.gmra.mrb[0].mxu0 %v629
      %v834 = vpop.f32.mrb[0].mxu0
      %v835 = vadd.f32 %v514, %v834
      %v836 = vpop.f32.mrb[0].mxu0
      %837 = vmatprep.mubr.f32.mxu0 0.0
      %838 = vmatmul.mubr.f32.gmra.mrb[0].mxu0 %v632
      %v839 = vpop.f32.mrb[0].mxu0
      %v840 = vadd.f32 %v519, %v839
      %v841 = vpop.f32.mrb[0].mxu0
      %842 = vmatprep.mubr.f32.mxu0 0.0
      %843 = vmatmul.mubr.f32.gmra.mrb[0].mxu0 %v635
      %v844 = vpop.f32.mrb[0].mxu0
      %v845 = vadd.f32 %v524, %v844
      %v846 = vpop.f32.mrb[0].mxu0
      %847 = vmatprep.mubr.f32.mxu0 0.0
      %848 = vmatmul.mubr.f32.gmra.mrb[0].mxu0 %v638
      %v849 = vpop.f32.mrb[0].mxu0
      %v850 = vadd.f32 %v529, %v849
      %v851 = vpop.f32.mrb[0].mxu0
      %852 = vmatprep.mubr.f32.mxu0 0.0
      %853 = vmatmul.mubr.f32.gmra.mrb[0].mxu0 %v641
      %v854 = vpop.f32.mrb[0].mxu0
      %v855 = vadd.f32 %v534, %v854
      %v856 = vpop.f32.mrb[0].mxu0
      %857 = vmatprep.mubr.f32.mxu0 0.0
      %858 = vmatmul.mubr.f32.gmra.mrb[0].mxu0 %v644
      %v859 = vpop.f32.mrb[0].mxu0
      %v860 = vadd.f32 %v539, %v859
      %v861 = vpop.f32.mrb[0].mxu0
      %862 = vmatprep.mubr.f32.mxu0 0.0
      %863 = vmatmul.mubr.f32.gmra.mrb[0].mxu0 %v647
      %v864 = vpop.f32.mrb[0].mxu0
      %v865 = vadd.f32 %v544, %v864
      %v866 = vpop.f32.mrb[0].mxu0
      %867 = vmatprep.mubr.f32.mxu0 0.0
      %868 = vmatmul.mubr.f32.gmra.mrb[0].mxu0 %v650
      %v869 = vpop.f32.mrb[0].mxu0
      %v870 = vadd.f32 %v549, %v869
      %v871 = vpop.f32.mrb[0].mxu0
      %872 = vmatprep.mubr.f32.mxu0 0.0
      %873 = vmatmul.mubr.f32.gmra.mrb[0].mxu0 %v653
      %v874 = vpop.f32.mrb[0].mxu0
      %v875 = vadd.f32 %v554, %v874
      %v876 = vpop.f32.mrb[0].mxu0
      %877 = vmatprep.mubr.f32.mxu0 0.0
      %878 = vmatmul.mubr.f32.gmra.mrb[0].mxu0 %v656
      %v879 = vpop.f32.mrb[0].mxu0
      %v880 = vadd.f32 %v559, %v879
      %v881 = vpop.f32.mrb[0].mxu0
      %882 = vdwg.mxu0
      %v883 = vld [vmem:[%s165 + $0x2] sm:$0xff]
      %v884 = vld [vmem:[%s165 + $0xa] sm:$0xff]
      %v885 = vld [vmem:[%s165 + $0x1a] sm:$0xff]
      %v886 = vld [vmem:[%s165 + $0x22] sm:$0xff]
      %v887 = vld [vmem:[%s165 + $0x32] sm:$0xff]
      %v888 = vld [vmem:[%s165 + $0x3a] sm:$0xff]
      %v889 = vld [vmem:[%s165 + $0x4a] sm:$0xff]
      %v890 = vld [vmem:[%s165 + $0x52] sm:$0xff]
      %v891 = vld [vmem:[%s165 + $0x62] sm:$0xff]
      %v892 = vld [vmem:[%s165 + $0x6a] sm:$0xff]
      %v893 = vld [vmem:[%s165 + $0x7a] sm:$0xff]
      %v894 = vld [vmem:[%s165 + $0x82] sm:$0xff]
      %v895 = vld [vmem:[%s165 + $0x92] sm:$0xff]
      %v896 = vld [vmem:[%s165 + $0x9a] sm:$0xff]
      %v897 = vld [vmem:[%s165 + $0xaa] sm:$0xff]
      %v898 = vld [vmem:[%s165 + $0xb2] sm:$0xff]
      %v899 = vld [vmem:[%s165 + $0xc2] sm:$0xff]
      %v900 = vld [vmem:[%s165 + $0xca] sm:$0xff]
      %v901 = vld [vmem:[%s165 + $0xda] sm:$0xff]
      %v902 = vld [vmem:[%s165 + $0xe2] sm:$0xff]
      %v903 = vld [vmem:[%s165 + $0xf2] sm:$0xff]
      %v904 = vld [vmem:[%s165 + $0xfa] sm:$0xff]
      %v905 = vld [vmem:[%s165 + $0x10a] sm:$0xff]
      %v906 = vld [vmem:[%s165 + $0x112] sm:$0xff]
      %v907 = vld [vmem:[%s165 + $0x122] sm:$0xff]
      %v908 = vld [vmem:[%s165 + $0x12a] sm:$0xff]
      %v909 = vld [vmem:[%s165 + $0x13a] sm:$0xff]
      %v910 = vld [vmem:[%s165 + $0x142] sm:$0xff]
      %v911 = vld [vmem:[%s165 + $0x152] sm:$0xff]
      %v912 = vld [vmem:[%s165 + $0x15a] sm:$0xff]
      %v913 = vld [vmem:[%s165 + $0x16a] sm:$0xff]
      %v914 = vld [vmem:[%s165 + $0x172] sm:$0xff]
      %s915 = scalar_lea.vmem %s1, 32
      %v916 = vld [vmem:[%s915] sm:$0xff]
      %v917 = vld [vmem:[%s915 + $0x8] sm:$0xff]
      %v919 = vsel %vm240, %v883, 0
      %v922 = vsel %vm240, %v884, 0
      %v925 = vsel %vm240, %v885, 0
      %v928 = vsel %vm240, %v886, 0
      %v931 = vsel %vm240, %v887, 0
      %v934 = vsel %vm240, %v888, 0
      %v937 = vsel %vm240, %v889, 0
      %v940 = vsel %vm240, %v890, 0
      %v943 = vsel %vm240, %v891, 0
      %v946 = vsel %vm240, %v892, 0
      %v949 = vsel %vm240, %v893, 0
      %v952 = vsel %vm240, %v894, 0
      %v955 = vsel %vm240, %v895, 0
      %v958 = vsel %vm240, %v896, 0
      %v961 = vsel %vm240, %v897, 0
      %v964 = vsel %vm240, %v898, 0
      %v967 = vsel %vm240, %v899, 0
      %v970 = vsel %vm240, %v900, 0
      %v973 = vsel %vm240, %v901, 0
      %v976 = vsel %vm240, %v902, 0
      %v979 = vsel %vm240, %v903, 0
      %v982 = vsel %vm240, %v904, 0
      %v985 = vsel %vm240, %v905, 0
      %v988 = vsel %vm240, %v906, 0
      %v991 = vsel %vm240, %v907, 0
      %v994 = vsel %vm240, %v908, 0
      %v997 = vsel %vm240, %v909, 0
      %v1000 = vsel %vm240, %v910, 0
      %v1003 = vsel %vm240, %v911, 0
      %v1006 = vsel %vm240, %v912, 0
      %v1009 = vsel %vm240, %v913, 0
      %v1012 = vsel %vm240, %v914, 0
      %1014 = vmatprep.subr.mxu0 0.0
      %1015 = vmatpush1.msra.mxu0 %v916
      %1016 = vmatprep.subr.mxu0 0.0
      %1017 = vmatpush1.msra.mxu0 %v917
      %1018 = vmatprep.subr.mxu0 0.0
      %1019 = vmatpush1.msra.mxu0 0.0
      %1020 = vmatprep.subr.mxu0 0.0
      %1021 = vmatpush1.msra.mxu0 0.0
      %1022 = vmatprep.subr.mxu0 0.0
      %1023 = vmatpush1.msra.mxu0 0.0
      %1024 = vmatprep.subr.mxu0 0.0
      %1025 = vmatpush1.msra.mxu0 0.0
      %1026 = vmatprep.subr.mxu0 0.0
      %1027 = vmatpush1.msra.mxu0 0.0
      %1028 = vmatprep.subr.mxu0 0.0
      %1029 = vmatpush1.msra.mxu0 0.0
      %1030 = vmatprep.subr.mxu0 0.0
      %1031 = vmatpush1.msra.mxu0 0.0
      %1032 = vmatprep.subr.mxu0 0.0
      %1033 = vmatpush1.msra.mxu0 0.0
      %1034 = vmatprep.subr.mxu0 0.0
      %1035 = vmatpush1.msra.mxu0 0.0
      %1036 = vmatprep.subr.mxu0 0.0
      %1037 = vmatpush1.msra.mxu0 0.0
      %1038 = vmatprep.subr.mxu0 0.0
      %1039 = vmatpush1.msra.mxu0 0.0
      %1040 = vmatprep.subr.mxu0 0.0
      %1041 = vmatpush1.msra.mxu0 0.0
      %1042 = vmatprep.subr.mxu0 0.0
      %1043 = vmatpush1.msra.mxu0 0.0
      %1044 = vmatprep.subr.mxu0 0.0
      %1045 = vmatpush1.msra.mxu0 0.0
      %1046 = vmatprep.subr.mxu0 0.0
      %1047 = vmatpush1.msra.mxu0 0.0
      %1048 = vmatprep.subr.mxu0 0.0
      %1049 = vmatpush1.msra.mxu0 0.0
      %1050 = vmatprep.subr.mxu0 0.0
      %1051 = vmatpush1.msra.mxu0 0.0
      %1052 = vmatprep.subr.mxu0 0.0
      %1053 = vmatpush1.msra.mxu0 0.0
      %1054 = vmatprep.subr.mxu0 0.0
      %1055 = vmatpush1.msra.mxu0 0.0
      %1056 = vmatprep.subr.mxu0 0.0
      %1057 = vmatpush1.msra.mxu0 0.0
      %1058 = vmatprep.subr.mxu0 0.0
      %1059 = vmatpush1.msra.mxu0 0.0
      %1060 = vmatprep.subr.mxu0 0.0
      %1061 = vmatpush1.msra.mxu0 0.0
      %1062 = vmatprep.subr.mxu0 0.0
      %1063 = vmatpush1.msra.mxu0 0.0
      %1064 = vmatprep.subr.mxu0 0.0
      %1065 = vmatpush1.msra.mxu0 0.0
      %1066 = vmatprep.subr.mxu0 0.0
      %1067 = vmatpush1.msra.mxu0 0.0
      %1068 = vmatprep.subr.mxu0 0.0
      %1069 = vmatpush1.msra.mxu0 0.0
      %1070 = vmatprep.subr.mxu0 0.0
      %1071 = vmatpush1.msra.mxu0 0.0
      %1072 = vmatprep.subr.mxu0 0.0
      %1073 = vmatpush1.msra.mxu0 0.0
      %1074 = vmatprep.subr.mxu0 0.0
      %1075 = vmatpush1.msra.mxu0 0.0
      %1076 = vmatprep.subr.mxu0 0.0
      %1077 = vmatpush1.msra.mxu0 0.0
      %1078 = vmatprep.mubr.f32.mxu0 0.0
      %1079 = vmatmul.mubr.f32.gmra.mrb[0].mxu0 %v919
      %v1080 = vpop.f32.mrb[0].mxu0
      %v1081 = vadd.f32 0.0, %v1080
      %v1082 = vpop.f32.mrb[0].mxu0
      %1083 = vmatprep.mubr.f32.mxu0 0.0
      %1084 = vmatmul.mubr.f32.gmra.mrb[0].mxu0 %v922
      %v1085 = vpop.f32.mrb[0].mxu0
      %v1086 = vadd.f32 0.0, %v1085
      %v1087 = vpop.f32.mrb[0].mxu0
      %1088 = vmatprep.mubr.f32.mxu0 0.0
      %1089 = vmatmul.mubr.f32.gmra.mrb[0].mxu0 %v925
      %v1090 = vpop.f32.mrb[0].mxu0
      %v1091 = vadd.f32 0.0, %v1090
      %v1092 = vpop.f32.mrb[0].mxu0
      %1093 = vmatprep.mubr.f32.mxu0 0.0
      %1094 = vmatmul.mubr.f32.gmra.mrb[0].mxu0 %v928
      %v1095 = vpop.f32.mrb[0].mxu0
      %v1096 = vadd.f32 0.0, %v1095
      %v1097 = vpop.f32.mrb[0].mxu0
      %1098 = vmatprep.mubr.f32.mxu0 0.0
      %1099 = vmatmul.mubr.f32.gmra.mrb[0].mxu0 %v931
      %v1100 = vpop.f32.mrb[0].mxu0
      %v1101 = vadd.f32 0.0, %v1100
      %v1102 = vpop.f32.mrb[0].mxu0
      %1103 = vmatprep.mubr.f32.mxu0 0.0
      %1104 = vmatmul.mubr.f32.gmra.mrb[0].mxu0 %v934
      %v1105 = vpop.f32.mrb[0].mxu0
      %v1106 = vadd.f32 0.0, %v1105
      %v1107 = vpop.f32.mrb[0].mxu0
      %1108 = vmatprep.mubr.f32.mxu0 0.0
      %1109 = vmatmul.mubr.f32.gmra.mrb[0].mxu0 %v937
      %v1110 = vpop.f32.mrb[0].mxu0
      %v1111 = vadd.f32 0.0, %v1110
      %v1112 = vpop.f32.mrb[0].mxu0
      %1113 = vmatprep.mubr.f32.mxu0 0.0
      %1114 = vmatmul.mubr.f32.gmra.mrb[0].mxu0 %v940
      %v1115 = vpop.f32.mrb[0].mxu0
      %v1116 = vadd.f32 0.0, %v1115
      %v1117 = vpop.f32.mrb[0].mxu0
      %1118 = vmatprep.mubr.f32.mxu0 0.0
      %1119 = vmatmul.mubr.f32.gmra.mrb[0].mxu0 %v943
      %v1120 = vpop.f32.mrb[0].mxu0
      %v1121 = vadd.f32 0.0, %v1120
      %v1122 = vpop.f32.mrb[0].mxu0
      %1123 = vmatprep.mubr.f32.mxu0 0.0
      %1124 = vmatmul.mubr.f32.gmra.mrb[0].mxu0 %v946
      %v1125 = vpop.f32.mrb[0].mxu0
      %v1126 = vadd.f32 0.0, %v1125
      %v1127 = vpop.f32.mrb[0].mxu0
      %1128 = vmatprep.mubr.f32.mxu0 0.0
      %1129 = vmatmul.mubr.f32.gmra.mrb[0].mxu0 %v949
      %v1130 = vpop.f32.mrb[0].mxu0
      %v1131 = vadd.f32 0.0, %v1130
      %v1132 = vpop.f32.mrb[0].mxu0
      %1133 = vmatprep.mubr.f32.mxu0 0.0
      %1134 = vmatmul.mubr.f32.gmra.mrb[0].mxu0 %v952
      %v1135 = vpop.f32.mrb[0].mxu0
      %v1136 = vadd.f32 0.0, %v1135
      %v1137 = vpop.f32.mrb[0].mxu0
      %1138 = vmatprep.mubr.f32.mxu0 0.0
      %1139 = vmatmul.mubr.f32.gmra.mrb[0].mxu0 %v955
      %v1140 = vpop.f32.mrb[0].mxu0
      %v1141 = vadd.f32 0.0, %v1140
      %v1142 = vpop.f32.mrb[0].mxu0
      %1143 = vmatprep.mubr.f32.mxu0 0.0
      %1144 = vmatmul.mubr.f32.gmra.mrb[0].mxu0 %v958
      %v1145 = vpop.f32.mrb[0].mxu0
      %v1146 = vadd.f32 0.0, %v1145
      %v1147 = vpop.f32.mrb[0].mxu0
      %1148 = vmatprep.mubr.f32.mxu0 0.0
      %1149 = vmatmul.mubr.f32.gmra.mrb[0].mxu0 %v961
      %v1150 = vpop.f32.mrb[0].mxu0
      %v1151 = vadd.f32 0.0, %v1150
      %v1152 = vpop.f32.mrb[0].mxu0
      %1153 = vmatprep.mubr.f32.mxu0 0.0
      %1154 = vmatmul.mubr.f32.gmra.mrb[0].mxu0 %v964
      %v1155 = vpop.f32.mrb[0].mxu0
      %v1156 = vadd.f32 0.0, %v1155
      %v1157 = vpop.f32.mrb[0].mxu0
      %1158 = vmatprep.mubr.f32.mxu0 0.0
      %1159 = vmatmul.mubr.f32.gmra.mrb[0].mxu0 %v967
      %v1160 = vpop.f32.mrb[0].mxu0
      %v1161 = vadd.f32 0.0, %v1160
      %v1162 = vpop.f32.mrb[0].mxu0
      %1163 = vmatprep.mubr.f32.mxu0 0.0
      %1164 = vmatmul.mubr.f32.gmra.mrb[0].mxu0 %v970
      %v1165 = vpop.f32.mrb[0].mxu0
      %v1166 = vadd.f32 0.0, %v1165
      %v1167 = vpop.f32.mrb[0].mxu0
      %1168 = vmatprep.mubr.f32.mxu0 0.0
      %1169 = vmatmul.mubr.f32.gmra.mrb[0].mxu0 %v973
      %v1170 = vpop.f32.mrb[0].mxu0
      %v1171 = vadd.f32 0.0, %v1170
      %v1172 = vpop.f32.mrb[0].mxu0
      %1173 = vmatprep.mubr.f32.mxu0 0.0
      %1174 = vmatmul.mubr.f32.gmra.mrb[0].mxu0 %v976
      %v1175 = vpop.f32.mrb[0].mxu0
      %v1176 = vadd.f32 0.0, %v1175
      %v1177 = vpop.f32.mrb[0].mxu0
      %1178 = vmatprep.mubr.f32.mxu0 0.0
      %1179 = vmatmul.mubr.f32.gmra.mrb[0].mxu0 %v979
      %v1180 = vpop.f32.mrb[0].mxu0
      %v1181 = vadd.f32 0.0, %v1180
      %v1182 = vpop.f32.mrb[0].mxu0
      %1183 = vmatprep.mubr.f32.mxu0 0.0
      %1184 = vmatmul.mubr.f32.gmra.mrb[0].mxu0 %v982
      %v1185 = vpop.f32.mrb[0].mxu0
      %v1186 = vadd.f32 0.0, %v1185
      %v1187 = vpop.f32.mrb[0].mxu0
      %1188 = vmatprep.mubr.f32.mxu0 0.0
      %1189 = vmatmul.mubr.f32.gmra.mrb[0].mxu0 %v985
      %v1190 = vpop.f32.mrb[0].mxu0
      %v1191 = vadd.f32 0.0, %v1190
      %v1192 = vpop.f32.mrb[0].mxu0
      %1193 = vmatprep.mubr.f32.mxu0 0.0
      %1194 = vmatmul.mubr.f32.gmra.mrb[0].mxu0 %v988
      %v1195 = vpop.f32.mrb[0].mxu0
      %v1196 = vadd.f32 0.0, %v1195
      %v1197 = vpop.f32.mrb[0].mxu0
      %1198 = vmatprep.mubr.f32.mxu0 0.0
      %1199 = vmatmul.mubr.f32.gmra.mrb[0].mxu0 %v991
      %v1200 = vpop.f32.mrb[0].mxu0
      %v1201 = vadd.f32 0.0, %v1200
      %v1202 = vpop.f32.mrb[0].mxu0
      %1203 = vmatprep.mubr.f32.mxu0 0.0
      %1204 = vmatmul.mubr.f32.gmra.mrb[0].mxu0 %v994
      %v1205 = vpop.f32.mrb[0].mxu0
      %v1206 = vadd.f32 0.0, %v1205
      %v1207 = vpop.f32.mrb[0].mxu0
      %1208 = vmatprep.mubr.f32.mxu0 0.0
      %1209 = vmatmul.mubr.f32.gmra.mrb[0].mxu0 %v997
      %v1210 = vpop.f32.mrb[0].mxu0
      %v1211 = vadd.f32 0.0, %v1210
      %v1212 = vpop.f32.mrb[0].mxu0
      %1213 = vmatprep.mubr.f32.mxu0 0.0
      %1214 = vmatmul.mubr.f32.gmra.mrb[0].mxu0 %v1000
      %v1215 = vpop.f32.mrb[0].mxu0
      %v1216 = vadd.f32 0.0, %v1215
      %v1217 = vpop.f32.mrb[0].mxu0
      %1218 = vmatprep.mubr.f32.mxu0 0.0
      %1219 = vmatmul.mubr.f32.gmra.mrb[0].mxu0 %v1003
      %v1220 = vpop.f32.mrb[0].mxu0
      %v1221 = vadd.f32 0.0, %v1220
      %v1222 = vpop.f32.mrb[0].mxu0
      %1223 = vmatprep.mubr.f32.mxu0 0.0
      %1224 = vmatmul.mubr.f32.gmra.mrb[0].mxu0 %v1006
      %v1225 = vpop.f32.mrb[0].mxu0
      %v1226 = vadd.f32 0.0, %v1225
      %v1227 = vpop.f32.mrb[0].mxu0
      %1228 = vmatprep.mubr.f32.mxu0 0.0
      %1229 = vmatmul.mubr.f32.gmra.mrb[0].mxu0 %v1009
      %v1230 = vpop.f32.mrb[0].mxu0
      %v1231 = vadd.f32 0.0, %v1230
      %v1232 = vpop.f32.mrb[0].mxu0
      %1233 = vmatprep.mubr.f32.mxu0 0.0
      %1234 = vmatmul.mubr.f32.gmra.mrb[0].mxu0 %v1012
      %v1235 = vpop.f32.mrb[0].mxu0
      %v1236 = vadd.f32 0.0, %v1235
      %v1237 = vpop.f32.mrb[0].mxu0
      %1238 = vdwg.mxu0
      %v1239 = vadd.f32 %v725, %v1081
      %v1240 = vadd.f32 %v730, %v1086
      %v1241 = vadd.f32 %v735, %v1091
      %v1242 = vadd.f32 %v740, %v1096
      %v1243 = vadd.f32 %v745, %v1101
      %v1244 = vadd.f32 %v750, %v1106
      %v1245 = vadd.f32 %v755, %v1111
      %v1246 = vadd.f32 %v760, %v1116
      %v1247 = vadd.f32 %v765, %v1121
      %v1248 = vadd.f32 %v770, %v1126
      %v1249 = vadd.f32 %v775, %v1131
      %v1250 = vadd.f32 %v780, %v1136
      %v1251 = vadd.f32 %v785, %v1141
      %v1252 = vadd.f32 %v790, %v1146
      %v1253 = vadd.f32 %v795, %v1151
      %v1254 = vadd.f32 %v800, %v1156
      %v1255 = vadd.f32 %v805, %v1161
      %v1256 = vadd.f32 %v810, %v1166
      %v1257 = vadd.f32 %v815, %v1171
      %v1258 = vadd.f32 %v820, %v1176
      %v1259 = vadd.f32 %v825, %v1181
      %v1260 = vadd.f32 %v830, %v1186
      %v1261 = vadd.f32 %v835, %v1191
      %v1262 = vadd.f32 %v840, %v1196
      %v1263 = vadd.f32 %v845, %v1201
      %v1264 = vadd.f32 %v850, %v1206
      %v1265 = vadd.f32 %v855, %v1211
      %v1266 = vadd.f32 %v860, %v1216
      %v1267 = vadd.f32 %v865, %v1221
      %v1268 = vadd.f32 %v870, %v1226
      %v1269 = vadd.f32 %v875, %v1231
      %v1270 = vadd.f32 %v880, %v1236
      %s1271 = scalar_lea.vmem %s165, 24
      %v1272 = vld [vmem:[%s1271] sm:$0xff]
      %v1273 = vld [vmem:[%s1271 + $0x8] sm:$0xff]
      %v1274 = vld [vmem:[%s1271 + $0x18] sm:$0xff]
      %v1275 = vld [vmem:[%s1271 + $0x20] sm:$0xff]
      %v1276 = vld [vmem:[%s1271 + $0x30] sm:$0xff]
      %v1277 = vld [vmem:[%s1271 + $0x38] sm:$0xff]
      %v1278 = vld [vmem:[%s1271 + $0x48] sm:$0xff]
      %v1279 = vld [vmem:[%s1271 + $0x50] sm:$0xff]
      %v1280 = vld [vmem:[%s1271 + $0x60] sm:$0xff]
      %v1281 = vld [vmem:[%s1271 + $0x68] sm:$0xff]
      %v1282 = vld [vmem:[%s1271 + $0x78] sm:$0xff]
      %v1283 = vld [vmem:[%s1271 + $0x80] sm:$0xff]
      %v1284 = vld [vmem:[%s1271 + $0x90] sm:$0xff]
      %v1285 = vld [vmem:[%s1271 + $0x98] sm:$0xff]
      %v1286 = vld [vmem:[%s1271 + $0xa8] sm:$0xff]
      %v1287 = vld [vmem:[%s1271 + $0xb0] sm:$0xff]
      %v1288 = vld [vmem:[%s1271 + $0xc0] sm:$0xff]
      %v1289 = vld [vmem:[%s1271 + $0xc8] sm:$0xff]
      %v1290 = vld [vmem:[%s1271 + $0xd8] sm:$0xff]
      %v1291 = vld [vmem:[%s1271 + $0xe0] sm:$0xff]
      %v1292 = vld [vmem:[%s1271 + $0xf0] sm:$0xff]
      %v1293 = vld [vmem:[%s1271 + $0xf8] sm:$0xff]
      %v1294 = vld [vmem:[%s1271 + $0x108] sm:$0xff]
      %v1295 = vld [vmem:[%s1271 + $0x110] sm:$0xff]
      %v1296 = vld [vmem:[%s1271 + $0x120] sm:$0xff]
      %v1297 = vld [vmem:[%s1271 + $0x128] sm:$0xff]
      %v1298 = vld [vmem:[%s1271 + $0x138] sm:$0xff]
      %v1299 = vld [vmem:[%s1271 + $0x140] sm:$0xff]
      %v1300 = vld [vmem:[%s1271 + $0x150] sm:$0xff]
      %v1301 = vld [vmem:[%s1271 + $0x158] sm:$0xff]
      %v1302 = vld [vmem:[%s1271 + $0x168] sm:$0xff]
      %v1303 = vld [vmem:[%s1271 + $0x170] sm:$0xff]
      %s1304 = scalar_lea.vmem %s1, 48
      %v1305 = vld [vmem:[%s1304] sm:$0xff]
      %v1306 = vld [vmem:[%s1304 + $0x8] sm:$0xff]
      %v1308 = vsel %vm240, %v1272, 0
      %v1311 = vsel %vm240, %v1273, 0
      %v1314 = vsel %vm240, %v1274, 0
      %v1317 = vsel %vm240, %v1275, 0
      %v1320 = vsel %vm240, %v1276, 0
      %v1323 = vsel %vm240, %v1277, 0
      %v1326 = vsel %vm240, %v1278, 0
      %v1329 = vsel %vm240, %v1279, 0
      %v1332 = vsel %vm240, %v1280, 0
      %v1335 = vsel %vm240, %v1281, 0
      %v1338 = vsel %vm240, %v1282, 0
      %v1341 = vsel %vm240, %v1283, 0
      %v1344 = vsel %vm240, %v1284, 0
      %v1347 = vsel %vm240, %v1285, 0
      %v1350 = vsel %vm240, %v1286, 0
      %v1353 = vsel %vm240, %v1287, 0
      %v1356 = vsel %vm240, %v1288, 0
      %v1359 = vsel %vm240, %v1289, 0
      %v1362 = vsel %vm240, %v1290, 0
      %v1365 = vsel %vm240, %v1291, 0
      %v1368 = vsel %vm240, %v1292, 0
      %v1371 = vsel %vm240, %v1293, 0
      %v1374 = vsel %vm240, %v1294, 0
      %v1377 = vsel %vm240, %v1295, 0
      %v1380 = vsel %vm240, %v1296, 0
      %v1383 = vsel %vm240, %v1297, 0
      %v1386 = vsel %vm240, %v1298, 0
      %v1389 = vsel %vm240, %v1299, 0
      %v1392 = vsel %vm240, %v1300, 0
      %v1395 = vsel %vm240, %v1301, 0
      %v1398 = vsel %vm240, %v1302, 0
      %v1401 = vsel %vm240, %v1303, 0
      %1403 = vmatprep.subr.mxu0 0.0
      %1404 = vmatpush1.msra.mxu0 %v1305
      %1405 = vmatprep.subr.mxu0 0.0
      %1406 = vmatpush1.msra.mxu0 %v1306
      %1407 = vmatprep.subr.mxu0 0.0
      %1408 = vmatpush1.msra.mxu0 0.0
      %1409 = vmatprep.subr.mxu0 0.0
      %1410 = vmatpush1.msra.mxu0 0.0
      %1411 = vmatprep.subr.mxu0 0.0
      %1412 = vmatpush1.msra.mxu0 0.0
      %1413 = vmatprep.subr.mxu0 0.0
      %1414 = vmatpush1.msra.mxu0 0.0
      %1415 = vmatprep.subr.mxu0 0.0
      %1416 = vmatpush1.msra.mxu0 0.0
      %1417 = vmatprep.subr.mxu0 0.0
      %1418 = vmatpush1.msra.mxu0 0.0
      %1419 = vmatprep.subr.mxu0 0.0
      %1420 = vmatpush1.msra.mxu0 0.0
      %1421 = vmatprep.subr.mxu0 0.0
      %1422 = vmatpush1.msra.mxu0 0.0
      %1423 = vmatprep.subr.mxu0 0.0
      %1424 = vmatpush1.msra.mxu0 0.0
      %1425 = vmatprep.subr.mxu0 0.0
      %1426 = vmatpush1.msra.mxu0 0.0
      %1427 = vmatprep.subr.mxu0 0.0
      %1428 = vmatpush1.msra.mxu0 0.0
      %1429 = vmatprep.subr.mxu0 0.0
      %1430 = vmatpush1.msra.mxu0 0.0
      %1431 = vmatprep.subr.mxu0 0.0
      %1432 = vmatpush1.msra.mxu0 0.0
      %1433 = vmatprep.subr.mxu0 0.0
      %1434 = vmatpush1.msra.mxu0 0.0
      %1435 = vmatprep.subr.mxu0 0.0
      %1436 = vmatpush1.msra.mxu0 0.0
      %1437 = vmatprep.subr.mxu0 0.0
      %1438 = vmatpush1.msra.mxu0 0.0
      %1439 = vmatprep.subr.mxu0 0.0
      %1440 = vmatpush1.msra.mxu0 0.0
      %1441 = vmatprep.subr.mxu0 0.0
      %1442 = vmatpush1.msra.mxu0 0.0
      %1443 = vmatprep.subr.mxu0 0.0
      %1444 = vmatpush1.msra.mxu0 0.0
      %1445 = vmatprep.subr.mxu0 0.0
      %1446 = vmatpush1.msra.mxu0 0.0
      %1447 = vmatprep.subr.mxu0 0.0
      %1448 = vmatpush1.msra.mxu0 0.0
      %1449 = vmatprep.subr.mxu0 0.0
      %1450 = vmatpush1.msra.mxu0 0.0
      %1451 = vmatprep.subr.mxu0 0.0
      %1452 = vmatpush1.msra.mxu0 0.0
      %1453 = vmatprep.subr.mxu0 0.0
      %1454 = vmatpush1.msra.mxu0 0.0
      %1455 = vmatprep.subr.mxu0 0.0
      %1456 = vmatpush1.msra.mxu0 0.0
      %1457 = vmatprep.subr.mxu0 0.0
      %1458 = vmatpush1.msra.mxu0 0.0
      %1459 = vmatprep.subr.mxu0 0.0
      %1460 = vmatpush1.msra.mxu0 0.0
      %1461 = vmatprep.subr.mxu0 0.0
      %1462 = vmatpush1.msra.mxu0 0.0
      %1463 = vmatprep.subr.mxu0 0.0
      %1464 = vmatpush1.msra.mxu0 0.0
      %1465 = vmatprep.subr.mxu0 0.0
      %1466 = vmatpush1.msra.mxu0 0.0
      %1467 = vmatprep.mubr.f32.mxu0 0.0
      %1468 = vmatmul.mubr.f32.gmra.mrb[0].mxu0 %v1308
      %v1469 = vpop.f32.mrb[0].mxu0
      %v1470 = vadd.f32 0.0, %v1469
      %v1471 = vpop.f32.mrb[0].mxu0
      %1472 = vmatprep.mubr.f32.mxu0 0.0
      %1473 = vmatmul.mubr.f32.gmra.mrb[0].mxu0 %v1311
      %v1474 = vpop.f32.mrb[0].mxu0
      %v1475 = vadd.f32 0.0, %v1474
      %v1476 = vpop.f32.mrb[0].mxu0
      %1477 = vmatprep.mubr.f32.mxu0 0.0
      %1478 = vmatmul.mubr.f32.gmra.mrb[0].mxu0 %v1314
      %v1479 = vpop.f32.mrb[0].mxu0
      %v1480 = vadd.f32 0.0, %v1479
      %v1481 = vpop.f32.mrb[0].mxu0
      %1482 = vmatprep.mubr.f32.mxu0 0.0
      %1483 = vmatmul.mubr.f32.gmra.mrb[0].mxu0 %v1317
      %v1484 = vpop.f32.mrb[0].mxu0
      %v1485 = vadd.f32 0.0, %v1484
      %v1486 = vpop.f32.mrb[0].mxu0
      %1487 = vmatprep.mubr.f32.mxu0 0.0
      %1488 = vmatmul.mubr.f32.gmra.mrb[0].mxu0 %v1320
      %v1489 = vpop.f32.mrb[0].mxu0
      %v1490 = vadd.f32 0.0, %v1489
      %v1491 = vpop.f32.mrb[0].mxu0
      %1492 = vmatprep.mubr.f32.mxu0 0.0
      %1493 = vmatmul.mubr.f32.gmra.mrb[0].mxu0 %v1323
      %v1494 = vpop.f32.mrb[0].mxu0
      %v1495 = vadd.f32 0.0, %v1494
      %v1496 = vpop.f32.mrb[0].mxu0
      %1497 = vmatprep.mubr.f32.mxu0 0.0
      %1498 = vmatmul.mubr.f32.gmra.mrb[0].mxu0 %v1326
      %v1499 = vpop.f32.mrb[0].mxu0
      %v1500 = vadd.f32 0.0, %v1499
      %v1501 = vpop.f32.mrb[0].mxu0
      %1502 = vmatprep.mubr.f32.mxu0 0.0
      %1503 = vmatmul.mubr.f32.gmra.mrb[0].mxu0 %v1329
      %v1504 = vpop.f32.mrb[0].mxu0
      %v1505 = vadd.f32 0.0, %v1504
      %v1506 = vpop.f32.mrb[0].mxu0
      %1507 = vmatprep.mubr.f32.mxu0 0.0
      %1508 = vmatmul.mubr.f32.gmra.mrb[0].mxu0 %v1332
      %v1509 = vpop.f32.mrb[0].mxu0
      %v1510 = vadd.f32 0.0, %v1509
      %v1511 = vpop.f32.mrb[0].mxu0
      %1512 = vmatprep.mubr.f32.mxu0 0.0
      %1513 = vmatmul.mubr.f32.gmra.mrb[0].mxu0 %v1335
      %v1514 = vpop.f32.mrb[0].mxu0
      %v1515 = vadd.f32 0.0, %v1514
      %v1516 = vpop.f32.mrb[0].mxu0
      %1517 = vmatprep.mubr.f32.mxu0 0.0
      %1518 = vmatmul.mubr.f32.gmra.mrb[0].mxu0 %v1338
      %v1519 = vpop.f32.mrb[0].mxu0
      %v1520 = vadd.f32 0.0, %v1519
      %v1521 = vpop.f32.mrb[0].mxu0
      %1522 = vmatprep.mubr.f32.mxu0 0.0
      %1523 = vmatmul.mubr.f32.gmra.mrb[0].mxu0 %v1341
      %v1524 = vpop.f32.mrb[0].mxu0
      %v1525 = vadd.f32 0.0, %v1524
      %v1526 = vpop.f32.mrb[0].mxu0
      %1527 = vmatprep.mubr.f32.mxu0 0.0
      %1528 = vmatmul.mubr.f32.gmra.mrb[0].mxu0 %v1344
      %v1529 = vpop.f32.mrb[0].mxu0
      %v1530 = vadd.f32 0.0, %v1529
      %v1531 = vpop.f32.mrb[0].mxu0
      %1532 = vmatprep.mubr.f32.mxu0 0.0
      %1533 = vmatmul.mubr.f32.gmra.mrb[0].mxu0 %v1347
      %v1534 = vpop.f32.mrb[0].mxu0
      %v1535 = vadd.f32 0.0, %v1534
      %v1536 = vpop.f32.mrb[0].mxu0
      %1537 = vmatprep.mubr.f32.mxu0 0.0
      %1538 = vmatmul.mubr.f32.gmra.mrb[0].mxu0 %v1350
      %v1539 = vpop.f32.mrb[0].mxu0
      %v1540 = vadd.f32 0.0, %v1539
      %v1541 = vpop.f32.mrb[0].mxu0
      %1542 = vmatprep.mubr.f32.mxu0 0.0
      %1543 = vmatmul.mubr.f32.gmra.mrb[0].mxu0 %v1353
      %v1544 = vpop.f32.mrb[0].mxu0
      %v1545 = vadd.f32 0.0, %v1544
      %v1546 = vpop.f32.mrb[0].mxu0
      %1547 = vmatprep.mubr.f32.mxu0 0.0
      %1548 = vmatmul.mubr.f32.gmra.mrb[0].mxu0 %v1356
      %v1549 = vpop.f32.mrb[0].mxu0
      %v1550 = vadd.f32 0.0, %v1549
      %v1551 = vpop.f32.mrb[0].mxu0
      %1552 = vmatprep.mubr.f32.mxu0 0.0
      %1553 = vmatmul.mubr.f32.gmra.mrb[0].mxu0 %v1359
      %v1554 = vpop.f32.mrb[0].mxu0
      %v1555 = vadd.f32 0.0, %v1554
      %v1556 = vpop.f32.mrb[0].mxu0
      %1557 = vmatprep.mubr.f32.mxu0 0.0
      %1558 = vmatmul.mubr.f32.gmra.mrb[0].mxu0 %v1362
      %v1559 = vpop.f32.mrb[0].mxu0
      %v1560 = vadd.f32 0.0, %v1559
      %v1561 = vpop.f32.mrb[0].mxu0
      %1562 = vmatprep.mubr.f32.mxu0 0.0
      %1563 = vmatmul.mubr.f32.gmra.mrb[0].mxu0 %v1365
      %v1564 = vpop.f32.mrb[0].mxu0
      %v1565 = vadd.f32 0.0, %v1564
      %v1566 = vpop.f32.mrb[0].mxu0
      %1567 = vmatprep.mubr.f32.mxu0 0.0
      %1568 = vmatmul.mubr.f32.gmra.mrb[0].mxu0 %v1368
      %v1569 = vpop.f32.mrb[0].mxu0
      %v1570 = vadd.f32 0.0, %v1569
      %v1571 = vpop.f32.mrb[0].mxu0
      %1572 = vmatprep.mubr.f32.mxu0 0.0
      %1573 = vmatmul.mubr.f32.gmra.mrb[0].mxu0 %v1371
      %v1574 = vpop.f32.mrb[0].mxu0
      %v1575 = vadd.f32 0.0, %v1574
      %v1576 = vpop.f32.mrb[0].mxu0
      %1577 = vmatprep.mubr.f32.mxu0 0.0
      %1578 = vmatmul.mubr.f32.gmra.mrb[0].mxu0 %v1374
      %v1579 = vpop.f32.mrb[0].mxu0
      %v1580 = vadd.f32 0.0, %v1579
      %v1581 = vpop.f32.mrb[0].mxu0
      %1582 = vmatprep.mubr.f32.mxu0 0.0
      %1583 = vmatmul.mubr.f32.gmra.mrb[0].mxu0 %v1377
      %v1584 = vpop.f32.mrb[0].mxu0
      %v1585 = vadd.f32 0.0, %v1584
      %v1586 = vpop.f32.mrb[0].mxu0
      %1587 = vmatprep.mubr.f32.mxu0 0.0
      %1588 = vmatmul.mubr.f32.gmra.mrb[0].mxu0 %v1380
      %v1589 = vpop.f32.mrb[0].mxu0
      %v1590 = vadd.f32 0.0, %v1589
      %v1591 = vpop.f32.mrb[0].mxu0
      %1592 = vmatprep.mubr.f32.mxu0 0.0
      %1593 = vmatmul.mubr.f32.gmra.mrb[0].mxu0 %v1383
      %v1594 = vpop.f32.mrb[0].mxu0
      %v1595 = vadd.f32 0.0, %v1594
      %v1596 = vpop.f32.mrb[0].mxu0
      %1597 = vmatprep.mubr.f32.mxu0 0.0
      %1598 = vmatmul.mubr.f32.gmra.mrb[0].mxu0 %v1386
      %v1599 = vpop.f32.mrb[0].mxu0
      %v1600 = vadd.f32 0.0, %v1599
      %v1601 = vpop.f32.mrb[0].mxu0
      %1602 = vmatprep.mubr.f32.mxu0 0.0
      %1603 = vmatmul.mubr.f32.gmra.mrb[0].mxu0 %v1389
      %v1604 = vpop.f32.mrb[0].mxu0
      %v1605 = vadd.f32 0.0, %v1604
      %v1606 = vpop.f32.mrb[0].mxu0
      %1607 = vmatprep.mubr.f32.mxu0 0.0
      %1608 = vmatmul.mubr.f32.gmra.mrb[0].mxu0 %v1392
      %v1609 = vpop.f32.mrb[0].mxu0
      %v1610 = vadd.f32 0.0, %v1609
      %v1611 = vpop.f32.mrb[0].mxu0
      %1612 = vmatprep.mubr.f32.mxu0 0.0
      %1613 = vmatmul.mubr.f32.gmra.mrb[0].mxu0 %v1395
      %v1614 = vpop.f32.mrb[0].mxu0
      %v1615 = vadd.f32 0.0, %v1614
      %v1616 = vpop.f32.mrb[0].mxu0
      %1617 = vmatprep.mubr.f32.mxu0 0.0
      %1618 = vmatmul.mubr.f32.gmra.mrb[0].mxu0 %v1398
      %v1619 = vpop.f32.mrb[0].mxu0
      %v1620 = vadd.f32 0.0, %v1619
      %v1621 = vpop.f32.mrb[0].mxu0
      %1622 = vmatprep.mubr.f32.mxu0 0.0
      %1623 = vmatmul.mubr.f32.gmra.mrb[0].mxu0 %v1401
      %v1624 = vpop.f32.mrb[0].mxu0
      %v1625 = vadd.f32 0.0, %v1624
      %v1626 = vpop.f32.mrb[0].mxu0
      %1627 = vdwg.mxu0
      %v1628 = vadd.f32 %v1239, %v1470
      %v1629 = vadd.f32 %v1240, %v1475
      %v1630 = vadd.f32 %v1241, %v1480
      %v1631 = vadd.f32 %v1242, %v1485
      %v1632 = vadd.f32 %v1243, %v1490
      %v1633 = vadd.f32 %v1244, %v1495
      %v1634 = vadd.f32 %v1245, %v1500
      %v1635 = vadd.f32 %v1246, %v1505
      %v1636 = vadd.f32 %v1247, %v1510
      %v1637 = vadd.f32 %v1248, %v1515
      %v1638 = vadd.f32 %v1249, %v1520
      %v1639 = vadd.f32 %v1250, %v1525
      %v1640 = vadd.f32 %v1251, %v1530
      %v1641 = vadd.f32 %v1252, %v1535
      %v1642 = vadd.f32 %v1253, %v1540
      %v1643 = vadd.f32 %v1254, %v1545
      %v1644 = vadd.f32 %v1255, %v1550
      %v1645 = vadd.f32 %v1256, %v1555
      %v1646 = vadd.f32 %v1257, %v1560
      %v1647 = vadd.f32 %v1258, %v1565
      %v1648 = vadd.f32 %v1259, %v1570
      %v1649 = vadd.f32 %v1260, %v1575
      %v1650 = vadd.f32 %v1261, %v1580
      %v1651 = vadd.f32 %v1262, %v1585
      %v1652 = vadd.f32 %v1263, %v1590
      %v1653 = vadd.f32 %v1264, %v1595
      %v1654 = vadd.f32 %v1265, %v1600
      %v1655 = vadd.f32 %v1266, %v1605
      %v1656 = vadd.f32 %v1267, %v1610
      %v1657 = vadd.f32 %v1268, %v1615
      %v1658 = vadd.f32 %v1269, %v1620
      %v1659 = vadd.f32 %v1270, %v1625
      %v1660 = vld [vmem:[%s1271 + $0x1] sm:$0xff]
      %v1661 = vld [vmem:[%s1271 + $0x9] sm:$0xff]
      %v1662 = vld [vmem:[%s1271 + $0x19] sm:$0xff]
      %v1663 = vld [vmem:[%s1271 + $0x21] sm:$0xff]
      %v1664 = vld [vmem:[%s1271 + $0x31] sm:$0xff]
      %v1665 = vld [vmem:[%s1271 + $0x39] sm:$0xff]
      %v1666 = vld [vmem:[%s1271 + $0x49] sm:$0xff]
      %v1667 = vld [vmem:[%s1271 + $0x51] sm:$0xff]
      %v1668 = vld [vmem:[%s1271 + $0x61] sm:$0xff]
      %v1669 = vld [vmem:[%s1271 + $0x69] sm:$0xff]
      %v1670 = vld [vmem:[%s1271 + $0x79] sm:$0xff]
      %v1671 = vld [vmem:[%s1271 + $0x81] sm:$0xff]
      %v1672 = vld [vmem:[%s1271 + $0x91] sm:$0xff]
      %v1673 = vld [vmem:[%s1271 + $0x99] sm:$0xff]
      %v1674 = vld [vmem:[%s1271 + $0xa9] sm:$0xff]
      %v1675 = vld [vmem:[%s1271 + $0xb1] sm:$0xff]
      %v1676 = vld [vmem:[%s1271 + $0xc1] sm:$0xff]
      %v1677 = vld [vmem:[%s1271 + $0xc9] sm:$0xff]
      %v1678 = vld [vmem:[%s1271 + $0xd9] sm:$0xff]
      %v1679 = vld [vmem:[%s1271 + $0xe1] sm:$0xff]
      %v1680 = vld [vmem:[%s1271 + $0xf1] sm:$0xff]
      %v1681 = vld [vmem:[%s1271 + $0xf9] sm:$0xff]
      %v1682 = vld [vmem:[%s1271 + $0x109] sm:$0xff]
      %v1683 = vld [vmem:[%s1271 + $0x111] sm:$0xff]
      %v1684 = vld [vmem:[%s1271 + $0x121] sm:$0xff]
      %v1685 = vld [vmem:[%s1271 + $0x129] sm:$0xff]
      %v1686 = vld [vmem:[%s1271 + $0x139] sm:$0xff]
      %v1687 = vld [vmem:[%s1271 + $0x141] sm:$0xff]
      %v1688 = vld [vmem:[%s1271 + $0x151] sm:$0xff]
      %v1689 = vld [vmem:[%s1271 + $0x159] sm:$0xff]
      %v1690 = vld [vmem:[%s1271 + $0x169] sm:$0xff]
      %v1691 = vld [vmem:[%s1271 + $0x171] sm:$0xff]
      %s1692 = scalar_lea.vmem %s1, 64
      %v1693 = vld [vmem:[%s1692] sm:$0xff]
      %v1694 = vld [vmem:[%s1692 + $0x8] sm:$0xff]
      %v1696 = vsel %vm240, %v1660, 0
      %v1699 = vsel %vm240, %v1661, 0
      %v1702 = vsel %vm240, %v1662, 0
      %v1705 = vsel %vm240, %v1663, 0
      %v1708 = vsel %vm240, %v1664, 0
      %v1711 = vsel %vm240, %v1665, 0
      %v1714 = vsel %vm240, %v1666, 0
      %v1717 = vsel %vm240, %v1667, 0
      %v1720 = vsel %vm240, %v1668, 0
      %v1723 = vsel %vm240, %v1669, 0
      %v1726 = vsel %vm240, %v1670, 0
      %v1729 = vsel %vm240, %v1671, 0
      %v1732 = vsel %vm240, %v1672, 0
      %v1735 = vsel %vm240, %v1673, 0
      %v1738 = vsel %vm240, %v1674, 0
      %v1741 = vsel %vm240, %v1675, 0
      %v1744 = vsel %vm240, %v1676, 0
      %v1747 = vsel %vm240, %v1677, 0
      %v1750 = vsel %vm240, %v1678, 0
      %v1753 = vsel %vm240, %v1679, 0
      %v1756 = vsel %vm240, %v1680, 0
      %v1759 = vsel %vm240, %v1681, 0
      %v1762 = vsel %vm240, %v1682, 0
      %v1765 = vsel %vm240, %v1683, 0
      %v1768 = vsel %vm240, %v1684, 0
      %v1771 = vsel %vm240, %v1685, 0
      %v1774 = vsel %vm240, %v1686, 0
      %v1777 = vsel %vm240, %v1687, 0
      %v1780 = vsel %vm240, %v1688, 0
      %v1783 = vsel %vm240, %v1689, 0
      %v1786 = vsel %vm240, %v1690, 0
      %v1789 = vsel %vm240, %v1691, 0
      %1791 = vmatprep.subr.mxu0 0.0
      %1792 = vmatpush1.msra.mxu0 %v1693
      %1793 = vmatprep.subr.mxu0 0.0
      %1794 = vmatpush1.msra.mxu0 %v1694
      %1795 = vmatprep.subr.mxu0 0.0
      %1796 = vmatpush1.msra.mxu0 0.0
      %1797 = vmatprep.subr.mxu0 0.0
      %1798 = vmatpush1.msra.mxu0 0.0
      %1799 = vmatprep.subr.mxu0 0.0
      %1800 = vmatpush1.msra.mxu0 0.0
      %1801 = vmatprep.subr.mxu0 0.0
      %1802 = vmatpush1.msra.mxu0 0.0
      %1803 = vmatprep.subr.mxu0 0.0
      %1804 = vmatpush1.msra.mxu0 0.0
      %1805 = vmatprep.subr.mxu0 0.0
      %1806 = vmatpush1.msra.mxu0 0.0
      %1807 = vmatprep.subr.mxu0 0.0
      %1808 = vmatpush1.msra.mxu0 0.0
      %1809 = vmatprep.subr.mxu0 0.0
      %1810 = vmatpush1.msra.mxu0 0.0
      %1811 = vmatprep.subr.mxu0 0.0
      %1812 = vmatpush1.msra.mxu0 0.0
      %1813 = vmatprep.subr.mxu0 0.0
      %1814 = vmatpush1.msra.mxu0 0.0
      %1815 = vmatprep.subr.mxu0 0.0
      %1816 = vmatpush1.msra.mxu0 0.0
      %1817 = vmatprep.subr.mxu0 0.0
      %1818 = vmatpush1.msra.mxu0 0.0
      %1819 = vmatprep.subr.mxu0 0.0
      %1820 = vmatpush1.msra.mxu0 0.0
      %1821 = vmatprep.subr.mxu0 0.0
      %1822 = vmatpush1.msra.mxu0 0.0
      %1823 = vmatprep.subr.mxu0 0.0
      %1824 = vmatpush1.msra.mxu0 0.0
      %1825 = vmatprep.subr.mxu0 0.0
      %1826 = vmatpush1.msra.mxu0 0.0
      %1827 = vmatprep.subr.mxu0 0.0
      %1828 = vmatpush1.msra.mxu0 0.0
      %1829 = vmatprep.subr.mxu0 0.0
      %1830 = vmatpush1.msra.mxu0 0.0
      %1831 = vmatprep.subr.mxu0 0.0
      %1832 = vmatpush1.msra.mxu0 0.0
      %1833 = vmatprep.subr.mxu0 0.0
      %1834 = vmatpush1.msra.mxu0 0.0
      %1835 = vmatprep.subr.mxu0 0.0
      %1836 = vmatpush1.msra.mxu0 0.0
      %1837 = vmatprep.subr.mxu0 0.0
      %1838 = vmatpush1.msra.mxu0 0.0
      %1839 = vmatprep.subr.mxu0 0.0
      %1840 = vmatpush1.msra.mxu0 0.0
      %1841 = vmatprep.subr.mxu0 0.0
      %1842 = vmatpush1.msra.mxu0 0.0
      %1843 = vmatprep.subr.mxu0 0.0
      %1844 = vmatpush1.msra.mxu0 0.0
      %1845 = vmatprep.subr.mxu0 0.0
      %1846 = vmatpush1.msra.mxu0 0.0
      %1847 = vmatprep.subr.mxu0 0.0
      %1848 = vmatpush1.msra.mxu0 0.0
      %1849 = vmatprep.subr.mxu0 0.0
      %1850 = vmatpush1.msra.mxu0 0.0
      %1851 = vmatprep.subr.mxu0 0.0
      %1852 = vmatpush1.msra.mxu0 0.0
      %1853 = vmatprep.subr.mxu0 0.0
      %1854 = vmatpush1.msra.mxu0 0.0
      %1855 = vmatprep.mubr.f32.mxu0 0.0
      %1856 = vmatmul.mubr.f32.gmra.mrb[0].mxu0 %v1696
      %v1857 = vpop.f32.mrb[0].mxu0
      %v1858 = vadd.f32 0.0, %v1857
      %v1859 = vpop.f32.mrb[0].mxu0
      %1860 = vmatprep.mubr.f32.mxu0 0.0
      %1861 = vmatmul.mubr.f32.gmra.mrb[0].mxu0 %v1699
      %v1862 = vpop.f32.mrb[0].mxu0
      %v1863 = vadd.f32 0.0, %v1862
      %v1864 = vpop.f32.mrb[0].mxu0
      %1865 = vmatprep.mubr.f32.mxu0 0.0
      %1866 = vmatmul.mubr.f32.gmra.mrb[0].mxu0 %v1702
      %v1867 = vpop.f32.mrb[0].mxu0
      %v1868 = vadd.f32 0.0, %v1867
      %v1869 = vpop.f32.mrb[0].mxu0
      %1870 = vmatprep.mubr.f32.mxu0 0.0
      %1871 = vmatmul.mubr.f32.gmra.mrb[0].mxu0 %v1705
      %v1872 = vpop.f32.mrb[0].mxu0
      %v1873 = vadd.f32 0.0, %v1872
      %v1874 = vpop.f32.mrb[0].mxu0
      %1875 = vmatprep.mubr.f32.mxu0 0.0
      %1876 = vmatmul.mubr.f32.gmra.mrb[0].mxu0 %v1708
      %v1877 = vpop.f32.mrb[0].mxu0
      %v1878 = vadd.f32 0.0, %v1877
      %v1879 = vpop.f32.mrb[0].mxu0
      %1880 = vmatprep.mubr.f32.mxu0 0.0
      %1881 = vmatmul.mubr.f32.gmra.mrb[0].mxu0 %v1711
      %v1882 = vpop.f32.mrb[0].mxu0
      %v1883 = vadd.f32 0.0, %v1882
      %v1884 = vpop.f32.mrb[0].mxu0
      %1885 = vmatprep.mubr.f32.mxu0 0.0
      %1886 = vmatmul.mubr.f32.gmra.mrb[0].mxu0 %v1714
      %v1887 = vpop.f32.mrb[0].mxu0
      %v1888 = vadd.f32 0.0, %v1887
      %v1889 = vpop.f32.mrb[0].mxu0
      %1890 = vmatprep.mubr.f32.mxu0 0.0
      %1891 = vmatmul.mubr.f32.gmra.mrb[0].mxu0 %v1717
      %v1892 = vpop.f32.mrb[0].mxu0
      %v1893 = vadd.f32 0.0, %v1892
      %v1894 = vpop.f32.mrb[0].mxu0
      %1895 = vmatprep.mubr.f32.mxu0 0.0
      %1896 = vmatmul.mubr.f32.gmra.mrb[0].mxu0 %v1720
      %v1897 = vpop.f32.mrb[0].mxu0
      %v1898 = vadd.f32 0.0, %v1897
      %v1899 = vpop.f32.mrb[0].mxu0
      %1900 = vmatprep.mubr.f32.mxu0 0.0
      %1901 = vmatmul.mubr.f32.gmra.mrb[0].mxu0 %v1723
      %v1902 = vpop.f32.mrb[0].mxu0
      %v1903 = vadd.f32 0.0, %v1902
      %v1904 = vpop.f32.mrb[0].mxu0
      %1905 = vmatprep.mubr.f32.mxu0 0.0
      %1906 = vmatmul.mubr.f32.gmra.mrb[0].mxu0 %v1726
      %v1907 = vpop.f32.mrb[0].mxu0
      %v1908 = vadd.f32 0.0, %v1907
      %v1909 = vpop.f32.mrb[0].mxu0
      %1910 = vmatprep.mubr.f32.mxu0 0.0
      %1911 = vmatmul.mubr.f32.gmra.mrb[0].mxu0 %v1729
      %v1912 = vpop.f32.mrb[0].mxu0
      %v1913 = vadd.f32 0.0, %v1912
      %v1914 = vpop.f32.mrb[0].mxu0
      %1915 = vmatprep.mubr.f32.mxu0 0.0
      %1916 = vmatmul.mubr.f32.gmra.mrb[0].mxu0 %v1732
      %v1917 = vpop.f32.mrb[0].mxu0
      %v1918 = vadd.f32 0.0, %v1917
      %v1919 = vpop.f32.mrb[0].mxu0
      %1920 = vmatprep.mubr.f32.mxu0 0.0
      %1921 = vmatmul.mubr.f32.gmra.mrb[0].mxu0 %v1735
      %v1922 = vpop.f32.mrb[0].mxu0
      %v1923 = vadd.f32 0.0, %v1922
      %v1924 = vpop.f32.mrb[0].mxu0
      %1925 = vmatprep.mubr.f32.mxu0 0.0
      %1926 = vmatmul.mubr.f32.gmra.mrb[0].mxu0 %v1738
      %v1927 = vpop.f32.mrb[0].mxu0
      %v1928 = vadd.f32 0.0, %v1927
      %v1929 = vpop.f32.mrb[0].mxu0
      %1930 = vmatprep.mubr.f32.mxu0 0.0
      %1931 = vmatmul.mubr.f32.gmra.mrb[0].mxu0 %v1741
      %v1932 = vpop.f32.mrb[0].mxu0
      %v1933 = vadd.f32 0.0, %v1932
      %v1934 = vpop.f32.mrb[0].mxu0
      %1935 = vmatprep.mubr.f32.mxu0 0.0
      %1936 = vmatmul.mubr.f32.gmra.mrb[0].mxu0 %v1744
      %v1937 = vpop.f32.mrb[0].mxu0
      %v1938 = vadd.f32 0.0, %v1937
      %v1939 = vpop.f32.mrb[0].mxu0
      %1940 = vmatprep.mubr.f32.mxu0 0.0
      %1941 = vmatmul.mubr.f32.gmra.mrb[0].mxu0 %v1747
      %v1942 = vpop.f32.mrb[0].mxu0
      %v1943 = vadd.f32 0.0, %v1942
      %v1944 = vpop.f32.mrb[0].mxu0
      %1945 = vmatprep.mubr.f32.mxu0 0.0
      %1946 = vmatmul.mubr.f32.gmra.mrb[0].mxu0 %v1750
      %v1947 = vpop.f32.mrb[0].mxu0
      %v1948 = vadd.f32 0.0, %v1947
      %v1949 = vpop.f32.mrb[0].mxu0
      %1950 = vmatprep.mubr.f32.mxu0 0.0
      %1951 = vmatmul.mubr.f32.gmra.mrb[0].mxu0 %v1753
      %v1952 = vpop.f32.mrb[0].mxu0
      %v1953 = vadd.f32 0.0, %v1952
      %v1954 = vpop.f32.mrb[0].mxu0
      %1955 = vmatprep.mubr.f32.mxu0 0.0
      %1956 = vmatmul.mubr.f32.gmra.mrb[0].mxu0 %v1756
      %v1957 = vpop.f32.mrb[0].mxu0
      %v1958 = vadd.f32 0.0, %v1957
      %v1959 = vpop.f32.mrb[0].mxu0
      %1960 = vmatprep.mubr.f32.mxu0 0.0
      %1961 = vmatmul.mubr.f32.gmra.mrb[0].mxu0 %v1759
      %v1962 = vpop.f32.mrb[0].mxu0
      %v1963 = vadd.f32 0.0, %v1962
      %v1964 = vpop.f32.mrb[0].mxu0
      %1965 = vmatprep.mubr.f32.mxu0 0.0
      %1966 = vmatmul.mubr.f32.gmra.mrb[0].mxu0 %v1762
      %v1967 = vpop.f32.mrb[0].mxu0
      %v1968 = vadd.f32 0.0, %v1967
      %v1969 = vpop.f32.mrb[0].mxu0
      %1970 = vmatprep.mubr.f32.mxu0 0.0
      %1971 = vmatmul.mubr.f32.gmra.mrb[0].mxu0 %v1765
      %v1972 = vpop.f32.mrb[0].mxu0
      %v1973 = vadd.f32 0.0, %v1972
      %v1974 = vpop.f32.mrb[0].mxu0
      %1975 = vmatprep.mubr.f32.mxu0 0.0
      %1976 = vmatmul.mubr.f32.gmra.mrb[0].mxu0 %v1768
      %v1977 = vpop.f32.mrb[0].mxu0
      %v1978 = vadd.f32 0.0, %v1977
      %v1979 = vpop.f32.mrb[0].mxu0
      %1980 = vmatprep.mubr.f32.mxu0 0.0
      %1981 = vmatmul.mubr.f32.gmra.mrb[0].mxu0 %v1771
      %v1982 = vpop.f32.mrb[0].mxu0
      %v1983 = vadd.f32 0.0, %v1982
      %v1984 = vpop.f32.mrb[0].mxu0
      %1985 = vmatprep.mubr.f32.mxu0 0.0
      %1986 = vmatmul.mubr.f32.gmra.mrb[0].mxu0 %v1774
      %v1987 = vpop.f32.mrb[0].mxu0
      %v1988 = vadd.f32 0.0, %v1987
      %v1989 = vpop.f32.mrb[0].mxu0
      %1990 = vmatprep.mubr.f32.mxu0 0.0
      %1991 = vmatmul.mubr.f32.gmra.mrb[0].mxu0 %v1777
      %v1992 = vpop.f32.mrb[0].mxu0
      %v1993 = vadd.f32 0.0, %v1992
      %v1994 = vpop.f32.mrb[0].mxu0
      %1995 = vmatprep.mubr.f32.mxu0 0.0
      %1996 = vmatmul.mubr.f32.gmra.mrb[0].mxu0 %v1780
      %v1997 = vpop.f32.mrb[0].mxu0
      %v1998 = vadd.f32 0.0, %v1997
      %v1999 = vpop.f32.mrb[0].mxu0
      %2000 = vmatprep.mubr.f32.mxu0 0.0
      %2001 = vmatmul.mubr.f32.gmra.mrb[0].mxu0 %v1783
      %v2002 = vpop.f32.mrb[0].mxu0
      %v2003 = vadd.f32 0.0, %v2002
      %v2004 = vpop.f32.mrb[0].mxu0
      %2005 = vmatprep.mubr.f32.mxu0 0.0
      %2006 = vmatmul.mubr.f32.gmra.mrb[0].mxu0 %v1786
      %v2007 = vpop.f32.mrb[0].mxu0
      %v2008 = vadd.f32 0.0, %v2007
      %v2009 = vpop.f32.mrb[0].mxu0
      %2010 = vmatprep.mubr.f32.mxu0 0.0
      %2011 = vmatmul.mubr.f32.gmra.mrb[0].mxu0 %v1789
      %v2012 = vpop.f32.mrb[0].mxu0
      %v2013 = vadd.f32 0.0, %v2012
      %v2014 = vpop.f32.mrb[0].mxu0
      %2015 = vdwg.mxu0
      %v2016 = vadd.f32 %v1628, %v1858
      %v2017 = vadd.f32 %v1629, %v1863
      %v2018 = vadd.f32 %v1630, %v1868
      %v2019 = vadd.f32 %v1631, %v1873
      %v2020 = vadd.f32 %v1632, %v1878
      %v2021 = vadd.f32 %v1633, %v1883
      %v2022 = vadd.f32 %v1634, %v1888
      %v2023 = vadd.f32 %v1635, %v1893
      %v2024 = vadd.f32 %v1636, %v1898
      %v2025 = vadd.f32 %v1637, %v1903
      %v2026 = vadd.f32 %v1638, %v1908
      %v2027 = vadd.f32 %v1639, %v1913
      %v2028 = vadd.f32 %v1640, %v1918
      %v2029 = vadd.f32 %v1641, %v1923
      %v2030 = vadd.f32 %v1642, %v1928
      %v2031 = vadd.f32 %v1643, %v1933
      %v2032 = vadd.f32 %v1644, %v1938
      %v2033 = vadd.f32 %v1645, %v1943
      %v2034 = vadd.f32 %v1646, %v1948
      %v2035 = vadd.f32 %v1647, %v1953
      %v2036 = vadd.f32 %v1648, %v1958
      %v2037 = vadd.f32 %v1649, %v1963
      %v2038 = vadd.f32 %v1650, %v1968
      %v2039 = vadd.f32 %v1651, %v1973
      %v2040 = vadd.f32 %v1652, %v1978
      %v2041 = vadd.f32 %v1653, %v1983
      %v2042 = vadd.f32 %v1654, %v1988
      %v2043 = vadd.f32 %v1655, %v1993
      %v2044 = vadd.f32 %v1656, %v1998
      %v2045 = vadd.f32 %v1657, %v2003
      %v2046 = vadd.f32 %v1658, %v2008
      %v2047 = vadd.f32 %v1659, %v2013
      %v2048 = vld [vmem:[%s1271 + $0x2] sm:$0xff]
      %v2049 = vld [vmem:[%s1271 + $0xa] sm:$0xff]
      %v2050 = vld [vmem:[%s1271 + $0x1a] sm:$0xff]
      %v2051 = vld [vmem:[%s1271 + $0x22] sm:$0xff]
      %v2052 = vld [vmem:[%s1271 + $0x32] sm:$0xff]
      %v2053 = vld [vmem:[%s1271 + $0x3a] sm:$0xff]
      %v2054 = vld [vmem:[%s1271 + $0x4a] sm:$0xff]
      %v2055 = vld [vmem:[%s1271 + $0x52] sm:$0xff]
      %v2056 = vld [vmem:[%s1271 + $0x62] sm:$0xff]
      %v2057 = vld [vmem:[%s1271 + $0x6a] sm:$0xff]
      %v2058 = vld [vmem:[%s1271 + $0x7a] sm:$0xff]
      %v2059 = vld [vmem:[%s1271 + $0x82] sm:$0xff]
      %v2060 = vld [vmem:[%s1271 + $0x92] sm:$0xff]
      %v2061 = vld [vmem:[%s1271 + $0x9a] sm:$0xff]
      %v2062 = vld [vmem:[%s1271 + $0xaa] sm:$0xff]
      %v2063 = vld [vmem:[%s1271 + $0xb2] sm:$0xff]
      %v2064 = vld [vmem:[%s1271 + $0xc2] sm:$0xff]
      %v2065 = vld [vmem:[%s1271 + $0xca] sm:$0xff]
      %v2066 = vld [vmem:[%s1271 + $0xda] sm:$0xff]
      %v2067 = vld [vmem:[%s1271 + $0xe2] sm:$0xff]
      %v2068 = vld [vmem:[%s1271 + $0xf2] sm:$0xff]
      %v2069 = vld [vmem:[%s1271 + $0xfa] sm:$0xff]
      %v2070 = vld [vmem:[%s1271 + $0x10a] sm:$0xff]
      %v2071 = vld [vmem:[%s1271 + $0x112] sm:$0xff]
      %v2072 = vld [vmem:[%s1271 + $0x122] sm:$0xff]
      %v2073 = vld [vmem:[%s1271 + $0x12a] sm:$0xff]
      %v2074 = vld [vmem:[%s1271 + $0x13a] sm:$0xff]
      %v2075 = vld [vmem:[%s1271 + $0x142] sm:$0xff]
      %v2076 = vld [vmem:[%s1271 + $0x152] sm:$0xff]
      %v2077 = vld [vmem:[%s1271 + $0x15a] sm:$0xff]
      %v2078 = vld [vmem:[%s1271 + $0x16a] sm:$0xff]
      %v2079 = vld [vmem:[%s1271 + $0x172] sm:$0xff]
      %s2080 = scalar_lea.vmem %s1, 80
      %v2081 = vld [vmem:[%s2080] sm:$0xff]
      %v2082 = vld [vmem:[%s2080 + $0x8] sm:$0xff]
      %v2084 = vsel %vm240, %v2048, 0
      %v2087 = vsel %vm240, %v2049, 0
      %v2090 = vsel %vm240, %v2050, 0
      %v2093 = vsel %vm240, %v2051, 0
      %v2096 = vsel %vm240, %v2052, 0
      %v2099 = vsel %vm240, %v2053, 0
      %v2102 = vsel %vm240, %v2054, 0
      %v2105 = vsel %vm240, %v2055, 0
      %v2108 = vsel %vm240, %v2056, 0
      %v2111 = vsel %vm240, %v2057, 0
      %v2114 = vsel %vm240, %v2058, 0
      %v2117 = vsel %vm240, %v2059, 0
      %v2120 = vsel %vm240, %v2060, 0
      %v2123 = vsel %vm240, %v2061, 0
      %v2126 = vsel %vm240, %v2062, 0
      %v2129 = vsel %vm240, %v2063, 0
      %v2132 = vsel %vm240, %v2064, 0
      %v2135 = vsel %vm240, %v2065, 0
      %v2138 = vsel %vm240, %v2066, 0
      %v2141 = vsel %vm240, %v2067, 0
      %v2144 = vsel %vm240, %v2068, 0
      %v2147 = vsel %vm240, %v2069, 0
      %v2150 = vsel %vm240, %v2070, 0
      %v2153 = vsel %vm240, %v2071, 0
      %v2156 = vsel %vm240, %v2072, 0
      %v2159 = vsel %vm240, %v2073, 0
      %v2162 = vsel %vm240, %v2074, 0
      %v2165 = vsel %vm240, %v2075, 0
      %v2168 = vsel %vm240, %v2076, 0
      %v2171 = vsel %vm240, %v2077, 0
      %v2174 = vsel %vm240, %v2078, 0
      %v2177 = vsel %vm240, %v2079, 0
      %2179 = vmatprep.subr.mxu0 0.0
      %2180 = vmatpush1.msra.mxu0 %v2081
      %2181 = vmatprep.subr.mxu0 0.0
      %2182 = vmatpush1.msra.mxu0 %v2082
      %2183 = vmatprep.subr.mxu0 0.0
      %2184 = vmatpush1.msra.mxu0 0.0
      %2185 = vmatprep.subr.mxu0 0.0
      %2186 = vmatpush1.msra.mxu0 0.0
      %2187 = vmatprep.subr.mxu0 0.0
      %2188 = vmatpush1.msra.mxu0 0.0
      %2189 = vmatprep.subr.mxu0 0.0
      %2190 = vmatpush1.msra.mxu0 0.0
      %2191 = vmatprep.subr.mxu0 0.0
      %2192 = vmatpush1.msra.mxu0 0.0
      %2193 = vmatprep.subr.mxu0 0.0
      %2194 = vmatpush1.msra.mxu0 0.0
      %2195 = vmatprep.subr.mxu0 0.0
      %2196 = vmatpush1.msra.mxu0 0.0
      %2197 = vmatprep.subr.mxu0 0.0
      %2198 = vmatpush1.msra.mxu0 0.0
      %2199 = vmatprep.subr.mxu0 0.0
      %2200 = vmatpush1.msra.mxu0 0.0
      %2201 = vmatprep.subr.mxu0 0.0
      %2202 = vmatpush1.msra.mxu0 0.0
      %2203 = vmatprep.subr.mxu0 0.0
      %2204 = vmatpush1.msra.mxu0 0.0
      %2205 = vmatprep.subr.mxu0 0.0
      %2206 = vmatpush1.msra.mxu0 0.0
      %2207 = vmatprep.subr.mxu0 0.0
      %2208 = vmatpush1.msra.mxu0 0.0
      %2209 = vmatprep.subr.mxu0 0.0
      %2210 = vmatpush1.msra.mxu0 0.0
      %2211 = vmatprep.subr.mxu0 0.0
      %2212 = vmatpush1.msra.mxu0 0.0
      %2213 = vmatprep.subr.mxu0 0.0
      %2214 = vmatpush1.msra.mxu0 0.0
      %2215 = vmatprep.subr.mxu0 0.0
      %2216 = vmatpush1.msra.mxu0 0.0
      %2217 = vmatprep.subr.mxu0 0.0
      %2218 = vmatpush1.msra.mxu0 0.0
      %2219 = vmatprep.subr.mxu0 0.0
      %2220 = vmatpush1.msra.mxu0 0.0
      %2221 = vmatprep.subr.mxu0 0.0
      %2222 = vmatpush1.msra.mxu0 0.0
      %2223 = vmatprep.subr.mxu0 0.0
      %2224 = vmatpush1.msra.mxu0 0.0
      %2225 = vmatprep.subr.mxu0 0.0
      %2226 = vmatpush1.msra.mxu0 0.0
      %2227 = vmatprep.subr.mxu0 0.0
      %2228 = vmatpush1.msra.mxu0 0.0
      %2229 = vmatprep.subr.mxu0 0.0
      %2230 = vmatpush1.msra.mxu0 0.0
      %2231 = vmatprep.subr.mxu0 0.0
      %2232 = vmatpush1.msra.mxu0 0.0
      %2233 = vmatprep.subr.mxu0 0.0
      %2234 = vmatpush1.msra.mxu0 0.0
      %2235 = vmatprep.subr.mxu0 0.0
      %2236 = vmatpush1.msra.mxu0 0.0
      %2237 = vmatprep.subr.mxu0 0.0
      %2238 = vmatpush1.msra.mxu0 0.0
      %2239 = vmatprep.subr.mxu0 0.0
      %2240 = vmatpush1.msra.mxu0 0.0
      %2241 = vmatprep.subr.mxu0 0.0
      %2242 = vmatpush1.msra.mxu0 0.0
      %2243 = vmatprep.mubr.f32.mxu0 0.0
      %2244 = vmatmul.mubr.f32.gmra.mrb[0].mxu0 %v2084
      %v2245 = vpop.f32.mrb[0].mxu0
      %v2246 = vadd.f32 0.0, %v2245
      %v2247 = vpop.f32.mrb[0].mxu0
      %2248 = vmatprep.mubr.f32.mxu0 0.0
      %2249 = vmatmul.mubr.f32.gmra.mrb[0].mxu0 %v2087
      %v2250 = vpop.f32.mrb[0].mxu0
      %v2251 = vadd.f32 0.0, %v2250
      %v2252 = vpop.f32.mrb[0].mxu0
      %2253 = vmatprep.mubr.f32.mxu0 0.0
      %2254 = vmatmul.mubr.f32.gmra.mrb[0].mxu0 %v2090
      %v2255 = vpop.f32.mrb[0].mxu0
      %v2256 = vadd.f32 0.0, %v2255
      %v2257 = vpop.f32.mrb[0].mxu0
      %2258 = vmatprep.mubr.f32.mxu0 0.0
      %2259 = vmatmul.mubr.f32.gmra.mrb[0].mxu0 %v2093
      %v2260 = vpop.f32.mrb[0].mxu0
      %v2261 = vadd.f32 0.0, %v2260
      %v2262 = vpop.f32.mrb[0].mxu0
      %2263 = vmatprep.mubr.f32.mxu0 0.0
      %2264 = vmatmul.mubr.f32.gmra.mrb[0].mxu0 %v2096
      %v2265 = vpop.f32.mrb[0].mxu0
      %v2266 = vadd.f32 0.0, %v2265
      %v2267 = vpop.f32.mrb[0].mxu0
      %2268 = vmatprep.mubr.f32.mxu0 0.0
      %2269 = vmatmul.mubr.f32.gmra.mrb[0].mxu0 %v2099
      %v2270 = vpop.f32.mrb[0].mxu0
      %v2271 = vadd.f32 0.0, %v2270
      %v2272 = vpop.f32.mrb[0].mxu0
      %2273 = vmatprep.mubr.f32.mxu0 0.0
      %2274 = vmatmul.mubr.f32.gmra.mrb[0].mxu0 %v2102
      %v2275 = vpop.f32.mrb[0].mxu0
      %v2276 = vadd.f32 0.0, %v2275
      %v2277 = vpop.f32.mrb[0].mxu0
      %2278 = vmatprep.mubr.f32.mxu0 0.0
      %2279 = vmatmul.mubr.f32.gmra.mrb[0].mxu0 %v2105
      %v2280 = vpop.f32.mrb[0].mxu0
      %v2281 = vadd.f32 0.0, %v2280
      %v2282 = vpop.f32.mrb[0].mxu0
      %2283 = vmatprep.mubr.f32.mxu0 0.0
      %2284 = vmatmul.mubr.f32.gmra.mrb[0].mxu0 %v2108
      %v2285 = vpop.f32.mrb[0].mxu0
      %v2286 = vadd.f32 0.0, %v2285
      %v2287 = vpop.f32.mrb[0].mxu0
      %2288 = vmatprep.mubr.f32.mxu0 0.0
      %2289 = vmatmul.mubr.f32.gmra.mrb[0].mxu0 %v2111
      %v2290 = vpop.f32.mrb[0].mxu0
      %v2291 = vadd.f32 0.0, %v2290
      %v2292 = vpop.f32.mrb[0].mxu0
      %2293 = vmatprep.mubr.f32.mxu0 0.0
      %2294 = vmatmul.mubr.f32.gmra.mrb[0].mxu0 %v2114
      %v2295 = vpop.f32.mrb[0].mxu0
      %v2296 = vadd.f32 0.0, %v2295
      %v2297 = vpop.f32.mrb[0].mxu0
      %2298 = vmatprep.mubr.f32.mxu0 0.0
      %2299 = vmatmul.mubr.f32.gmra.mrb[0].mxu0 %v2117
      %v2300 = vpop.f32.mrb[0].mxu0
      %v2301 = vadd.f32 0.0, %v2300
      %v2302 = vpop.f32.mrb[0].mxu0
      %2303 = vmatprep.mubr.f32.mxu0 0.0
      %2304 = vmatmul.mubr.f32.gmra.mrb[0].mxu0 %v2120
      %v2305 = vpop.f32.mrb[0].mxu0
      %v2306 = vadd.f32 0.0, %v2305
      %v2307 = vpop.f32.mrb[0].mxu0
      %2308 = vmatprep.mubr.f32.mxu0 0.0
      %2309 = vmatmul.mubr.f32.gmra.mrb[0].mxu0 %v2123
      %v2310 = vpop.f32.mrb[0].mxu0
      %v2311 = vadd.f32 0.0, %v2310
      %v2312 = vpop.f32.mrb[0].mxu0
      %2313 = vmatprep.mubr.f32.mxu0 0.0
      %2314 = vmatmul.mubr.f32.gmra.mrb[0].mxu0 %v2126
      %v2315 = vpop.f32.mrb[0].mxu0
      %v2316 = vadd.f32 0.0, %v2315
      %v2317 = vpop.f32.mrb[0].mxu0
      %2318 = vmatprep.mubr.f32.mxu0 0.0
      %2319 = vmatmul.mubr.f32.gmra.mrb[0].mxu0 %v2129
      %v2320 = vpop.f32.mrb[0].mxu0
      %v2321 = vadd.f32 0.0, %v2320
      %v2322 = vpop.f32.mrb[0].mxu0
      %2323 = vmatprep.mubr.f32.mxu0 0.0
      %2324 = vmatmul.mubr.f32.gmra.mrb[0].mxu0 %v2132
      %v2325 = vpop.f32.mrb[0].mxu0
      %v2326 = vadd.f32 0.0, %v2325
      %v2327 = vpop.f32.mrb[0].mxu0
      %2328 = vmatprep.mubr.f32.mxu0 0.0
      %2329 = vmatmul.mubr.f32.gmra.mrb[0].mxu0 %v2135
      %v2330 = vpop.f32.mrb[0].mxu0
      %v2331 = vadd.f32 0.0, %v2330
      %v2332 = vpop.f32.mrb[0].mxu0
      %2333 = vmatprep.mubr.f32.mxu0 0.0
      %2334 = vmatmul.mubr.f32.gmra.mrb[0].mxu0 %v2138
      %v2335 = vpop.f32.mrb[0].mxu0
      %v2336 = vadd.f32 0.0, %v2335
      %v2337 = vpop.f32.mrb[0].mxu0
      %2338 = vmatprep.mubr.f32.mxu0 0.0
      %2339 = vmatmul.mubr.f32.gmra.mrb[0].mxu0 %v2141
      %v2340 = vpop.f32.mrb[0].mxu0
      %v2341 = vadd.f32 0.0, %v2340
      %v2342 = vpop.f32.mrb[0].mxu0
      %2343 = vmatprep.mubr.f32.mxu0 0.0
      %2344 = vmatmul.mubr.f32.gmra.mrb[0].mxu0 %v2144
      %v2345 = vpop.f32.mrb[0].mxu0
      %v2346 = vadd.f32 0.0, %v2345
      %v2347 = vpop.f32.mrb[0].mxu0
      %2348 = vmatprep.mubr.f32.mxu0 0.0
      %2349 = vmatmul.mubr.f32.gmra.mrb[0].mxu0 %v2147
      %v2350 = vpop.f32.mrb[0].mxu0
      %v2351 = vadd.f32 0.0, %v2350
      %v2352 = vpop.f32.mrb[0].mxu0
      %2353 = vmatprep.mubr.f32.mxu0 0.0
      %2354 = vmatmul.mubr.f32.gmra.mrb[0].mxu0 %v2150
      %v2355 = vpop.f32.mrb[0].mxu0
      %v2356 = vadd.f32 0.0, %v2355
      %v2357 = vpop.f32.mrb[0].mxu0
      %2358 = vmatprep.mubr.f32.mxu0 0.0
      %2359 = vmatmul.mubr.f32.gmra.mrb[0].mxu0 %v2153
      %v2360 = vpop.f32.mrb[0].mxu0
      %v2361 = vadd.f32 0.0, %v2360
      %v2362 = vpop.f32.mrb[0].mxu0
      %2363 = vmatprep.mubr.f32.mxu0 0.0
      %2364 = vmatmul.mubr.f32.gmra.mrb[0].mxu0 %v2156
      %v2365 = vpop.f32.mrb[0].mxu0
      %v2366 = vadd.f32 0.0, %v2365
      %v2367 = vpop.f32.mrb[0].mxu0
      %2368 = vmatprep.mubr.f32.mxu0 0.0
      %2369 = vmatmul.mubr.f32.gmra.mrb[0].mxu0 %v2159
      %v2370 = vpop.f32.mrb[0].mxu0
      %v2371 = vadd.f32 0.0, %v2370
      %v2372 = vpop.f32.mrb[0].mxu0
      %2373 = vmatprep.mubr.f32.mxu0 0.0
      %2374 = vmatmul.mubr.f32.gmra.mrb[0].mxu0 %v2162
      %v2375 = vpop.f32.mrb[0].mxu0
      %v2376 = vadd.f32 0.0, %v2375
      %v2377 = vpop.f32.mrb[0].mxu0
      %2378 = vmatprep.mubr.f32.mxu0 0.0
      %2379 = vmatmul.mubr.f32.gmra.mrb[0].mxu0 %v2165
      %v2380 = vpop.f32.mrb[0].mxu0
      %v2381 = vadd.f32 0.0, %v2380
      %v2382 = vpop.f32.mrb[0].mxu0
      %2383 = vmatprep.mubr.f32.mxu0 0.0
      %2384 = vmatmul.mubr.f32.gmra.mrb[0].mxu0 %v2168
      %v2385 = vpop.f32.mrb[0].mxu0
      %v2386 = vadd.f32 0.0, %v2385
      %v2387 = vpop.f32.mrb[0].mxu0
      %2388 = vmatprep.mubr.f32.mxu0 0.0
      %2389 = vmatmul.mubr.f32.gmra.mrb[0].mxu0 %v2171
      %v2390 = vpop.f32.mrb[0].mxu0
      %v2391 = vadd.f32 0.0, %v2390
      %v2392 = vpop.f32.mrb[0].mxu0
      %2393 = vmatprep.mubr.f32.mxu0 0.0
      %2394 = vmatmul.mubr.f32.gmra.mrb[0].mxu0 %v2174
      %v2395 = vpop.f32.mrb[0].mxu0
      %v2396 = vadd.f32 0.0, %v2395
      %v2397 = vpop.f32.mrb[0].mxu0
      %2398 = vmatprep.mubr.f32.mxu0 0.0
      %2399 = vmatmul.mubr.f32.gmra.mrb[0].mxu0 %v2177
      %v2400 = vpop.f32.mrb[0].mxu0
      %v2401 = vadd.f32 0.0, %v2400
      %v2402 = vpop.f32.mrb[0].mxu0
      %2403 = vdwg.mxu0
      %v2404 = vadd.f32 %v2016, %v2246
      %v2405 = vadd.f32 %v2017, %v2251
      %v2406 = vadd.f32 %v2018, %v2256
      %v2407 = vadd.f32 %v2019, %v2261
      %v2408 = vadd.f32 %v2020, %v2266
      %v2409 = vadd.f32 %v2021, %v2271
      %v2410 = vadd.f32 %v2022, %v2276
      %v2411 = vadd.f32 %v2023, %v2281
      %v2412 = vadd.f32 %v2024, %v2286
      %v2413 = vadd.f32 %v2025, %v2291
      %v2414 = vadd.f32 %v2026, %v2296
      %v2415 = vadd.f32 %v2027, %v2301
      %v2416 = vadd.f32 %v2028, %v2306
      %v2417 = vadd.f32 %v2029, %v2311
      %v2418 = vadd.f32 %v2030, %v2316
      %v2419 = vadd.f32 %v2031, %v2321
      %v2420 = vadd.f32 %v2032, %v2326
      %v2421 = vadd.f32 %v2033, %v2331
      %v2422 = vadd.f32 %v2034, %v2336
      %v2423 = vadd.f32 %v2035, %v2341
      %v2424 = vadd.f32 %v2036, %v2346
      %v2425 = vadd.f32 %v2037, %v2351
      %v2426 = vadd.f32 %v2038, %v2356
      %v2427 = vadd.f32 %v2039, %v2361
      %v2428 = vadd.f32 %v2040, %v2366
      %v2429 = vadd.f32 %v2041, %v2371
      %v2430 = vadd.f32 %v2042, %v2376
      %v2431 = vadd.f32 %v2043, %v2381
      %v2432 = vadd.f32 %v2044, %v2386
      %v2433 = vadd.f32 %v2045, %v2391
      %v2434 = vadd.f32 %v2046, %v2396
      %v2435 = vadd.f32 %v2047, %v2401
      %s2436 = scalar_lea.vmem %s165, 48
      %v2437 = vld [vmem:[%s2436] sm:$0xff]
      %v2438 = vld [vmem:[%s2436 + $0x8] sm:$0xff]
      %v2439 = vld [vmem:[%s2436 + $0x18] sm:$0xff]
      %v2440 = vld [vmem:[%s2436 + $0x20] sm:$0xff]
      %v2441 = vld [vmem:[%s2436 + $0x30] sm:$0xff]
      %v2442 = vld [vmem:[%s2436 + $0x38] sm:$0xff]
      %v2443 = vld [vmem:[%s2436 + $0x48] sm:$0xff]
      %v2444 = vld [vmem:[%s2436 + $0x50] sm:$0xff]
      %v2445 = vld [vmem:[%s2436 + $0x60] sm:$0xff]
      %v2446 = vld [vmem:[%s2436 + $0x68] sm:$0xff]
      %v2447 = vld [vmem:[%s2436 + $0x78] sm:$0xff]
      %v2448 = vld [vmem:[%s2436 + $0x80] sm:$0xff]
      %v2449 = vld [vmem:[%s2436 + $0x90] sm:$0xff]
      %v2450 = vld [vmem:[%s2436 + $0x98] sm:$0xff]
      %v2451 = vld [vmem:[%s2436 + $0xa8] sm:$0xff]
      %v2452 = vld [vmem:[%s2436 + $0xb0] sm:$0xff]
      %v2453 = vld [vmem:[%s2436 + $0xc0] sm:$0xff]
      %v2454 = vld [vmem:[%s2436 + $0xc8] sm:$0xff]
      %v2455 = vld [vmem:[%s2436 + $0xd8] sm:$0xff]
      %v2456 = vld [vmem:[%s2436 + $0xe0] sm:$0xff]
      %v2457 = vld [vmem:[%s2436 + $0xf0] sm:$0xff]
      %v2458 = vld [vmem:[%s2436 + $0xf8] sm:$0xff]
      %v2459 = vld [vmem:[%s2436 + $0x108] sm:$0xff]
      %v2460 = vld [vmem:[%s2436 + $0x110] sm:$0xff]
      %v2461 = vld [vmem:[%s2436 + $0x120] sm:$0xff]
      %v2462 = vld [vmem:[%s2436 + $0x128] sm:$0xff]
      %v2463 = vld [vmem:[%s2436 + $0x138] sm:$0xff]
      %v2464 = vld [vmem:[%s2436 + $0x140] sm:$0xff]
      %v2465 = vld [vmem:[%s2436 + $0x150] sm:$0xff]
      %v2466 = vld [vmem:[%s2436 + $0x158] sm:$0xff]
      %v2467 = vld [vmem:[%s2436 + $0x168] sm:$0xff]
      %v2468 = vld [vmem:[%s2436 + $0x170] sm:$0xff]
      %s2469 = scalar_lea.vmem %s1, 96
      %v2470 = vld [vmem:[%s2469] sm:$0xff]
      %v2471 = vld [vmem:[%s2469 + $0x8] sm:$0xff]
      %v2473 = vsel %vm240, %v2437, 0
      %v2476 = vsel %vm240, %v2438, 0
      %v2479 = vsel %vm240, %v2439, 0
      %v2482 = vsel %vm240, %v2440, 0
      %v2485 = vsel %vm240, %v2441, 0
      %v2488 = vsel %vm240, %v2442, 0
      %v2491 = vsel %vm240, %v2443, 0
      %v2494 = vsel %vm240, %v2444, 0
      %v2497 = vsel %vm240, %v2445, 0
      %v2500 = vsel %vm240, %v2446, 0
      %v2503 = vsel %vm240, %v2447, 0
      %v2506 = vsel %vm240, %v2448, 0
      %v2509 = vsel %vm240, %v2449, 0
      %v2512 = vsel %vm240, %v2450, 0
      %v2515 = vsel %vm240, %v2451, 0
      %v2518 = vsel %vm240, %v2452, 0
      %v2521 = vsel %vm240, %v2453, 0
      %v2524 = vsel %vm240, %v2454, 0
      %v2527 = vsel %vm240, %v2455, 0
      %v2530 = vsel %vm240, %v2456, 0
      %v2533 = vsel %vm240, %v2457, 0
      %v2536 = vsel %vm240, %v2458, 0
      %v2539 = vsel %vm240, %v2459, 0
      %v2542 = vsel %vm240, %v2460, 0
      %v2545 = vsel %vm240, %v2461, 0
      %v2548 = vsel %vm240, %v2462, 0
      %v2551 = vsel %vm240, %v2463, 0
      %v2554 = vsel %vm240, %v2464, 0
      %v2557 = vsel %vm240, %v2465, 0
      %v2560 = vsel %vm240, %v2466, 0
      %v2563 = vsel %vm240, %v2467, 0
      %v2566 = vsel %vm240, %v2468, 0
      %2568 = vmatprep.subr.mxu0 0.0
      %2569 = vmatpush1.msra.mxu0 %v2470
      %2570 = vmatprep.subr.mxu0 0.0
      %2571 = vmatpush1.msra.mxu0 %v2471
      %2572 = vmatprep.subr.mxu0 0.0
      %2573 = vmatpush1.msra.mxu0 0.0
      %2574 = vmatprep.subr.mxu0 0.0
      %2575 = vmatpush1.msra.mxu0 0.0
      %2576 = vmatprep.subr.mxu0 0.0
      %2577 = vmatpush1.msra.mxu0 0.0
      %2578 = vmatprep.subr.mxu0 0.0
      %2579 = vmatpush1.msra.mxu0 0.0
      %2580 = vmatprep.subr.mxu0 0.0
      %2581 = vmatpush1.msra.mxu0 0.0
      %2582 = vmatprep.subr.mxu0 0.0
      %2583 = vmatpush1.msra.mxu0 0.0
      %2584 = vmatprep.subr.mxu0 0.0
      %2585 = vmatpush1.msra.mxu0 0.0
      %2586 = vmatprep.subr.mxu0 0.0
      %2587 = vmatpush1.msra.mxu0 0.0
      %2588 = vmatprep.subr.mxu0 0.0
      %2589 = vmatpush1.msra.mxu0 0.0
      %2590 = vmatprep.subr.mxu0 0.0
      %2591 = vmatpush1.msra.mxu0 0.0
      %2592 = vmatprep.subr.mxu0 0.0
      %2593 = vmatpush1.msra.mxu0 0.0
      %2594 = vmatprep.subr.mxu0 0.0
      %2595 = vmatpush1.msra.mxu0 0.0
      %2596 = vmatprep.subr.mxu0 0.0
      %2597 = vmatpush1.msra.mxu0 0.0
      %2598 = vmatprep.subr.mxu0 0.0
      %2599 = vmatpush1.msra.mxu0 0.0
      %2600 = vmatprep.subr.mxu0 0.0
      %2601 = vmatpush1.msra.mxu0 0.0
      %2602 = vmatprep.subr.mxu0 0.0
      %2603 = vmatpush1.msra.mxu0 0.0
      %2604 = vmatprep.subr.mxu0 0.0
      %2605 = vmatpush1.msra.mxu0 0.0
      %2606 = vmatprep.subr.mxu0 0.0
      %2607 = vmatpush1.msra.mxu0 0.0
      %2608 = vmatprep.subr.mxu0 0.0
      %2609 = vmatpush1.msra.mxu0 0.0
      %2610 = vmatprep.subr.mxu0 0.0
      %2611 = vmatpush1.msra.mxu0 0.0
      %2612 = vmatprep.subr.mxu0 0.0
      %2613 = vmatpush1.msra.mxu0 0.0
      %2614 = vmatprep.subr.mxu0 0.0
      %2615 = vmatpush1.msra.mxu0 0.0
      %2616 = vmatprep.subr.mxu0 0.0
      %2617 = vmatpush1.msra.mxu0 0.0
      %2618 = vmatprep.subr.mxu0 0.0
      %2619 = vmatpush1.msra.mxu0 0.0
      %2620 = vmatprep.subr.mxu0 0.0
      %2621 = vmatpush1.msra.mxu0 0.0
      %2622 = vmatprep.subr.mxu0 0.0
      %2623 = vmatpush1.msra.mxu0 0.0
      %2624 = vmatprep.subr.mxu0 0.0
      %2625 = vmatpush1.msra.mxu0 0.0
      %2626 = vmatprep.subr.mxu0 0.0
      %2627 = vmatpush1.msra.mxu0 0.0
      %2628 = vmatprep.subr.mxu0 0.0
      %2629 = vmatpush1.msra.mxu0 0.0
      %2630 = vmatprep.subr.mxu0 0.0
      %2631 = vmatpush1.msra.mxu0 0.0
      %2632 = vmatprep.mubr.f32.mxu0 0.0
      %2633 = vmatmul.mubr.f32.gmra.mrb[0].mxu0 %v2473
      %v2634 = vpop.f32.mrb[0].mxu0
      %v2635 = vadd.f32 0.0, %v2634
      %v2636 = vpop.f32.mrb[0].mxu0
      %2637 = vmatprep.mubr.f32.mxu0 0.0
      %2638 = vmatmul.mubr.f32.gmra.mrb[0].mxu0 %v2476
      %v2639 = vpop.f32.mrb[0].mxu0
      %v2640 = vadd.f32 0.0, %v2639
      %v2641 = vpop.f32.mrb[0].mxu0
      %2642 = vmatprep.mubr.f32.mxu0 0.0
      %2643 = vmatmul.mubr.f32.gmra.mrb[0].mxu0 %v2479
      %v2644 = vpop.f32.mrb[0].mxu0
      %v2645 = vadd.f32 0.0, %v2644
      %v2646 = vpop.f32.mrb[0].mxu0
      %2647 = vmatprep.mubr.f32.mxu0 0.0
      %2648 = vmatmul.mubr.f32.gmra.mrb[0].mxu0 %v2482
      %v2649 = vpop.f32.mrb[0].mxu0
      %v2650 = vadd.f32 0.0, %v2649
      %v2651 = vpop.f32.mrb[0].mxu0
      %2652 = vmatprep.mubr.f32.mxu0 0.0
      %2653 = vmatmul.mubr.f32.gmra.mrb[0].mxu0 %v2485
      %v2654 = vpop.f32.mrb[0].mxu0
      %v2655 = vadd.f32 0.0, %v2654
      %v2656 = vpop.f32.mrb[0].mxu0
      %2657 = vmatprep.mubr.f32.mxu0 0.0
      %2658 = vmatmul.mubr.f32.gmra.mrb[0].mxu0 %v2488
      %v2659 = vpop.f32.mrb[0].mxu0
      %v2660 = vadd.f32 0.0, %v2659
      %v2661 = vpop.f32.mrb[0].mxu0
      %2662 = vmatprep.mubr.f32.mxu0 0.0
      %2663 = vmatmul.mubr.f32.gmra.mrb[0].mxu0 %v2491
      %v2664 = vpop.f32.mrb[0].mxu0
      %v2665 = vadd.f32 0.0, %v2664
      %v2666 = vpop.f32.mrb[0].mxu0
      %2667 = vmatprep.mubr.f32.mxu0 0.0
      %2668 = vmatmul.mubr.f32.gmra.mrb[0].mxu0 %v2494
      %v2669 = vpop.f32.mrb[0].mxu0
      %v2670 = vadd.f32 0.0, %v2669
      %v2671 = vpop.f32.mrb[0].mxu0
      %2672 = vmatprep.mubr.f32.mxu0 0.0
      %2673 = vmatmul.mubr.f32.gmra.mrb[0].mxu0 %v2497
      %v2674 = vpop.f32.mrb[0].mxu0
      %v2675 = vadd.f32 0.0, %v2674
      %v2676 = vpop.f32.mrb[0].mxu0
      %2677 = vmatprep.mubr.f32.mxu0 0.0
      %2678 = vmatmul.mubr.f32.gmra.mrb[0].mxu0 %v2500
      %v2679 = vpop.f32.mrb[0].mxu0
      %v2680 = vadd.f32 0.0, %v2679
      %v2681 = vpop.f32.mrb[0].mxu0
      %2682 = vmatprep.mubr.f32.mxu0 0.0
      %2683 = vmatmul.mubr.f32.gmra.mrb[0].mxu0 %v2503
      %v2684 = vpop.f32.mrb[0].mxu0
      %v2685 = vadd.f32 0.0, %v2684
      %v2686 = vpop.f32.mrb[0].mxu0
      %2687 = vmatprep.mubr.f32.mxu0 0.0
      %2688 = vmatmul.mubr.f32.gmra.mrb[0].mxu0 %v2506
      %v2689 = vpop.f32.mrb[0].mxu0
      %v2690 = vadd.f32 0.0, %v2689
      %v2691 = vpop.f32.mrb[0].mxu0
      %2692 = vmatprep.mubr.f32.mxu0 0.0
      %2693 = vmatmul.mubr.f32.gmra.mrb[0].mxu0 %v2509
      %v2694 = vpop.f32.mrb[0].mxu0
      %v2695 = vadd.f32 0.0, %v2694
      %v2696 = vpop.f32.mrb[0].mxu0
      %2697 = vmatprep.mubr.f32.mxu0 0.0
      %2698 = vmatmul.mubr.f32.gmra.mrb[0].mxu0 %v2512
      %v2699 = vpop.f32.mrb[0].mxu0
      %v2700 = vadd.f32 0.0, %v2699
      %v2701 = vpop.f32.mrb[0].mxu0
      %2702 = vmatprep.mubr.f32.mxu0 0.0
      %2703 = vmatmul.mubr.f32.gmra.mrb[0].mxu0 %v2515
      %v2704 = vpop.f32.mrb[0].mxu0
      %v2705 = vadd.f32 0.0, %v2704
      %v2706 = vpop.f32.mrb[0].mxu0
      %2707 = vmatprep.mubr.f32.mxu0 0.0
      %2708 = vmatmul.mubr.f32.gmra.mrb[0].mxu0 %v2518
      %v2709 = vpop.f32.mrb[0].mxu0
      %v2710 = vadd.f32 0.0, %v2709
      %v2711 = vpop.f32.mrb[0].mxu0
      %2712 = vmatprep.mubr.f32.mxu0 0.0
      %2713 = vmatmul.mubr.f32.gmra.mrb[0].mxu0 %v2521
      %v2714 = vpop.f32.mrb[0].mxu0
      %v2715 = vadd.f32 0.0, %v2714
      %v2716 = vpop.f32.mrb[0].mxu0
      %2717 = vmatprep.mubr.f32.mxu0 0.0
      %2718 = vmatmul.mubr.f32.gmra.mrb[0].mxu0 %v2524
      %v2719 = vpop.f32.mrb[0].mxu0
      %v2720 = vadd.f32 0.0, %v2719
      %v2721 = vpop.f32.mrb[0].mxu0
      %2722 = vmatprep.mubr.f32.mxu0 0.0
      %2723 = vmatmul.mubr.f32.gmra.mrb[0].mxu0 %v2527
      %v2724 = vpop.f32.mrb[0].mxu0
      %v2725 = vadd.f32 0.0, %v2724
      %v2726 = vpop.f32.mrb[0].mxu0
      %2727 = vmatprep.mubr.f32.mxu0 0.0
      %2728 = vmatmul.mubr.f32.gmra.mrb[0].mxu0 %v2530
      %v2729 = vpop.f32.mrb[0].mxu0
      %v2730 = vadd.f32 0.0, %v2729
      %v2731 = vpop.f32.mrb[0].mxu0
      %2732 = vmatprep.mubr.f32.mxu0 0.0
      %2733 = vmatmul.mubr.f32.gmra.mrb[0].mxu0 %v2533
      %v2734 = vpop.f32.mrb[0].mxu0
      %v2735 = vadd.f32 0.0, %v2734
      %v2736 = vpop.f32.mrb[0].mxu0
      %2737 = vmatprep.mubr.f32.mxu0 0.0
      %2738 = vmatmul.mubr.f32.gmra.mrb[0].mxu0 %v2536
      %v2739 = vpop.f32.mrb[0].mxu0
      %v2740 = vadd.f32 0.0, %v2739
      %v2741 = vpop.f32.mrb[0].mxu0
      %2742 = vmatprep.mubr.f32.mxu0 0.0
      %2743 = vmatmul.mubr.f32.gmra.mrb[0].mxu0 %v2539
      %v2744 = vpop.f32.mrb[0].mxu0
      %v2745 = vadd.f32 0.0, %v2744
      %v2746 = vpop.f32.mrb[0].mxu0
      %2747 = vmatprep.mubr.f32.mxu0 0.0
      %2748 = vmatmul.mubr.f32.gmra.mrb[0].mxu0 %v2542
      %v2749 = vpop.f32.mrb[0].mxu0
      %v2750 = vadd.f32 0.0, %v2749
      %v2751 = vpop.f32.mrb[0].mxu0
      %2752 = vmatprep.mubr.f32.mxu0 0.0
      %2753 = vmatmul.mubr.f32.gmra.mrb[0].mxu0 %v2545
      %v2754 = vpop.f32.mrb[0].mxu0
      %v2755 = vadd.f32 0.0, %v2754
      %v2756 = vpop.f32.mrb[0].mxu0
      %2757 = vmatprep.mubr.f32.mxu0 0.0
      %2758 = vmatmul.mubr.f32.gmra.mrb[0].mxu0 %v2548
      %v2759 = vpop.f32.mrb[0].mxu0
      %v2760 = vadd.f32 0.0, %v2759
      %v2761 = vpop.f32.mrb[0].mxu0
      %2762 = vmatprep.mubr.f32.mxu0 0.0
      %2763 = vmatmul.mubr.f32.gmra.mrb[0].mxu0 %v2551
      %v2764 = vpop.f32.mrb[0].mxu0
      %v2765 = vadd.f32 0.0, %v2764
      %v2766 = vpop.f32.mrb[0].mxu0
      %2767 = vmatprep.mubr.f32.mxu0 0.0
      %2768 = vmatmul.mubr.f32.gmra.mrb[0].mxu0 %v2554
      %v2769 = vpop.f32.mrb[0].mxu0
      %v2770 = vadd.f32 0.0, %v2769
      %v2771 = vpop.f32.mrb[0].mxu0
      %2772 = vmatprep.mubr.f32.mxu0 0.0
      %2773 = vmatmul.mubr.f32.gmra.mrb[0].mxu0 %v2557
      %v2774 = vpop.f32.mrb[0].mxu0
      %v2775 = vadd.f32 0.0, %v2774
      %v2776 = vpop.f32.mrb[0].mxu0
      %2777 = vmatprep.mubr.f32.mxu0 0.0
      %2778 = vmatmul.mubr.f32.gmra.mrb[0].mxu0 %v2560
      %v2779 = vpop.f32.mrb[0].mxu0
      %v2780 = vadd.f32 0.0, %v2779
      %v2781 = vpop.f32.mrb[0].mxu0
      %2782 = vmatprep.mubr.f32.mxu0 0.0
      %2783 = vmatmul.mubr.f32.gmra.mrb[0].mxu0 %v2563
      %v2784 = vpop.f32.mrb[0].mxu0
      %v2785 = vadd.f32 0.0, %v2784
      %v2786 = vpop.f32.mrb[0].mxu0
      %2787 = vmatprep.mubr.f32.mxu0 0.0
      %2788 = vmatmul.mubr.f32.gmra.mrb[0].mxu0 %v2566
      %v2789 = vpop.f32.mrb[0].mxu0
      %v2790 = vadd.f32 0.0, %v2789
      %v2791 = vpop.f32.mrb[0].mxu0
      %2792 = vdwg.mxu0
      %v2793 = vadd.f32 %v2404, %v2635
      %v2794 = vadd.f32 %v2405, %v2640
      %v2795 = vadd.f32 %v2406, %v2645
      %v2796 = vadd.f32 %v2407, %v2650
      %v2797 = vadd.f32 %v2408, %v2655
      %v2798 = vadd.f32 %v2409, %v2660
      %v2799 = vadd.f32 %v2410, %v2665
      %v2800 = vadd.f32 %v2411, %v2670
      %v2801 = vadd.f32 %v2412, %v2675
      %v2802 = vadd.f32 %v2413, %v2680
      %v2803 = vadd.f32 %v2414, %v2685
      %v2804 = vadd.f32 %v2415, %v2690
      %v2805 = vadd.f32 %v2416, %v2695
      %v2806 = vadd.f32 %v2417, %v2700
      %v2807 = vadd.f32 %v2418, %v2705
      %v2808 = vadd.f32 %v2419, %v2710
      %v2809 = vadd.f32 %v2420, %v2715
      %v2810 = vadd.f32 %v2421, %v2720
      %v2811 = vadd.f32 %v2422, %v2725
      %v2812 = vadd.f32 %v2423, %v2730
      %v2813 = vadd.f32 %v2424, %v2735
      %v2814 = vadd.f32 %v2425, %v2740
      %v2815 = vadd.f32 %v2426, %v2745
      %v2816 = vadd.f32 %v2427, %v2750
      %v2817 = vadd.f32 %v2428, %v2755
      %v2818 = vadd.f32 %v2429, %v2760
      %v2819 = vadd.f32 %v2430, %v2765
      %v2820 = vadd.f32 %v2431, %v2770
      %v2821 = vadd.f32 %v2432, %v2775
      %v2822 = vadd.f32 %v2433, %v2780
      %v2823 = vadd.f32 %v2434, %v2785
      %v2824 = vadd.f32 %v2435, %v2790
      %v2825 = vld [vmem:[%s2436 + $0x1] sm:$0xff]
      %v2826 = vld [vmem:[%s2436 + $0x9] sm:$0xff]
      %v2827 = vld [vmem:[%s2436 + $0x19] sm:$0xff]
      %v2828 = vld [vmem:[%s2436 + $0x21] sm:$0xff]
      %v2829 = vld [vmem:[%s2436 + $0x31] sm:$0xff]
      %v2830 = vld [vmem:[%s2436 + $0x39] sm:$0xff]
      %v2831 = vld [vmem:[%s2436 + $0x49] sm:$0xff]
      %v2832 = vld [vmem:[%s2436 + $0x51] sm:$0xff]
      %v2833 = vld [vmem:[%s2436 + $0x61] sm:$0xff]
      %v2834 = vld [vmem:[%s2436 + $0x69] sm:$0xff]
      %v2835 = vld [vmem:[%s2436 + $0x79] sm:$0xff]
      %v2836 = vld [vmem:[%s2436 + $0x81] sm:$0xff]
      %v2837 = vld [vmem:[%s2436 + $0x91] sm:$0xff]
      %v2838 = vld [vmem:[%s2436 + $0x99] sm:$0xff]
      %v2839 = vld [vmem:[%s2436 + $0xa9] sm:$0xff]
      %v2840 = vld [vmem:[%s2436 + $0xb1] sm:$0xff]
      %v2841 = vld [vmem:[%s2436 + $0xc1] sm:$0xff]
      %v2842 = vld [vmem:[%s2436 + $0xc9] sm:$0xff]
      %v2843 = vld [vmem:[%s2436 + $0xd9] sm:$0xff]
      %v2844 = vld [vmem:[%s2436 + $0xe1] sm:$0xff]
      %v2845 = vld [vmem:[%s2436 + $0xf1] sm:$0xff]
      %v2846 = vld [vmem:[%s2436 + $0xf9] sm:$0xff]
      %v2847 = vld [vmem:[%s2436 + $0x109] sm:$0xff]
      %v2848 = vld [vmem:[%s2436 + $0x111] sm:$0xff]
      %v2849 = vld [vmem:[%s2436 + $0x121] sm:$0xff]
      %v2850 = vld [vmem:[%s2436 + $0x129] sm:$0xff]
      %v2851 = vld [vmem:[%s2436 + $0x139] sm:$0xff]
      %v2852 = vld [vmem:[%s2436 + $0x141] sm:$0xff]
      %v2853 = vld [vmem:[%s2436 + $0x151] sm:$0xff]
      %v2854 = vld [vmem:[%s2436 + $0x159] sm:$0xff]
      %v2855 = vld [vmem:[%s2436 + $0x169] sm:$0xff]
      %v2856 = vld [vmem:[%s2436 + $0x171] sm:$0xff]
      %s2857 = scalar_lea.vmem %s1, 112
      %v2858 = vld [vmem:[%s2857] sm:$0xff]
      %v2859 = vld [vmem:[%s2857 + $0x8] sm:$0xff]
      %v2861 = vsel %vm240, %v2825, 0
      %v2864 = vsel %vm240, %v2826, 0
      %v2867 = vsel %vm240, %v2827, 0
      %v2870 = vsel %vm240, %v2828, 0
      %v2873 = vsel %vm240, %v2829, 0
      %v2876 = vsel %vm240, %v2830, 0
      %v2879 = vsel %vm240, %v2831, 0
      %v2882 = vsel %vm240, %v2832, 0
      %v2885 = vsel %vm240, %v2833, 0
      %v2888 = vsel %vm240, %v2834, 0
      %v2891 = vsel %vm240, %v2835, 0
      %v2894 = vsel %vm240, %v2836, 0
      %v2897 = vsel %vm240, %v2837, 0
      %v2900 = vsel %vm240, %v2838, 0
      %v2903 = vsel %vm240, %v2839, 0
      %v2906 = vsel %vm240, %v2840, 0
      %v2909 = vsel %vm240, %v2841, 0
      %v2912 = vsel %vm240, %v2842, 0
      %v2915 = vsel %vm240, %v2843, 0
      %v2918 = vsel %vm240, %v2844, 0
      %v2921 = vsel %vm240, %v2845, 0
      %v2924 = vsel %vm240, %v2846, 0
      %v2927 = vsel %vm240, %v2847, 0
      %v2930 = vsel %vm240, %v2848, 0
      %v2933 = vsel %vm240, %v2849, 0
      %v2936 = vsel %vm240, %v2850, 0
      %v2939 = vsel %vm240, %v2851, 0
      %v2942 = vsel %vm240, %v2852, 0
      %v2945 = vsel %vm240, %v2853, 0
      %v2948 = vsel %vm240, %v2854, 0
      %v2951 = vsel %vm240, %v2855, 0
      %v2954 = vsel %vm240, %v2856, 0
      %2956 = vmatprep.subr.mxu0 0.0
      %2957 = vmatpush1.msra.mxu0 %v2858
      %2958 = vmatprep.subr.mxu0 0.0
      %2959 = vmatpush1.msra.mxu0 %v2859
      %2960 = vmatprep.subr.mxu0 0.0
      %2961 = vmatpush1.msra.mxu0 0.0
      %2962 = vmatprep.subr.mxu0 0.0
      %2963 = vmatpush1.msra.mxu0 0.0
      %2964 = vmatprep.subr.mxu0 0.0
      %2965 = vmatpush1.msra.mxu0 0.0
      %2966 = vmatprep.subr.mxu0 0.0
      %2967 = vmatpush1.msra.mxu0 0.0
      %2968 = vmatprep.subr.mxu0 0.0
      %2969 = vmatpush1.msra.mxu0 0.0
      %2970 = vmatprep.subr.mxu0 0.0
      %2971 = vmatpush1.msra.mxu0 0.0
      %2972 = vmatprep.subr.mxu0 0.0
      %2973 = vmatpush1.msra.mxu0 0.0
      %2974 = vmatprep.subr.mxu0 0.0
      %2975 = vmatpush1.msra.mxu0 0.0
      %2976 = vmatprep.subr.mxu0 0.0
      %2977 = vmatpush1.msra.mxu0 0.0
      %2978 = vmatprep.subr.mxu0 0.0
      %2979 = vmatpush1.msra.mxu0 0.0
      %2980 = vmatprep.subr.mxu0 0.0
      %2981 = vmatpush1.msra.mxu0 0.0
      %2982 = vmatprep.subr.mxu0 0.0
      %2983 = vmatpush1.msra.mxu0 0.0
      %2984 = vmatprep.subr.mxu0 0.0
      %2985 = vmatpush1.msra.mxu0 0.0
      %2986 = vmatprep.subr.mxu0 0.0
      %2987 = vmatpush1.msra.mxu0 0.0
      %2988 = vmatprep.subr.mxu0 0.0
      %2989 = vmatpush1.msra.mxu0 0.0
      %2990 = vmatprep.subr.mxu0 0.0
      %2991 = vmatpush1.msra.mxu0 0.0
      %2992 = vmatprep.subr.mxu0 0.0
      %2993 = vmatpush1.msra.mxu0 0.0
      %2994 = vmatprep.subr.mxu0 0.0
      %2995 = vmatpush1.msra.mxu0 0.0
      %2996 = vmatprep.subr.mxu0 0.0
      %2997 = vmatpush1.msra.mxu0 0.0
      %2998 = vmatprep.subr.mxu0 0.0
      %2999 = vmatpush1.msra.mxu0 0.0
      %3000 = vmatprep.subr.mxu0 0.0
      %3001 = vmatpush1.msra.mxu0 0.0
      %3002 = vmatprep.subr.mxu0 0.0
      %3003 = vmatpush1.msra.mxu0 0.0
      %3004 = vmatprep.subr.mxu0 0.0
      %3005 = vmatpush1.msra.mxu0 0.0
      %3006 = vmatprep.subr.mxu0 0.0
      %3007 = vmatpush1.msra.mxu0 0.0
      %3008 = vmatprep.subr.mxu0 0.0
      %3009 = vmatpush1.msra.mxu0 0.0
      %3010 = vmatprep.subr.mxu0 0.0
      %3011 = vmatpush1.msra.mxu0 0.0
      %3012 = vmatprep.subr.mxu0 0.0
      %3013 = vmatpush1.msra.mxu0 0.0
      %3014 = vmatprep.subr.mxu0 0.0
      %3015 = vmatpush1.msra.mxu0 0.0
      %3016 = vmatprep.subr.mxu0 0.0
      %3017 = vmatpush1.msra.mxu0 0.0
      %3018 = vmatprep.subr.mxu0 0.0
      %3019 = vmatpush1.msra.mxu0 0.0
      %3020 = vmatprep.mubr.f32.mxu0 0.0
      %3021 = vmatmul.mubr.f32.gmra.mrb[0].mxu0 %v2861
      %v3022 = vpop.f32.mrb[0].mxu0
      %v3023 = vadd.f32 0.0, %v3022
      %v3024 = vpop.f32.mrb[0].mxu0
      %3025 = vmatprep.mubr.f32.mxu0 0.0
      %3026 = vmatmul.mubr.f32.gmra.mrb[0].mxu0 %v2864
      %v3027 = vpop.f32.mrb[0].mxu0
      %v3028 = vadd.f32 0.0, %v3027
      %v3029 = vpop.f32.mrb[0].mxu0
      %3030 = vmatprep.mubr.f32.mxu0 0.0
      %3031 = vmatmul.mubr.f32.gmra.mrb[0].mxu0 %v2867
      %v3032 = vpop.f32.mrb[0].mxu0
      %v3033 = vadd.f32 0.0, %v3032
      %v3034 = vpop.f32.mrb[0].mxu0
      %3035 = vmatprep.mubr.f32.mxu0 0.0
      %3036 = vmatmul.mubr.f32.gmra.mrb[0].mxu0 %v2870
      %v3037 = vpop.f32.mrb[0].mxu0
      %v3038 = vadd.f32 0.0, %v3037
      %v3039 = vpop.f32.mrb[0].mxu0
      %3040 = vmatprep.mubr.f32.mxu0 0.0
      %3041 = vmatmul.mubr.f32.gmra.mrb[0].mxu0 %v2873
      %v3042 = vpop.f32.mrb[0].mxu0
      %v3043 = vadd.f32 0.0, %v3042
      %v3044 = vpop.f32.mrb[0].mxu0
      %3045 = vmatprep.mubr.f32.mxu0 0.0
      %3046 = vmatmul.mubr.f32.gmra.mrb[0].mxu0 %v2876
      %v3047 = vpop.f32.mrb[0].mxu0
      %v3048 = vadd.f32 0.0, %v3047
      %v3049 = vpop.f32.mrb[0].mxu0
      %3050 = vmatprep.mubr.f32.mxu0 0.0
      %3051 = vmatmul.mubr.f32.gmra.mrb[0].mxu0 %v2879
      %v3052 = vpop.f32.mrb[0].mxu0
      %v3053 = vadd.f32 0.0, %v3052
      %v3054 = vpop.f32.mrb[0].mxu0
      %3055 = vmatprep.mubr.f32.mxu0 0.0
      %3056 = vmatmul.mubr.f32.gmra.mrb[0].mxu0 %v2882
      %v3057 = vpop.f32.mrb[0].mxu0
      %v3058 = vadd.f32 0.0, %v3057
      %v3059 = vpop.f32.mrb[0].mxu0
      %3060 = vmatprep.mubr.f32.mxu0 0.0
      %3061 = vmatmul.mubr.f32.gmra.mrb[0].mxu0 %v2885
      %v3062 = vpop.f32.mrb[0].mxu0
      %v3063 = vadd.f32 0.0, %v3062
      %v3064 = vpop.f32.mrb[0].mxu0
      %3065 = vmatprep.mubr.f32.mxu0 0.0
      %3066 = vmatmul.mubr.f32.gmra.mrb[0].mxu0 %v2888
      %v3067 = vpop.f32.mrb[0].mxu0
      %v3068 = vadd.f32 0.0, %v3067
      %v3069 = vpop.f32.mrb[0].mxu0
      %3070 = vmatprep.mubr.f32.mxu0 0.0
      %3071 = vmatmul.mubr.f32.gmra.mrb[0].mxu0 %v2891
      %v3072 = vpop.f32.mrb[0].mxu0
      %v3073 = vadd.f32 0.0, %v3072
      %v3074 = vpop.f32.mrb[0].mxu0
      %3075 = vmatprep.mubr.f32.mxu0 0.0
      %3076 = vmatmul.mubr.f32.gmra.mrb[0].mxu0 %v2894
      %v3077 = vpop.f32.mrb[0].mxu0
      %v3078 = vadd.f32 0.0, %v3077
      %v3079 = vpop.f32.mrb[0].mxu0
      %3080 = vmatprep.mubr.f32.mxu0 0.0
      %3081 = vmatmul.mubr.f32.gmra.mrb[0].mxu0 %v2897
      %v3082 = vpop.f32.mrb[0].mxu0
      %v3083 = vadd.f32 0.0, %v3082
      %v3084 = vpop.f32.mrb[0].mxu0
      %3085 = vmatprep.mubr.f32.mxu0 0.0
      %3086 = vmatmul.mubr.f32.gmra.mrb[0].mxu0 %v2900
      %v3087 = vpop.f32.mrb[0].mxu0
      %v3088 = vadd.f32 0.0, %v3087
      %v3089 = vpop.f32.mrb[0].mxu0
      %3090 = vmatprep.mubr.f32.mxu0 0.0
      %3091 = vmatmul.mubr.f32.gmra.mrb[0].mxu0 %v2903
      %v3092 = vpop.f32.mrb[0].mxu0
      %v3093 = vadd.f32 0.0, %v3092
      %v3094 = vpop.f32.mrb[0].mxu0
      %3095 = vmatprep.mubr.f32.mxu0 0.0
      %3096 = vmatmul.mubr.f32.gmra.mrb[0].mxu0 %v2906
      %v3097 = vpop.f32.mrb[0].mxu0
      %v3098 = vadd.f32 0.0, %v3097
      %v3099 = vpop.f32.mrb[0].mxu0
      %3100 = vmatprep.mubr.f32.mxu0 0.0
      %3101 = vmatmul.mubr.f32.gmra.mrb[0].mxu0 %v2909
      %v3102 = vpop.f32.mrb[0].mxu0
      %v3103 = vadd.f32 0.0, %v3102
      %v3104 = vpop.f32.mrb[0].mxu0
      %3105 = vmatprep.mubr.f32.mxu0 0.0
      %3106 = vmatmul.mubr.f32.gmra.mrb[0].mxu0 %v2912
      %v3107 = vpop.f32.mrb[0].mxu0
      %v3108 = vadd.f32 0.0, %v3107
      %v3109 = vpop.f32.mrb[0].mxu0
      %3110 = vmatprep.mubr.f32.mxu0 0.0
      %3111 = vmatmul.mubr.f32.gmra.mrb[0].mxu0 %v2915
      %v3112 = vpop.f32.mrb[0].mxu0
      %v3113 = vadd.f32 0.0, %v3112
      %v3114 = vpop.f32.mrb[0].mxu0
      %3115 = vmatprep.mubr.f32.mxu0 0.0
      %3116 = vmatmul.mubr.f32.gmra.mrb[0].mxu0 %v2918
      %v3117 = vpop.f32.mrb[0].mxu0
      %v3118 = vadd.f32 0.0, %v3117
      %v3119 = vpop.f32.mrb[0].mxu0
      %3120 = vmatprep.mubr.f32.mxu0 0.0
      %3121 = vmatmul.mubr.f32.gmra.mrb[0].mxu0 %v2921
      %v3122 = vpop.f32.mrb[0].mxu0
      %v3123 = vadd.f32 0.0, %v3122
      %v3124 = vpop.f32.mrb[0].mxu0
      %3125 = vmatprep.mubr.f32.mxu0 0.0
      %3126 = vmatmul.mubr.f32.gmra.mrb[0].mxu0 %v2924
      %v3127 = vpop.f32.mrb[0].mxu0
      %v3128 = vadd.f32 0.0, %v3127
      %v3129 = vpop.f32.mrb[0].mxu0
      %3130 = vmatprep.mubr.f32.mxu0 0.0
      %3131 = vmatmul.mubr.f32.gmra.mrb[0].mxu0 %v2927
      %v3132 = vpop.f32.mrb[0].mxu0
      %v3133 = vadd.f32 0.0, %v3132
      %v3134 = vpop.f32.mrb[0].mxu0
      %3135 = vmatprep.mubr.f32.mxu0 0.0
      %3136 = vmatmul.mubr.f32.gmra.mrb[0].mxu0 %v2930
      %v3137 = vpop.f32.mrb[0].mxu0
      %v3138 = vadd.f32 0.0, %v3137
      %v3139 = vpop.f32.mrb[0].mxu0
      %3140 = vmatprep.mubr.f32.mxu0 0.0
      %3141 = vmatmul.mubr.f32.gmra.mrb[0].mxu0 %v2933
      %v3142 = vpop.f32.mrb[0].mxu0
      %v3143 = vadd.f32 0.0, %v3142
      %v3144 = vpop.f32.mrb[0].mxu0
      %3145 = vmatprep.mubr.f32.mxu0 0.0
      %3146 = vmatmul.mubr.f32.gmra.mrb[0].mxu0 %v2936
      %v3147 = vpop.f32.mrb[0].mxu0
      %v3148 = vadd.f32 0.0, %v3147
      %v3149 = vpop.f32.mrb[0].mxu0
      %3150 = vmatprep.mubr.f32.mxu0 0.0
      %3151 = vmatmul.mubr.f32.gmra.mrb[0].mxu0 %v2939
      %v3152 = vpop.f32.mrb[0].mxu0
      %v3153 = vadd.f32 0.0, %v3152
      %v3154 = vpop.f32.mrb[0].mxu0
      %3155 = vmatprep.mubr.f32.mxu0 0.0
      %3156 = vmatmul.mubr.f32.gmra.mrb[0].mxu0 %v2942
      %v3157 = vpop.f32.mrb[0].mxu0
      %v3158 = vadd.f32 0.0, %v3157
      %v3159 = vpop.f32.mrb[0].mxu0
      %3160 = vmatprep.mubr.f32.mxu0 0.0
      %3161 = vmatmul.mubr.f32.gmra.mrb[0].mxu0 %v2945
      %v3162 = vpop.f32.mrb[0].mxu0
      %v3163 = vadd.f32 0.0, %v3162
      %v3164 = vpop.f32.mrb[0].mxu0
      %3165 = vmatprep.mubr.f32.mxu0 0.0
      %3166 = vmatmul.mubr.f32.gmra.mrb[0].mxu0 %v2948
      %v3167 = vpop.f32.mrb[0].mxu0
      %v3168 = vadd.f32 0.0, %v3167
      %v3169 = vpop.f32.mrb[0].mxu0
      %3170 = vmatprep.mubr.f32.mxu0 0.0
      %3171 = vmatmul.mubr.f32.gmra.mrb[0].mxu0 %v2951
      %v3172 = vpop.f32.mrb[0].mxu0
      %v3173 = vadd.f32 0.0, %v3172
      %v3174 = vpop.f32.mrb[0].mxu0
      %3175 = vmatprep.mubr.f32.mxu0 0.0
      %3176 = vmatmul.mubr.f32.gmra.mrb[0].mxu0 %v2954
      %v3177 = vpop.f32.mrb[0].mxu0
      %v3178 = vadd.f32 0.0, %v3177
      %v3179 = vpop.f32.mrb[0].mxu0
      %3180 = vdwg.mxu0
      %v3181 = vadd.f32 %v2793, %v3023
      %v3182 = vadd.f32 %v2794, %v3028
      %v3183 = vadd.f32 %v2795, %v3033
      %v3184 = vadd.f32 %v2796, %v3038
      %v3185 = vadd.f32 %v2797, %v3043
      %v3186 = vadd.f32 %v2798, %v3048
      %v3187 = vadd.f32 %v2799, %v3053
      %v3188 = vadd.f32 %v2800, %v3058
      %v3189 = vadd.f32 %v2801, %v3063
      %v3190 = vadd.f32 %v2802, %v3068
      %v3191 = vadd.f32 %v2803, %v3073
      %v3192 = vadd.f32 %v2804, %v3078
      %v3193 = vadd.f32 %v2805, %v3083
      %v3194 = vadd.f32 %v2806, %v3088
      %v3195 = vadd.f32 %v2807, %v3093
      %v3196 = vadd.f32 %v2808, %v3098
      %v3197 = vadd.f32 %v2809, %v3103
      %v3198 = vadd.f32 %v2810, %v3108
      %v3199 = vadd.f32 %v2811, %v3113
      %v3200 = vadd.f32 %v2812, %v3118
      %v3201 = vadd.f32 %v2813, %v3123
      %v3202 = vadd.f32 %v2814, %v3128
      %v3203 = vadd.f32 %v2815, %v3133
      %v3204 = vadd.f32 %v2816, %v3138
      %v3205 = vadd.f32 %v2817, %v3143
      %v3206 = vadd.f32 %v2818, %v3148
      %v3207 = vadd.f32 %v2819, %v3153
      %v3208 = vadd.f32 %v2820, %v3158
      %v3209 = vadd.f32 %v2821, %v3163
      %v3210 = vadd.f32 %v2822, %v3168
      %v3211 = vadd.f32 %v2823, %v3173
      %v3212 = vadd.f32 %v2824, %v3178
      %v3213 = vld [vmem:[%s2436 + $0x2] sm:$0xff]
      %v3214 = vld [vmem:[%s2436 + $0xa] sm:$0xff]
      %v3215 = vld [vmem:[%s2436 + $0x1a] sm:$0xff]
      %v3216 = vld [vmem:[%s2436 + $0x22] sm:$0xff]
      %v3217 = vld [vmem:[%s2436 + $0x32] sm:$0xff]
      %v3218 = vld [vmem:[%s2436 + $0x3a] sm:$0xff]
      %v3219 = vld [vmem:[%s2436 + $0x4a] sm:$0xff]
      %v3220 = vld [vmem:[%s2436 + $0x52] sm:$0xff]
      %v3221 = vld [vmem:[%s2436 + $0x62] sm:$0xff]
      %v3222 = vld [vmem:[%s2436 + $0x6a] sm:$0xff]
      %v3223 = vld [vmem:[%s2436 + $0x7a] sm:$0xff]
      %v3224 = vld [vmem:[%s2436 + $0x82] sm:$0xff]
      %v3225 = vld [vmem:[%s2436 + $0x92] sm:$0xff]
      %v3226 = vld [vmem:[%s2436 + $0x9a] sm:$0xff]
      %v3227 = vld [vmem:[%s2436 + $0xaa] sm:$0xff]
      %v3228 = vld [vmem:[%s2436 + $0xb2] sm:$0xff]
      %v3229 = vld [vmem:[%s2436 + $0xc2] sm:$0xff]
      %v3230 = vld [vmem:[%s2436 + $0xca] sm:$0xff]
      %v3231 = vld [vmem:[%s2436 + $0xda] sm:$0xff]
      %v3232 = vld [vmem:[%s2436 + $0xe2] sm:$0xff]
      %v3233 = vld [vmem:[%s2436 + $0xf2] sm:$0xff]
      %v3234 = vld [vmem:[%s2436 + $0xfa] sm:$0xff]
      %v3235 = vld [vmem:[%s2436 + $0x10a] sm:$0xff]
      %v3236 = vld [vmem:[%s2436 + $0x112] sm:$0xff]
      %v3237 = vld [vmem:[%s2436 + $0x122] sm:$0xff]
      %v3238 = vld [vmem:[%s2436 + $0x12a] sm:$0xff]
      %v3239 = vld [vmem:[%s2436 + $0x13a] sm:$0xff]
      %v3240 = vld [vmem:[%s2436 + $0x142] sm:$0xff]
      %v3241 = vld [vmem:[%s2436 + $0x152] sm:$0xff]
      %v3242 = vld [vmem:[%s2436 + $0x15a] sm:$0xff]
      %v3243 = vld [vmem:[%s2436 + $0x16a] sm:$0xff]
      %v3244 = vld [vmem:[%s2436 + $0x172] sm:$0xff]
      %s3245 = scalar_lea.vmem %s1, 128
      %v3246 = vld [vmem:[%s3245] sm:$0xff]
      %v3247 = vld [vmem:[%s3245 + $0x8] sm:$0xff]
      %v3249 = vsel %vm240, %v3213, 0
      %v3252 = vsel %vm240, %v3214, 0
      %v3255 = vsel %vm240, %v3215, 0
      %v3258 = vsel %vm240, %v3216, 0
      %v3261 = vsel %vm240, %v3217, 0
      %v3264 = vsel %vm240, %v3218, 0
      %v3267 = vsel %vm240, %v3219, 0
      %v3270 = vsel %vm240, %v3220, 0
      %v3273 = vsel %vm240, %v3221, 0
      %v3276 = vsel %vm240, %v3222, 0
      %v3279 = vsel %vm240, %v3223, 0
      %v3282 = vsel %vm240, %v3224, 0
      %v3285 = vsel %vm240, %v3225, 0
      %v3288 = vsel %vm240, %v3226, 0
      %v3291 = vsel %vm240, %v3227, 0
      %v3294 = vsel %vm240, %v3228, 0
      %v3297 = vsel %vm240, %v3229, 0
      %v3300 = vsel %vm240, %v3230, 0
      %v3303 = vsel %vm240, %v3231, 0
      %v3306 = vsel %vm240, %v3232, 0
      %v3309 = vsel %vm240, %v3233, 0
      %v3312 = vsel %vm240, %v3234, 0
      %v3315 = vsel %vm240, %v3235, 0
      %v3318 = vsel %vm240, %v3236, 0
      %v3321 = vsel %vm240, %v3237, 0
      %v3324 = vsel %vm240, %v3238, 0
      %v3327 = vsel %vm240, %v3239, 0
      %v3330 = vsel %vm240, %v3240, 0
      %v3333 = vsel %vm240, %v3241, 0
      %v3336 = vsel %vm240, %v3242, 0
      %v3339 = vsel %vm240, %v3243, 0
      %v3342 = vsel %vm240, %v3244, 0
      %3344 = vmatprep.subr.mxu0 0.0
      %3345 = vmatpush1.msra.mxu0 %v3246
      %3346 = vmatprep.subr.mxu0 0.0
      %3347 = vmatpush1.msra.mxu0 %v3247
      %3348 = vmatprep.subr.mxu0 0.0
      %3349 = vmatpush1.msra.mxu0 0.0
      %3350 = vmatprep.subr.mxu0 0.0
      %3351 = vmatpush1.msra.mxu0 0.0
      %3352 = vmatprep.subr.mxu0 0.0
      %3353 = vmatpush1.msra.mxu0 0.0
      %3354 = vmatprep.subr.mxu0 0.0
      %3355 = vmatpush1.msra.mxu0 0.0
      %3356 = vmatprep.subr.mxu0 0.0
      %3357 = vmatpush1.msra.mxu0 0.0
      %3358 = vmatprep.subr.mxu0 0.0
      %3359 = vmatpush1.msra.mxu0 0.0
      %3360 = vmatprep.subr.mxu0 0.0
      %3361 = vmatpush1.msra.mxu0 0.0
      %3362 = vmatprep.subr.mxu0 0.0
      %3363 = vmatpush1.msra.mxu0 0.0
      %3364 = vmatprep.subr.mxu0 0.0
      %3365 = vmatpush1.msra.mxu0 0.0
      %3366 = vmatprep.subr.mxu0 0.0
      %3367 = vmatpush1.msra.mxu0 0.0
      %3368 = vmatprep.subr.mxu0 0.0
      %3369 = vmatpush1.msra.mxu0 0.0
      %3370 = vmatprep.subr.mxu0 0.0
      %3371 = vmatpush1.msra.mxu0 0.0
      %3372 = vmatprep.subr.mxu0 0.0
      %3373 = vmatpush1.msra.mxu0 0.0
      %3374 = vmatprep.subr.mxu0 0.0
      %3375 = vmatpush1.msra.mxu0 0.0
      %3376 = vmatprep.subr.mxu0 0.0
      %3377 = vmatpush1.msra.mxu0 0.0
      %3378 = vmatprep.subr.mxu0 0.0
      %3379 = vmatpush1.msra.mxu0 0.0
      %3380 = vmatprep.subr.mxu0 0.0
      %3381 = vmatpush1.msra.mxu0 0.0
      %3382 = vmatprep.subr.mxu0 0.0
      %3383 = vmatpush1.msra.mxu0 0.0
      %3384 = vmatprep.subr.mxu0 0.0
      %3385 = vmatpush1.msra.mxu0 0.0
      %3386 = vmatprep.subr.mxu0 0.0
      %3387 = vmatpush1.msra.mxu0 0.0
      %3388 = vmatprep.subr.mxu0 0.0
      %3389 = vmatpush1.msra.mxu0 0.0
      %3390 = vmatprep.subr.mxu0 0.0
      %3391 = vmatpush1.msra.mxu0 0.0
      %3392 = vmatprep.subr.mxu0 0.0
      %3393 = vmatpush1.msra.mxu0 0.0
      %3394 = vmatprep.subr.mxu0 0.0
      %3395 = vmatpush1.msra.mxu0 0.0
      %3396 = vmatprep.subr.mxu0 0.0
      %3397 = vmatpush1.msra.mxu0 0.0
      %3398 = vmatprep.subr.mxu0 0.0
      %3399 = vmatpush1.msra.mxu0 0.0
      %3400 = vmatprep.subr.mxu0 0.0
      %3401 = vmatpush1.msra.mxu0 0.0
      %3402 = vmatprep.subr.mxu0 0.0
      %3403 = vmatpush1.msra.mxu0 0.0
      %3404 = vmatprep.subr.mxu0 0.0
      %3405 = vmatpush1.msra.mxu0 0.0
      %3406 = vmatprep.subr.mxu0 0.0
      %3407 = vmatpush1.msra.mxu0 0.0
      %3408 = vmatprep.mubr.f32.mxu0 0.0
      %3409 = vmatmul.mubr.f32.gmra.mrb[0].mxu0 %v3249
      %v3410 = vpop.f32.mrb[0].mxu0
      %v3411 = vadd.f32 0.0, %v3410
      %v3412 = vpop.f32.mrb[0].mxu0
      %3413 = vmatprep.mubr.f32.mxu0 0.0
      %3414 = vmatmul.mubr.f32.gmra.mrb[0].mxu0 %v3252
      %v3415 = vpop.f32.mrb[0].mxu0
      %v3416 = vadd.f32 0.0, %v3415
      %v3417 = vpop.f32.mrb[0].mxu0
      %3418 = vmatprep.mubr.f32.mxu0 0.0
      %3419 = vmatmul.mubr.f32.gmra.mrb[0].mxu0 %v3255
      %v3420 = vpop.f32.mrb[0].mxu0
      %v3421 = vadd.f32 0.0, %v3420
      %v3422 = vpop.f32.mrb[0].mxu0
      %3423 = vmatprep.mubr.f32.mxu0 0.0
      %3424 = vmatmul.mubr.f32.gmra.mrb[0].mxu0 %v3258
      %v3425 = vpop.f32.mrb[0].mxu0
      %v3426 = vadd.f32 0.0, %v3425
      %v3427 = vpop.f32.mrb[0].mxu0
      %3428 = vmatprep.mubr.f32.mxu0 0.0
      %3429 = vmatmul.mubr.f32.gmra.mrb[0].mxu0 %v3261
      %v3430 = vpop.f32.mrb[0].mxu0
      %v3431 = vadd.f32 0.0, %v3430
      %v3432 = vpop.f32.mrb[0].mxu0
      %3433 = vmatprep.mubr.f32.mxu0 0.0
      %3434 = vmatmul.mubr.f32.gmra.mrb[0].mxu0 %v3264
      %v3435 = vpop.f32.mrb[0].mxu0
      %v3436 = vadd.f32 0.0, %v3435
      %v3437 = vpop.f32.mrb[0].mxu0
      %3438 = vmatprep.mubr.f32.mxu0 0.0
      %3439 = vmatmul.mubr.f32.gmra.mrb[0].mxu0 %v3267
      %v3440 = vpop.f32.mrb[0].mxu0
      %v3441 = vadd.f32 0.0, %v3440
      %v3442 = vpop.f32.mrb[0].mxu0
      %3443 = vmatprep.mubr.f32.mxu0 0.0
      %3444 = vmatmul.mubr.f32.gmra.mrb[0].mxu0 %v3270
      %v3445 = vpop.f32.mrb[0].mxu0
      %v3446 = vadd.f32 0.0, %v3445
      %v3447 = vpop.f32.mrb[0].mxu0
      %3448 = vmatprep.mubr.f32.mxu0 0.0
      %3449 = vmatmul.mubr.f32.gmra.mrb[0].mxu0 %v3273
      %v3450 = vpop.f32.mrb[0].mxu0
      %v3451 = vadd.f32 0.0, %v3450
      %v3452 = vpop.f32.mrb[0].mxu0
      %3453 = vmatprep.mubr.f32.mxu0 0.0
      %3454 = vmatmul.mubr.f32.gmra.mrb[0].mxu0 %v3276
      %v3455 = vpop.f32.mrb[0].mxu0
      %v3456 = vadd.f32 0.0, %v3455
      %v3457 = vpop.f32.mrb[0].mxu0
      %3458 = vmatprep.mubr.f32.mxu0 0.0
      %3459 = vmatmul.mubr.f32.gmra.mrb[0].mxu0 %v3279
      %v3460 = vpop.f32.mrb[0].mxu0
      %v3461 = vadd.f32 0.0, %v3460
      %v3462 = vpop.f32.mrb[0].mxu0
      %3463 = vmatprep.mubr.f32.mxu0 0.0
      %3464 = vmatmul.mubr.f32.gmra.mrb[0].mxu0 %v3282
      %v3465 = vpop.f32.mrb[0].mxu0
      %v3466 = vadd.f32 0.0, %v3465
      %v3467 = vpop.f32.mrb[0].mxu0
      %3468 = vmatprep.mubr.f32.mxu0 0.0
      %3469 = vmatmul.mubr.f32.gmra.mrb[0].mxu0 %v3285
      %v3470 = vpop.f32.mrb[0].mxu0
      %v3471 = vadd.f32 0.0, %v3470
      %v3472 = vpop.f32.mrb[0].mxu0
      %3473 = vmatprep.mubr.f32.mxu0 0.0
      %3474 = vmatmul.mubr.f32.gmra.mrb[0].mxu0 %v3288
      %v3475 = vpop.f32.mrb[0].mxu0
      %v3476 = vadd.f32 0.0, %v3475
      %v3477 = vpop.f32.mrb[0].mxu0
      %3478 = vmatprep.mubr.f32.mxu0 0.0
      %3479 = vmatmul.mubr.f32.gmra.mrb[0].mxu0 %v3291
      %v3480 = vpop.f32.mrb[0].mxu0
      %v3481 = vadd.f32 0.0, %v3480
      %v3482 = vpop.f32.mrb[0].mxu0
      %3483 = vmatprep.mubr.f32.mxu0 0.0
      %3484 = vmatmul.mubr.f32.gmra.mrb[0].mxu0 %v3294
      %v3485 = vpop.f32.mrb[0].mxu0
      %v3486 = vadd.f32 0.0, %v3485
      %v3487 = vpop.f32.mrb[0].mxu0
      %3488 = vmatprep.mubr.f32.mxu0 0.0
      %3489 = vmatmul.mubr.f32.gmra.mrb[0].mxu0 %v3297
      %v3490 = vpop.f32.mrb[0].mxu0
      %v3491 = vadd.f32 0.0, %v3490
      %v3492 = vpop.f32.mrb[0].mxu0
      %3493 = vmatprep.mubr.f32.mxu0 0.0
      %3494 = vmatmul.mubr.f32.gmra.mrb[0].mxu0 %v3300
      %v3495 = vpop.f32.mrb[0].mxu0
      %v3496 = vadd.f32 0.0, %v3495
      %v3497 = vpop.f32.mrb[0].mxu0
      %3498 = vmatprep.mubr.f32.mxu0 0.0
      %3499 = vmatmul.mubr.f32.gmra.mrb[0].mxu0 %v3303
      %v3500 = vpop.f32.mrb[0].mxu0
      %v3501 = vadd.f32 0.0, %v3500
      %v3502 = vpop.f32.mrb[0].mxu0
      %3503 = vmatprep.mubr.f32.mxu0 0.0
      %3504 = vmatmul.mubr.f32.gmra.mrb[0].mxu0 %v3306
      %v3505 = vpop.f32.mrb[0].mxu0
      %v3506 = vadd.f32 0.0, %v3505
      %v3507 = vpop.f32.mrb[0].mxu0
      %3508 = vmatprep.mubr.f32.mxu0 0.0
      %3509 = vmatmul.mubr.f32.gmra.mrb[0].mxu0 %v3309
      %v3510 = vpop.f32.mrb[0].mxu0
      %v3511 = vadd.f32 0.0, %v3510
      %v3512 = vpop.f32.mrb[0].mxu0
      %3513 = vmatprep.mubr.f32.mxu0 0.0
      %3514 = vmatmul.mubr.f32.gmra.mrb[0].mxu0 %v3312
      %v3515 = vpop.f32.mrb[0].mxu0
      %v3516 = vadd.f32 0.0, %v3515
      %v3517 = vpop.f32.mrb[0].mxu0
      %3518 = vmatprep.mubr.f32.mxu0 0.0
      %3519 = vmatmul.mubr.f32.gmra.mrb[0].mxu0 %v3315
      %v3520 = vpop.f32.mrb[0].mxu0
      %v3521 = vadd.f32 0.0, %v3520
      %v3522 = vpop.f32.mrb[0].mxu0
      %3523 = vmatprep.mubr.f32.mxu0 0.0
      %3524 = vmatmul.mubr.f32.gmra.mrb[0].mxu0 %v3318
      %v3525 = vpop.f32.mrb[0].mxu0
      %v3526 = vadd.f32 0.0, %v3525
      %v3527 = vpop.f32.mrb[0].mxu0
      %3528 = vmatprep.mubr.f32.mxu0 0.0
      %3529 = vmatmul.mubr.f32.gmra.mrb[0].mxu0 %v3321
      %v3530 = vpop.f32.mrb[0].mxu0
      %v3531 = vadd.f32 0.0, %v3530
      %v3532 = vpop.f32.mrb[0].mxu0
      %3533 = vmatprep.mubr.f32.mxu0 0.0
      %3534 = vmatmul.mubr.f32.gmra.mrb[0].mxu0 %v3324
      %v3535 = vpop.f32.mrb[0].mxu0
      %v3536 = vadd.f32 0.0, %v3535
      %v3537 = vpop.f32.mrb[0].mxu0
      %3538 = vmatprep.mubr.f32.mxu0 0.0
      %3539 = vmatmul.mubr.f32.gmra.mrb[0].mxu0 %v3327
      %v3540 = vpop.f32.mrb[0].mxu0
      %v3541 = vadd.f32 0.0, %v3540
      %v3542 = vpop.f32.mrb[0].mxu0
      %3543 = vmatprep.mubr.f32.mxu0 0.0
      %3544 = vmatmul.mubr.f32.gmra.mrb[0].mxu0 %v3330
      %v3545 = vpop.f32.mrb[0].mxu0
      %v3546 = vadd.f32 0.0, %v3545
      %v3547 = vpop.f32.mrb[0].mxu0
      %3548 = vmatprep.mubr.f32.mxu0 0.0
      %3549 = vmatmul.mubr.f32.gmra.mrb[0].mxu0 %v3333
      %v3550 = vpop.f32.mrb[0].mxu0
      %v3551 = vadd.f32 0.0, %v3550
      %v3552 = vpop.f32.mrb[0].mxu0
      %3553 = vmatprep.mubr.f32.mxu0 0.0
      %3554 = vmatmul.mubr.f32.gmra.mrb[0].mxu0 %v3336
      %v3555 = vpop.f32.mrb[0].mxu0
      %v3556 = vadd.f32 0.0, %v3555
      %v3557 = vpop.f32.mrb[0].mxu0
      %3558 = vmatprep.mubr.f32.mxu0 0.0
      %3559 = vmatmul.mubr.f32.gmra.mrb[0].mxu0 %v3339
      %v3560 = vpop.f32.mrb[0].mxu0
      %v3561 = vadd.f32 0.0, %v3560
      %v3562 = vpop.f32.mrb[0].mxu0
      %3563 = vmatprep.mubr.f32.mxu0 0.0
      %3564 = vmatmul.mubr.f32.gmra.mrb[0].mxu0 %v3342
      %v3565 = vpop.f32.mrb[0].mxu0
      %v3566 = vadd.f32 0.0, %v3565
      %v3567 = vpop.f32.mrb[0].mxu0
      %3568 = vdwg.mxu0
      %v3569 = vadd.f32 %v3181, %v3411
      %v3570 = vadd.f32 %v3182, %v3416
      %v3571 = vadd.f32 %v3183, %v3421
      %v3572 = vadd.f32 %v3184, %v3426
      %v3573 = vadd.f32 %v3185, %v3431
      %v3574 = vadd.f32 %v3186, %v3436
      %v3575 = vadd.f32 %v3187, %v3441
      %v3576 = vadd.f32 %v3188, %v3446
      %v3577 = vadd.f32 %v3189, %v3451
      %v3578 = vadd.f32 %v3190, %v3456
      %v3579 = vadd.f32 %v3191, %v3461
      %v3580 = vadd.f32 %v3192, %v3466
      %v3581 = vadd.f32 %v3193, %v3471
      %v3582 = vadd.f32 %v3194, %v3476
      %v3583 = vadd.f32 %v3195, %v3481
      %v3584 = vadd.f32 %v3196, %v3486
      %v3585 = vadd.f32 %v3197, %v3491
      %v3586 = vadd.f32 %v3198, %v3496
      %v3587 = vadd.f32 %v3199, %v3501
      %v3588 = vadd.f32 %v3200, %v3506
      %v3589 = vadd.f32 %v3201, %v3511
      %v3590 = vadd.f32 %v3202, %v3516
      %v3591 = vadd.f32 %v3203, %v3521
      %v3592 = vadd.f32 %v3204, %v3526
      %v3593 = vadd.f32 %v3205, %v3531
      %v3594 = vadd.f32 %v3206, %v3536
      %v3595 = vadd.f32 %v3207, %v3541
      %v3596 = vadd.f32 %v3208, %v3546
      %v3597 = vadd.f32 %v3209, %v3551
      %v3598 = vadd.f32 %v3210, %v3556
      %v3599 = vadd.f32 %v3211, %v3561
      %v3600 = vadd.f32 %v3212, %v3566
      %v3601 = vld [vmem:[%s2] sm:$0x1]
      %v3603 = vlaneseq
      %v3604 = vshrl.u32 %v3603, 7
      %v3605 = vsub.s32 0, %v3604
      %v3606 = vrot.slane %v3601, %v3605
      %v3608 = vadd.f32 %v3569, %v3606
      %v3609 = vadd.f32 %v3570, %v3606
      %v3610 = vadd.f32 %v3571, %v3606
      %v3611 = vadd.f32 %v3572, %v3606
      %v3612 = vadd.f32 %v3573, %v3606
      %v3613 = vadd.f32 %v3574, %v3606
      %v3614 = vadd.f32 %v3575, %v3606
      %v3615 = vadd.f32 %v3576, %v3606
      %v3616 = vadd.f32 %v3577, %v3606
      %v3617 = vadd.f32 %v3578, %v3606
      %v3618 = vadd.f32 %v3579, %v3606
      %v3619 = vadd.f32 %v3580, %v3606
      %v3620 = vadd.f32 %v3581, %v3606
      %v3621 = vadd.f32 %v3582, %v3606
      %v3622 = vadd.f32 %v3583, %v3606
      %v3623 = vadd.f32 %v3584, %v3606
      %v3624 = vadd.f32 %v3585, %v3606
      %v3625 = vadd.f32 %v3586, %v3606
      %v3626 = vadd.f32 %v3587, %v3606
      %v3627 = vadd.f32 %v3588, %v3606
      %v3628 = vadd.f32 %v3589, %v3606
      %v3629 = vadd.f32 %v3590, %v3606
      %v3630 = vadd.f32 %v3591, %v3606
      %v3631 = vadd.f32 %v3592, %v3606
      %v3632 = vadd.f32 %v3593, %v3606
      %v3633 = vadd.f32 %v3594, %v3606
      %v3634 = vadd.f32 %v3595, %v3606
      %v3635 = vadd.f32 %v3596, %v3606
      %v3636 = vadd.f32 %v3597, %v3606
      %v3637 = vadd.f32 %v3598, %v3606
      %v3638 = vadd.f32 %v3599, %v3606
      %v3639 = vadd.f32 %v3600, %v3606
      %v3640 = vsub.f32 0.0, %v3608
      %v3641 = vsub.f32 0.0, %v3609
      %v3642 = vsub.f32 0.0, %v3610
      %v3643 = vsub.f32 0.0, %v3611
      %v3644 = vsub.f32 0.0, %v3612
      %v3645 = vsub.f32 0.0, %v3613
      %v3646 = vsub.f32 0.0, %v3614
      %v3647 = vsub.f32 0.0, %v3615
      %v3648 = vsub.f32 0.0, %v3616
      %v3649 = vsub.f32 0.0, %v3617
      %v3650 = vsub.f32 0.0, %v3618
      %v3651 = vsub.f32 0.0, %v3619
      %v3652 = vsub.f32 0.0, %v3620
      %v3653 = vsub.f32 0.0, %v3621
      %v3654 = vsub.f32 0.0, %v3622
      %v3655 = vsub.f32 0.0, %v3623
      %v3656 = vsub.f32 0.0, %v3624
      %v3657 = vsub.f32 0.0, %v3625
      %v3658 = vsub.f32 0.0, %v3626
      %v3659 = vsub.f32 0.0, %v3627
      %v3660 = vsub.f32 0.0, %v3628
      %v3661 = vsub.f32 0.0, %v3629
      %v3662 = vsub.f32 0.0, %v3630
      %v3663 = vsub.f32 0.0, %v3631
      %v3664 = vsub.f32 0.0, %v3632
      %v3665 = vsub.f32 0.0, %v3633
      %v3666 = vsub.f32 0.0, %v3634
      %v3667 = vsub.f32 0.0, %v3635
      %v3668 = vsub.f32 0.0, %v3636
      %v3669 = vsub.f32 0.0, %v3637
      %v3670 = vsub.f32 0.0, %v3638
      %v3671 = vsub.f32 0.0, %v3639
      %v3672 = vmul.f32 %v3640, 1.442695
      %v3673 = vpow.pop %v3672
      %v3674 = vmul.f32 %v3641, 1.442695
      %v3675 = vpow.pop %v3674
      %v3676 = vmul.f32 %v3642, 1.442695
      %v3677 = vpow.pop %v3676
      %v3678 = vmul.f32 %v3643, 1.442695
      %v3679 = vpow.pop %v3678
      %v3680 = vmul.f32 %v3644, 1.442695
      %v3681 = vpow.pop %v3680
      %v3682 = vmul.f32 %v3645, 1.442695
      %v3683 = vpow.pop %v3682
      %v3684 = vmul.f32 %v3646, 1.442695
      %v3685 = vpow.pop %v3684
      %v3686 = vmul.f32 %v3647, 1.442695
      %v3687 = vpow.pop %v3686
      %v3688 = vmul.f32 %v3648, 1.442695
      %v3689 = vpow.pop %v3688
      %v3690 = vmul.f32 %v3649, 1.442695
      %v3691 = vpow.pop %v3690
      %v3692 = vmul.f32 %v3650, 1.442695
      %v3693 = vpow.pop %v3692
      %v3694 = vmul.f32 %v3651, 1.442695
      %v3695 = vpow.pop %v3694
      %v3696 = vmul.f32 %v3652, 1.442695
      %v3697 = vpow.pop %v3696
      %v3698 = vmul.f32 %v3653, 1.442695
      %v3699 = vpow.pop %v3698
      %v3700 = vmul.f32 %v3654, 1.442695
      %v3701 = vpow.pop %v3700
      %v3702 = vmul.f32 %v3655, 1.442695
      %v3703 = vpow.pop %v3702
      %v3704 = vmul.f32 %v3656, 1.442695
      %v3705 = vpow.pop %v3704
      %v3706 = vmul.f32 %v3657, 1.442695
      %v3707 = vpow.pop %v3706
      %v3708 = vmul.f32 %v3658, 1.442695
      %v3709 = vpow.pop %v3708
      %v3710 = vmul.f32 %v3659, 1.442695
      %v3711 = vpow.pop %v3710
      %v3712 = vmul.f32 %v3660, 1.442695
      %v3713 = vpow.pop %v3712
      %v3714 = vmul.f32 %v3661, 1.442695
      %v3715 = vpow.pop %v3714
      %v3716 = vmul.f32 %v3662, 1.442695
      %v3717 = vpow.pop %v3716
      %v3718 = vmul.f32 %v3663, 1.442695
      %v3719 = vpow.pop %v3718
      %v3720 = vmul.f32 %v3664, 1.442695
      %v3721 = vpow.pop %v3720
      %v3722 = vmul.f32 %v3665, 1.442695
      %v3723 = vpow.pop %v3722
      %v3724 = vmul.f32 %v3666, 1.442695
      %v3725 = vpow.pop %v3724
      %v3726 = vmul.f32 %v3667, 1.442695
      %v3727 = vpow.pop %v3726
      %v3728 = vmul.f32 %v3668, 1.442695
      %v3729 = vpow.pop %v3728
      %v3730 = vmul.f32 %v3669, 1.442695
      %v3731 = vpow.pop %v3730
      %v3732 = vmul.f32 %v3670, 1.442695
      %v3733 = vpow.pop %v3732
      %v3734 = vmul.f32 %v3671, 1.442695
      %v3735 = vpow.pop %v3734
      %v3736 = vadd.f32 %v3673, 1.0
      %v3737 = vadd.f32 %v3675, 1.0
      %v3738 = vadd.f32 %v3677, 1.0
      %v3739 = vadd.f32 %v3679, 1.0
      %v3740 = vadd.f32 %v3681, 1.0
      %v3741 = vadd.f32 %v3683, 1.0
      %v3742 = vadd.f32 %v3685, 1.0
      %v3743 = vadd.f32 %v3687, 1.0
      %v3744 = vadd.f32 %v3689, 1.0
      %v3745 = vadd.f32 %v3691, 1.0
      %v3746 = vadd.f32 %v3693, 1.0
      %v3747 = vadd.f32 %v3695, 1.0
      %v3748 = vadd.f32 %v3697, 1.0
      %v3749 = vadd.f32 %v3699, 1.0
      %v3750 = vadd.f32 %v3701, 1.0
      %v3751 = vadd.f32 %v3703, 1.0
      %v3752 = vadd.f32 %v3705, 1.0
      %v3753 = vadd.f32 %v3707, 1.0
      %v3754 = vadd.f32 %v3709, 1.0
      %v3755 = vadd.f32 %v3711, 1.0
      %v3756 = vadd.f32 %v3713, 1.0
      %v3757 = vadd.f32 %v3715, 1.0
      %v3758 = vadd.f32 %v3717, 1.0
      %v3759 = vadd.f32 %v3719, 1.0
      %v3760 = vadd.f32 %v3721, 1.0
      %v3761 = vadd.f32 %v3723, 1.0
      %v3762 = vadd.f32 %v3725, 1.0
      %v3763 = vadd.f32 %v3727, 1.0
      %v3764 = vadd.f32 %v3729, 1.0
      %v3765 = vadd.f32 %v3731, 1.0
      %v3766 = vadd.f32 %v3733, 1.0
      %v3767 = vadd.f32 %v3735, 1.0
      %v3768 = vrcp.pop %v3736
      %v3769 = vmul.f32 1.0, %v3768
      %v3770 = vrcp.pop %v3737
      %v3771 = vmul.f32 1.0, %v3770
      %v3772 = vrcp.pop %v3738
      %v3773 = vmul.f32 1.0, %v3772
      %v3774 = vrcp.pop %v3739
      %v3775 = vmul.f32 1.0, %v3774
      %v3776 = vrcp.pop %v3740
      %v3777 = vmul.f32 1.0, %v3776
      %v3778 = vrcp.pop %v3741
      %v3779 = vmul.f32 1.0, %v3778
      %v3780 = vrcp.pop %v3742
      %v3781 = vmul.f32 1.0, %v3780
      %v3782 = vrcp.pop %v3743
      %v3783 = vmul.f32 1.0, %v3782
      %v3784 = vrcp.pop %v3744
      %v3785 = vmul.f32 1.0, %v3784
      %v3786 = vrcp.pop %v3745
      %v3787 = vmul.f32 1.0, %v3786
      %v3788 = vrcp.pop %v3746
      %v3789 = vmul.f32 1.0, %v3788
      %v3790 = vrcp.pop %v3747
      %v3791 = vmul.f32 1.0, %v3790
      %v3792 = vrcp.pop %v3748
      %v3793 = vmul.f32 1.0, %v3792
      %v3794 = vrcp.pop %v3749
      %v3795 = vmul.f32 1.0, %v3794
      %v3796 = vrcp.pop %v3750
      %v3797 = vmul.f32 1.0, %v3796
      %v3798 = vrcp.pop %v3751
      %v3799 = vmul.f32 1.0, %v3798
      %v3800 = vrcp.pop %v3752
      %v3801 = vmul.f32 1.0, %v3800
      %v3802 = vrcp.pop %v3753
      %v3803 = vmul.f32 1.0, %v3802
      %v3804 = vrcp.pop %v3754
      %v3805 = vmul.f32 1.0, %v3804
      %v3806 = vrcp.pop %v3755
      %v3807 = vmul.f32 1.0, %v3806
      %v3808 = vrcp.pop %v3756
      %v3809 = vmul.f32 1.0, %v3808
      %v3810 = vrcp.pop %v3757
      %v3811 = vmul.f32 1.0, %v3810
      %v3812 = vrcp.pop %v3758
      %v3813 = vmul.f32 1.0, %v3812
      %v3814 = vrcp.pop %v3759
      %v3815 = vmul.f32 1.0, %v3814
      %v3816 = vrcp.pop %v3760
      %v3817 = vmul.f32 1.0, %v3816
      %v3818 = vrcp.pop %v3761
      %v3819 = vmul.f32 1.0, %v3818
      %v3820 = vrcp.pop %v3762
      %v3821 = vmul.f32 1.0, %v3820
      %v3822 = vrcp.pop %v3763
      %v3823 = vmul.f32 1.0, %v3822
      %v3824 = vrcp.pop %v3764
      %v3825 = vmul.f32 1.0, %v3824
      %v3826 = vrcp.pop %v3765
      %v3827 = vmul.f32 1.0, %v3826
      %v3828 = vrcp.pop %v3766
      %v3829 = vmul.f32 1.0, %v3828
      %v3830 = vrcp.pop %v3767
      %v3831 = vmul.f32 1.0, %v3830
      %vm3832 = vcmp.ge.f32.partialorder %v3608, 0.0
      %vm3833 = vcmp.ge.f32.partialorder %v3609, 0.0
      %vm3834 = vcmp.ge.f32.partialorder %v3610, 0.0
      %vm3835 = vcmp.ge.f32.partialorder %v3611, 0.0
      %vm3836 = vcmp.ge.f32.partialorder %v3612, 0.0
      %vm3837 = vcmp.ge.f32.partialorder %v3613, 0.0
      %vm3838 = vcmp.ge.f32.partialorder %v3614, 0.0
      %vm3839 = vcmp.ge.f32.partialorder %v3615, 0.0
      %vm3840 = vcmp.ge.f32.partialorder %v3616, 0.0
      %vm3841 = vcmp.ge.f32.partialorder %v3617, 0.0
      %vm3842 = vcmp.ge.f32.partialorder %v3618, 0.0
      %vm3843 = vcmp.ge.f32.partialorder %v3619, 0.0
      %vm3844 = vcmp.ge.f32.partialorder %v3620, 0.0
      %vm3845 = vcmp.ge.f32.partialorder %v3621, 0.0
      %vm3846 = vcmp.ge.f32.partialorder %v3622, 0.0
      %vm3847 = vcmp.ge.f32.partialorder %v3623, 0.0
      %vm3848 = vcmp.ge.f32.partialorder %v3624, 0.0
      %vm3849 = vcmp.ge.f32.partialorder %v3625, 0.0
      %vm3850 = vcmp.ge.f32.partialorder %v3626, 0.0
      %vm3851 = vcmp.ge.f32.partialorder %v3627, 0.0
      %vm3852 = vcmp.ge.f32.partialorder %v3628, 0.0
      %vm3853 = vcmp.ge.f32.partialorder %v3629, 0.0
      %vm3854 = vcmp.ge.f32.partialorder %v3630, 0.0
      %vm3855 = vcmp.ge.f32.partialorder %v3631, 0.0
      %vm3856 = vcmp.ge.f32.partialorder %v3632, 0.0
      %vm3857 = vcmp.ge.f32.partialorder %v3633, 0.0
      %vm3858 = vcmp.ge.f32.partialorder %v3634, 0.0
      %vm3859 = vcmp.ge.f32.partialorder %v3635, 0.0
      %vm3860 = vcmp.ge.f32.partialorder %v3636, 0.0
      %vm3861 = vcmp.ge.f32.partialorder %v3637, 0.0
      %vm3862 = vcmp.ge.f32.partialorder %v3638, 0.0
      %vm3863 = vcmp.ge.f32.partialorder %v3639, 0.0
      %v3864 = vmul.f32 %v3608, 0.2
      %v3865 = vmul.f32 %v3609, 0.2
      %v3866 = vmul.f32 %v3610, 0.2
      %v3867 = vmul.f32 %v3611, 0.2
      %v3868 = vmul.f32 %v3612, 0.2
      %v3869 = vmul.f32 %v3613, 0.2
      %v3870 = vmul.f32 %v3614, 0.2
      %v3871 = vmul.f32 %v3615, 0.2
      %v3872 = vmul.f32 %v3616, 0.2
      %v3873 = vmul.f32 %v3617, 0.2
      %v3874 = vmul.f32 %v3618, 0.2
      %v3875 = vmul.f32 %v3619, 0.2
      %v3876 = vmul.f32 %v3620, 0.2
      %v3877 = vmul.f32 %v3621, 0.2
      %v3878 = vmul.f32 %v3622, 0.2
      %v3879 = vmul.f32 %v3623, 0.2
      %v3880 = vmul.f32 %v3624, 0.2
      %v3881 = vmul.f32 %v3625, 0.2
      %v3882 = vmul.f32 %v3626, 0.2
      %v3883 = vmul.f32 %v3627, 0.2
      %v3884 = vmul.f32 %v3628, 0.2
      %v3885 = vmul.f32 %v3629, 0.2
      %v3886 = vmul.f32 %v3630, 0.2
      %v3887 = vmul.f32 %v3631, 0.2
      %v3888 = vmul.f32 %v3632, 0.2
      %v3889 = vmul.f32 %v3633, 0.2
      %v3890 = vmul.f32 %v3634, 0.2
      %v3891 = vmul.f32 %v3635, 0.2
      %v3892 = vmul.f32 %v3636, 0.2
      %v3893 = vmul.f32 %v3637, 0.2
      %v3894 = vmul.f32 %v3638, 0.2
      %v3895 = vmul.f32 %v3639, 0.2
      %v3896 = vsel %vm3832, %v3608, %v3864
      %v3897 = vsel %vm3833, %v3609, %v3865
      %v3898 = vsel %vm3834, %v3610, %v3866
      %v3899 = vsel %vm3835, %v3611, %v3867
      %v3900 = vsel %vm3836, %v3612, %v3868
      %v3901 = vsel %vm3837, %v3613, %v3869
      %v3902 = vsel %vm3838, %v3614, %v3870
      %v3903 = vsel %vm3839, %v3615, %v3871
      %v3904 = vsel %vm3840, %v3616, %v3872
      %v3905 = vsel %vm3841, %v3617, %v3873
      %v3906 = vsel %vm3842, %v3618, %v3874
      %v3907 = vsel %vm3843, %v3619, %v3875
      %v3908 = vsel %vm3844, %v3620, %v3876
      %v3909 = vsel %vm3845, %v3621, %v3877
      %v3910 = vsel %vm3846, %v3622, %v3878
      %v3911 = vsel %vm3847, %v3623, %v3879
      %v3912 = vsel %vm3848, %v3624, %v3880
      %v3913 = vsel %vm3849, %v3625, %v3881
      %v3914 = vsel %vm3850, %v3626, %v3882
      %v3915 = vsel %vm3851, %v3627, %v3883
      %v3916 = vsel %vm3852, %v3628, %v3884
      %v3917 = vsel %vm3853, %v3629, %v3885
      %v3918 = vsel %vm3854, %v3630, %v3886
      %v3919 = vsel %vm3855, %v3631, %v3887
      %v3920 = vsel %vm3856, %v3632, %v3888
      %v3921 = vsel %vm3857, %v3633, %v3889
      %v3922 = vsel %vm3858, %v3634, %v3890
      %v3923 = vsel %vm3859, %v3635, %v3891
      %v3924 = vsel %vm3860, %v3636, %v3892
      %v3925 = vsel %vm3861, %v3637, %v3893
      %v3926 = vsel %vm3862, %v3638, %v3894
      %v3927 = vsel %vm3863, %v3639, %v3895
      %v3928 = vmul.f32 %v3769, 0.1
      %v3929 = vmul.f32 %v3771, 0.1
      %v3930 = vmul.f32 %v3773, 0.1
      %v3931 = vmul.f32 %v3775, 0.1
      %v3932 = vmul.f32 %v3777, 0.1
      %v3933 = vmul.f32 %v3779, 0.1
      %v3934 = vmul.f32 %v3781, 0.1
      %v3935 = vmul.f32 %v3783, 0.1
      %v3936 = vmul.f32 %v3785, 0.1
      %v3937 = vmul.f32 %v3787, 0.1
      %v3938 = vmul.f32 %v3789, 0.1
      %v3939 = vmul.f32 %v3791, 0.1
      %v3940 = vmul.f32 %v3793, 0.1
      %v3941 = vmul.f32 %v3795, 0.1
      %v3942 = vmul.f32 %v3797, 0.1
      %v3943 = vmul.f32 %v3799, 0.1
      %v3944 = vmul.f32 %v3801, 0.1
      %v3945 = vmul.f32 %v3803, 0.1
      %v3946 = vmul.f32 %v3805, 0.1
      %v3947 = vmul.f32 %v3807, 0.1
      %v3948 = vmul.f32 %v3809, 0.1
      %v3949 = vmul.f32 %v3811, 0.1
      %v3950 = vmul.f32 %v3813, 0.1
      %v3951 = vmul.f32 %v3815, 0.1
      %v3952 = vmul.f32 %v3817, 0.1
      %v3953 = vmul.f32 %v3819, 0.1
      %v3954 = vmul.f32 %v3821, 0.1
      %v3955 = vmul.f32 %v3823, 0.1
      %v3956 = vmul.f32 %v3825, 0.1
      %v3957 = vmul.f32 %v3827, 0.1
      %v3958 = vmul.f32 %v3829, 0.1
      %v3959 = vmul.f32 %v3831, 0.1
      %3992 = vrot.lane.b32.xlu0 %v3896, 112
      %v3993 = vpop.permute.xlu0 %3992
      %3994 = vrot.lane.b32.xlu0 %v3897, 112
      %v3995 = vpop.permute.xlu0 %3994
      %3996 = vrot.lane.b32.xlu0 %v3898, 112
      %v3997 = vpop.permute.xlu0 %3996
      %3998 = vrot.lane.b32.xlu0 %v3899, 112
      %v3999 = vpop.permute.xlu0 %3998
      %4000 = vrot.lane.b32.xlu0 %v3900, 112
      %v4001 = vpop.permute.xlu0 %4000
      %4002 = vrot.lane.b32.xlu0 %v3901, 112
      %v4003 = vpop.permute.xlu0 %4002
      %4004 = vrot.lane.b32.xlu0 %v3902, 112
      %v4005 = vpop.permute.xlu0 %4004
      %4006 = vrot.lane.b32.xlu0 %v3903, 112
      %v4007 = vpop.permute.xlu0 %4006
      %4008 = vrot.lane.b32.xlu0 %v3904, 112
      %v4009 = vpop.permute.xlu0 %4008
      %4010 = vrot.lane.b32.xlu0 %v3905, 112
      %v4011 = vpop.permute.xlu0 %4010
      %4012 = vrot.lane.b32.xlu0 %v3906, 112
      %v4013 = vpop.permute.xlu0 %4012
      %4014 = vrot.lane.b32.xlu0 %v3907, 112
      %v4015 = vpop.permute.xlu0 %4014
      %4016 = vrot.lane.b32.xlu0 %v3908, 112
      %v4017 = vpop.permute.xlu0 %4016
      %4018 = vrot.lane.b32.xlu0 %v3909, 112
      %v4019 = vpop.permute.xlu0 %4018
      %4020 = vrot.lane.b32.xlu0 %v3910, 112
      %v4021 = vpop.permute.xlu0 %4020
      %4022 = vrot.lane.b32.xlu0 %v3911, 112
      %v4023 = vpop.permute.xlu0 %4022
      %4024 = vrot.lane.b32.xlu0 %v3912, 112
      %v4025 = vpop.permute.xlu0 %4024
      %4026 = vrot.lane.b32.xlu0 %v3913, 112
      %v4027 = vpop.permute.xlu0 %4026
      %4028 = vrot.lane.b32.xlu0 %v3914, 112
      %v4029 = vpop.permute.xlu0 %4028
      %4030 = vrot.lane.b32.xlu0 %v3915, 112
      %v4031 = vpop.permute.xlu0 %4030
      %4032 = vrot.lane.b32.xlu0 %v3916, 112
      %v4033 = vpop.permute.xlu0 %4032
      %4034 = vrot.lane.b32.xlu0 %v3917, 112
      %v4035 = vpop.permute.xlu0 %4034
      %4036 = vrot.lane.b32.xlu0 %v3918, 112
      %v4037 = vpop.permute.xlu0 %4036
      %4038 = vrot.lane.b32.xlu0 %v3919, 112
      %v4039 = vpop.permute.xlu0 %4038
      %4040 = vrot.lane.b32.xlu0 %v3920, 112
      %v4041 = vpop.permute.xlu0 %4040
      %4042 = vrot.lane.b32.xlu0 %v3921, 112
      %v4043 = vpop.permute.xlu0 %4042
      %4044 = vrot.lane.b32.xlu0 %v3922, 112
      %v4045 = vpop.permute.xlu0 %4044
      %4046 = vrot.lane.b32.xlu0 %v3923, 112
      %v4047 = vpop.permute.xlu0 %4046
      %4048 = vrot.lane.b32.xlu0 %v3924, 112
      %v4049 = vpop.permute.xlu0 %4048
      %4050 = vrot.lane.b32.xlu0 %v3925, 112
      %v4051 = vpop.permute.xlu0 %4050
      %4052 = vrot.lane.b32.xlu0 %v3926, 112
      %v4053 = vpop.permute.xlu0 %4052
      %4054 = vrot.lane.b32.xlu0 %v3927, 112
      %v4055 = vpop.permute.xlu0 %4054
      %v4088 = vmul.f32 %v3928, %v3993
      %v4089 = vmul.f32 %v3929, %v3995
      %v4090 = vmul.f32 %v3930, %v3997
      %v4091 = vmul.f32 %v3931, %v3999
      %v4092 = vmul.f32 %v3932, %v4001
      %v4093 = vmul.f32 %v3933, %v4003
      %v4094 = vmul.f32 %v3934, %v4005
      %v4095 = vmul.f32 %v3935, %v4007
      %v4096 = vmul.f32 %v3936, %v4009
      %v4097 = vmul.f32 %v3937, %v4011
      %v4098 = vmul.f32 %v3938, %v4013
      %v4099 = vmul.f32 %v3939, %v4015
      %v4100 = vmul.f32 %v3940, %v4017
      %v4101 = vmul.f32 %v3941, %v4019
      %v4102 = vmul.f32 %v3942, %v4021
      %v4103 = vmul.f32 %v3943, %v4023
      %v4104 = vmul.f32 %v3944, %v4025
      %v4105 = vmul.f32 %v3945, %v4027
      %v4106 = vmul.f32 %v3946, %v4029
      %v4107 = vmul.f32 %v3947, %v4031
      %v4108 = vmul.f32 %v3948, %v4033
      %v4109 = vmul.f32 %v3949, %v4035
      %v4110 = vmul.f32 %v3950, %v4037
      %v4111 = vmul.f32 %v3951, %v4039
      %v4112 = vmul.f32 %v3952, %v4041
      %v4113 = vmul.f32 %v3953, %v4043
      %v4114 = vmul.f32 %v3954, %v4045
      %v4115 = vmul.f32 %v3955, %v4047
      %v4116 = vmul.f32 %v3956, %v4049
      %v4117 = vmul.f32 %v3957, %v4051
      %v4118 = vmul.f32 %v3958, %v4053
      %v4119 = vmul.f32 %v3959, %v4055
      %v4120 = vadd.f32 %v4088, %v1660
      %v4121 = vadd.f32 %v4089, %v1661
      %v4122 = vadd.f32 %v4090, %v1662
      %v4123 = vadd.f32 %v4091, %v1663
      %v4124 = vadd.f32 %v4092, %v1664
      %v4125 = vadd.f32 %v4093, %v1665
      %v4126 = vadd.f32 %v4094, %v1666
      %v4127 = vadd.f32 %v4095, %v1667
      %v4128 = vadd.f32 %v4096, %v1668
      %v4129 = vadd.f32 %v4097, %v1669
      %v4130 = vadd.f32 %v4098, %v1670
      %v4131 = vadd.f32 %v4099, %v1671
      %v4132 = vadd.f32 %v4100, %v1672
      %v4133 = vadd.f32 %v4101, %v1673
      %v4134 = vadd.f32 %v4102, %v1674
      %v4135 = vadd.f32 %v4103, %v1675
      %v4136 = vadd.f32 %v4104, %v1676
      %v4137 = vadd.f32 %v4105, %v1677
      %v4138 = vadd.f32 %v4106, %v1678
      %v4139 = vadd.f32 %v4107, %v1679
      %v4140 = vadd.f32 %v4108, %v1680
      %v4141 = vadd.f32 %v4109, %v1681
      %v4142 = vadd.f32 %v4110, %v1682
      %v4143 = vadd.f32 %v4111, %v1683
      %v4144 = vadd.f32 %v4112, %v1684
      %v4145 = vadd.f32 %v4113, %v1685
      %v4146 = vadd.f32 %v4114, %v1686
      %v4147 = vadd.f32 %v4115, %v1687
      %v4148 = vadd.f32 %v4116, %v1688
      %v4149 = vadd.f32 %v4117, %v1689
      %v4150 = vadd.f32 %v4118, %v1690
      %v4151 = vadd.f32 %v4119, %v1691
      %4152 = vst.msk [vmem:[%s170] sm:$0xff] %vm240, %v4120
      %4153 = vst.msk [vmem:[%s170 + $0x8] sm:$0xff] %vm240, %v4121
      %4154 = vst.msk [vmem:[%s170 + $0x10] sm:$0xff] %vm240, %v4122
      %4155 = vst.msk [vmem:[%s170 + $0x18] sm:$0xff] %vm240, %v4123
      %4156 = vst.msk [vmem:[%s170 + $0x20] sm:$0xff] %vm240, %v4124
      %4157 = vst.msk [vmem:[%s170 + $0x28] sm:$0xff] %vm240, %v4125
      %4158 = vst.msk [vmem:[%s170 + $0x30] sm:$0xff] %vm240, %v4126
      %4159 = vst.msk [vmem:[%s170 + $0x38] sm:$0xff] %vm240, %v4127
      %4160 = vst.msk [vmem:[%s170 + $0x40] sm:$0xff] %vm240, %v4128
      %4161 = vst.msk [vmem:[%s170 + $0x48] sm:$0xff] %vm240, %v4129
      %4162 = vst.msk [vmem:[%s170 + $0x50] sm:$0xff] %vm240, %v4130
      %4163 = vst.msk [vmem:[%s170 + $0x58] sm:$0xff] %vm240, %v4131
      %4164 = vst.msk [vmem:[%s170 + $0x60] sm:$0xff] %vm240, %v4132
      %4165 = vst.msk [vmem:[%s170 + $0x68] sm:$0xff] %vm240, %v4133
      %4166 = vst.msk [vmem:[%s170 + $0x70] sm:$0xff] %vm240, %v4134
      %4167 = vst.msk [vmem:[%s170 + $0x78] sm:$0xff] %vm240, %v4135
      %4168 = vst.msk [vmem:[%s170 + $0x80] sm:$0xff] %vm240, %v4136
      %4169 = vst.msk [vmem:[%s170 + $0x88] sm:$0xff] %vm240, %v4137
      %4170 = vst.msk [vmem:[%s170 + $0x90] sm:$0xff] %vm240, %v4138
      %4171 = vst.msk [vmem:[%s170 + $0x98] sm:$0xff] %vm240, %v4139
      %4172 = vst.msk [vmem:[%s170 + $0xa0] sm:$0xff] %vm240, %v4140
      %4173 = vst.msk [vmem:[%s170 + $0xa8] sm:$0xff] %vm240, %v4141
      %4174 = vst.msk [vmem:[%s170 + $0xb0] sm:$0xff] %vm240, %v4142
      %4175 = vst.msk [vmem:[%s170 + $0xb8] sm:$0xff] %vm240, %v4143
      %4176 = vst.msk [vmem:[%s170 + $0xc0] sm:$0xff] %vm240, %v4144
      %4177 = vst.msk [vmem:[%s170 + $0xc8] sm:$0xff] %vm240, %v4145
      %4178 = vst.msk [vmem:[%s170 + $0xd0] sm:$0xff] %vm240, %v4146
      %4179 = vst.msk [vmem:[%s170 + $0xd8] sm:$0xff] %vm240, %v4147
      %4180 = vst.msk [vmem:[%s170 + $0xe0] sm:$0xff] %vm240, %v4148
      %4181 = vst.msk [vmem:[%s170 + $0xe8] sm:$0xff] %vm240, %v4149
      %4182 = vst.msk [vmem:[%s170 + $0xf0] sm:$0xff] %vm240, %v4150
      %4183 = vst.msk [vmem:[%s170 + $0xf8] sm:$0xff] %vm240, %v4151
      %p4184 = scmp.lt.s32.totalorder %s14, 1
      %s4185 = scalar_select %p4184, %s14, 1
      %s4186 = smul.addr %s4185, 32
      %s4187 = smul.addr %s4186, 8
      %s4188 = scalar_lea.vmem %s3, %s4187
      // Predicated region
      $region33: #{spatial_attn_block.1} parent=31 // pred_check
        %p4189 = pneg %p100
      $region34: #{spatial_attn_block.1} parent=31 // pred_check_branch
        %4191 = sbr.rel (%p4189) target = $region36
      $region35: #{spatial_attn_block.1} parent=31 // pred_region
        _
      $region36: #{spatial_attn_block.1} parent=31 // pred_fallthru
        _
    $region32: #{spatial_attn_block.1} parent=5 // pred_fallthru
      _
    %p4192 = scmp.le.s32.totalorder 2, %s9
    // Predicated region
    $region37: #{spatial_attn_block.1} parent=5 // pred_check
      %p4193 = pneg %p4192
    $region38: #{spatial_attn_block.1} parent=5 // pred_check_branch
      %4195 = sbr.rel (%p4193) target = $region40
    $region39: #{spatial_attn_block.1} parent=5 // pred_region
      %s4196 = ssub.s32 %s9, 2
      // Predicated region
      $region41: #{spatial_attn_block.1} parent=39 // pred_check
        %p4197 = pneg %p106
      $region42: #{spatial_attn_block.1} parent=39 // pred_check_branch
        %4199 = sbr.rel (%p4197) target = $region44
      $region43: #{spatial_attn_block.1} parent=39 // pred_region
        %p4200 = scmp.lt.s32.totalorder %s15, 1
        %s4201 = scalar_select %p4200, %s15, 1
        %s4202 = smul.addr %s4201, 32
        %s4203 = smul.addr %s4202, 8
        %s4204 = scalar_lea.vmem %s3, %s4203
      $region44: #{spatial_attn_block.1} parent=39 // pred_fallthru
        _
    $region40: #{spatial_attn_block.1} parent=5 // pred_fallthru
      _
  $region6: #{spatial_attn_block.1} parent=0 // loop_footer
    %s13 = sadd.s32 1, %s9
  $region7: #{spatial_attn_block.1} parent=0 // loop_footer_branch
    %8 = sbr.rel target = $region3
  $region8: #{spatial_attn_block.1} parent=0 // loop_exit
    _

</llo_original>
